<compile_context>
chip_gen: v7x
topology: tpu7x:2x2x1
jax: 0.10.0
libtpu: 0.0.40
codegen_flags: <defaults>
</compile_context>

<pallas_src>
import numpy as np
import jax
import jax.numpy as jnp
from jax.experimental import pallas as pl
from jax.experimental.pallas import tpu as pltpu

# ---- hyperparameters from vis_net.__init__ ----
L = 8                 # n_levels
F = 2                 # n_features_per_level
LOG2_T = 19
T = 1 << LOG2_T       # hashmap size per level
N_MIN = 32            # base resolution
N_CORNERS = 8         # trilinear corners
ENC_DIM = L * F       # 16 = vis_encoder.n_output_dims
HIDDEN = 32
LANES = L * N_CORNERS * F   # 128 corner-feature lanes per point
FRAC_DIM = 3 * L            # 24 per-level fractional coords per point
TILE_N = 1024               # points per kernel tile (mem-bound sweet spot)


# ----------------------------- Pallas kernel ------------------------------
def vis_kernel(cf_ref, fr_ref, E_ref, C_ref, W1T_ref, b1_ref, w2_ref, b2_ref,
               o_ref):
    # Expand per-level frac into per-lane trilinear selection values on the MXU:
    # sel[:, d*128 + lane] = bit_d(lane) ? frac_d : 1 - frac_d
    sel = jnp.dot(fr_ref[...], E_ref[...],
                  preferred_element_type=jnp.float32) + C_ref[...]   # (T, 384)
    w = (sel[:, 0:LANES] * sel[:, LANES:2 * LANES]
         * sel[:, 2 * LANES:3 * LANES])                              # (T, 128)

    # bf16 corner features -> f32 before any elementwise math (v5e friendly).
    weighted = cf_ref[...].astype(jnp.float32) * w                   # (T, 128)

    # Hidden layer, computed transposed: (32, 128) @ (T, 128)^T -> (32, T).
    hT = jax.lax.dot_general(W1T_ref[...], weighted,
                             (((1,), (1,)), ((), ())),
                             preferred_element_type=jnp.float32)     # (32, T)
    hT = jnp.maximum(hT + b1_ref[...], 0.0)                          # +b1 (32,1)

    # Linear(32, 1): sublane reduction against w2 (32, 1) -> lane-dense row.
    logit = jnp.sum(hT * w2_ref[...], axis=0, keepdims=True) + b2_ref[...]
    o_ref[...] = 1.0 / (1.0 + jnp.exp(-logit))                       # (1, T)


@jax.jit
def _mlp_pallas(cf, fr, E, C, W1T, b1c, w2c, b2c):
    n_pad = cf.shape[0]
    n_tiles = n_pad // TILE_N
    cost = pl.CostEstimate(
        flops=n_pad * (2 * FRAC_DIM * 3 * LANES + 2 * LANES * HIDDEN + 16 * LANES),
        transcendentals=n_pad,
        bytes_accessed=n_pad * (LANES * 2 + FRAC_DIM * 4 + 4),
    )
    return pl.pallas_call(
        vis_kernel,
        out_shape=jax.ShapeDtypeStruct((1, n_pad), jnp.float32),
        grid=(n_tiles,),
        in_specs=[
            pl.BlockSpec((TILE_N, LANES), lambda i: (i, 0)),        # cf (bf16)
            pl.BlockSpec((TILE_N, FRAC_DIM), lambda i: (i, 0)),     # frac
            pl.BlockSpec((FRAC_DIM, 3 * LANES), lambda i: (0, 0)),  # E (+/-1)
            pl.BlockSpec((1, 3 * LANES), lambda i: (0, 0)),         # C bias row
            pl.BlockSpec((HIDDEN, LANES), lambda i: (0, 0)),        # W1p^T
            pl.BlockSpec((HIDDEN, 1), lambda i: (0, 0)),            # b1 column
            pl.BlockSpec((HIDDEN, 1), lambda i: (0, 0)),            # W2 column
            pl.BlockSpec((1, 1), lambda i: (0, 0)),                 # b2
        ],
        out_specs=pl.BlockSpec((1, TILE_N), lambda i: (0, i)),      # lane-dense
        compiler_params=pltpu.CompilerParams(
            dimension_semantics=("parallel",)),
        cost_estimate=cost,
    )(cf, fr, E, C, W1T, b1c, w2c, b2c)


# --------------------------- hash-grid encoding ----------------------------
_CORNERS = np.array([[(i >> d) & 1 for d in range(3)] for i in range(N_CORNERS)],
                    dtype=np.uint32)                                  # (8, 3)


def _level_scales(scale):
    b = np.exp(np.log(2048.0 * scale / N_MIN) / (L - 1))
    # tcnn grid_scale(level) = b**level * base_resolution - 1
    return [N_MIN * (b ** l) - 1.0 for l in range(L)]


def _build_sel_constants():
    """Constant +/-1 expansion matrix E (24, 384) and bias row C (1, 384).

    sel = frac @ E + C  gives, per lane and per dim d,
        bit_d(corner) ? frac_d(level) : 1 - frac_d(level).
    """
    E = np.zeros((FRAC_DIM, 3 * LANES), np.float32)
    C = np.zeros((1, 3 * LANES), np.float32)
    for lane in range(LANES):
        level = lane >> 4
        corner = (lane >> 1) & 7
        for d in range(3):
            bit = (corner >> d) & 1
            col = d * LANES + lane
            E[level * 3 + d, col] = 2.0 * bit - 1.0
            C[0, col] = 1.0 - bit
    return E, C


def hash_grid_encode(xn, tables, scale):
    """xn: (N, 3) normalized in [0, 1]; tables: (L, T, F) bfloat16.

    Returns corner features (N, L, 8, F) bf16 and per-level frac (N, L, 3) f32.
    """
    # TODO(synk): the hash-table gather stays in plain JAX (no clean Pallas
    # dynamic-gather over a 2^19-entry table); weighting + MLP run in the kernel.
    corners = jnp.asarray(_CORNERS)                                   # (8, 3) uint32
    primes = jnp.array([1, 2654435761, 805459861], dtype=jnp.uint32)
    feats, fracs = [], []
    for l, s in enumerate(_level_scales(scale)):
        res = int(np.ceil(s)) + 1
        pos = xn * jnp.float32(s) + 0.5                               # (N, 3)
        pos_grid = jnp.floor(pos)
        frac = pos - pos_grid                                         # (N, 3)
        pg = pos_grid.astype(jnp.uint32)
        cpos = pg[:, None, :] + corners[None, :, :]                   # (N, 8, 3)
        if res ** 3 <= T:
            # dense (collision-free) indexing for coarse levels
            idx = (cpos[..., 0]
                   + cpos[..., 1] * np.uint32(res)
                   + cpos[..., 2] * np.uint32(res * res))
        else:
            # instant-NGP spatial hash
            h = cpos * primes
            idx = (h[..., 0] ^ h[..., 1] ^ h[..., 2]) & jnp.uint32(T - 1)
        feats.append(tables[l][idx])                                  # (N, 8, F) bf16
        fracs.append(frac)
    cf = jnp.stack(feats, axis=1)                                     # (N, L, 8, F)
    fr = jnp.stack(fracs, axis=1)                                     # (N, L, 3)
    return cf, fr


# ------------------------------- parameters --------------------------------
def init_params(key):
    k_tab, k_w1, k_b1, k_w2, k_b2 = jax.random.split(key, 5)
    # tcnn hash-grid default init: U(-1e-4, 1e-4); stored bf16 (tcnn uses fp16)
    tables = jax.random.uniform(k_tab, (L, T, F), jnp.float32,
                                -1e-4, 1e-4).astype(jnp.bfloat16)
    bound1 = 1.0 / np.sqrt(ENC_DIM)
    bound2 = 1.0 / np.sqrt(HIDDEN)
    W1 = jax.random.uniform(k_w1, (ENC_DIM, HIDDEN), jnp.float32, -bound1, bound1)
    b1 = jax.random.uniform(k_b1, (HIDDEN,), jnp.float32, -bound1, bound1)
    W2 = jax.random.uniform(k_w2, (HIDDEN,), jnp.float32, -bound2, bound2)
    b2 = jax.random.uniform(k_b2, (1,), jnp.float32, -bound2, bound2)

    # Fold the (level,corner,feat)->(level,feat) selection into W1:
    # W1p[lane, :] = W1[level(lane)*F + feat(lane), :]; pass transposed (32,128).
    lane = np.arange(LANES)
    enc_idx = (lane >> 4) * F + (lane & 1)
    W1pT = W1[jnp.asarray(enc_idx), :].T                              # (32, 128)

    E_np, C_np = _build_sel_constants()
    return dict(tables=tables,
                E=jnp.asarray(E_np), C=jnp.asarray(C_np),
                W1pT=W1pT,
                b1c=b1.reshape(HIDDEN, 1),
                w2c=W2.reshape(HIDDEN, 1),
                b2c=b2.reshape(1, 1))


# -------------------------------- forward ----------------------------------
def vis_net_forward(params, x, scale):
    xyz_min = -jnp.ones((1, 3), jnp.float32) * scale
    xyz_max = jnp.ones((1, 3), jnp.float32) * scale
    xn = (x - xyz_min) / (xyz_max - xyz_min)
    xn = jnp.clip(xn, 0.0, 1.0)

    cf, fr = hash_grid_encode(xn, params["tables"], scale)
    n = x.shape[0]
    cf_flat = cf.reshape(n, LANES)                                    # (N, 128) bf16
    fr_flat = fr.reshape(n, FRAC_DIM)                                 # (N, 24)  f32

    n_pad = ((n + TILE_N - 1) // TILE_N) * TILE_N
    pad = n_pad - n
    cf_flat = jnp.pad(cf_flat, ((0, pad), (0, 0)))
    fr_flat = jnp.pad(fr_flat, ((0, pad), (0, 0)))

    out = _mlp_pallas(cf_flat, fr_flat, params["E"], params["C"],
                      params["W1pT"], params["b1c"], params["w2c"],
                      params["b2c"])                                   # (1, n_pad)
    return out[0, :n]                                                  # vis[:, 0]


if __name__ == "__main__":
    key = jax.random.PRNGKey(0)
    k_params, k_x = jax.random.split(key)

    scale = 1.0
    N = 2500                     # query points (small demo; exercises 3 grid tiles)
    params = init_params(k_params)
    x = jax.random.uniform(k_x, (N, 3), jnp.float32, minval=-scale, maxval=scale)

    vis = vis_net_forward(params, x, scale)
    vis = jax.block_until_ready(vis)

    assert vis.shape == (N,)
    assert bool(jnp.all(jnp.isfinite(vis)))
    assert bool(jnp.all((vis >= 0.0) & (vis <= 1.0)))   # sigmoid output range
    print("KERNEL_OK")
</pallas_src>

<mosaic_0001>
module attributes {stable_mosaic.version = 11 : i64} {
  func.func @vis_kernel(%arg0: i32, %arg1: memref<1024x128xbf16, #tpu.memory_space<vmem>>, %arg2: memref<1024x24xf32, #tpu.memory_space<vmem>>, %arg3: memref<24x384xf32, #tpu.memory_space<vmem>>, %arg4: memref<1x384xf32, #tpu.memory_space<vmem>>, %arg5: memref<32x128xf32, #tpu.memory_space<vmem>>, %arg6: memref<32x1xf32, #tpu.memory_space<vmem>>, %arg7: memref<32x1xf32, #tpu.memory_space<vmem>>, %arg8: memref<1x1xf32, #tpu.memory_space<vmem>>, %arg9: memref<1x1024xf32, #tpu.memory_space<vmem>>) attributes {dimension_semantics = [#tpu.dimension_semantics<parallel>], iteration_bounds = array<i64: 3>, scalar_prefetch = 0 : i64, scratch_operands = 0 : i64, tpu.core_type = #tpu.core_type<tc>, window_params = [{transform_indices = @transform_0, window_bounds = array<i64: 1024, 128>}, {transform_indices = @transform_1, window_bounds = array<i64: 1024, 24>}, {pipeline_mode = #tpu.pipeline_mode<synchronous>, transform_indices = @transform_2, window_bounds = array<i64: 24, 384>}, {pipeline_mode = #tpu.pipeline_mode<synchronous>, transform_indices = @transform_3, window_bounds = array<i64: 1, 384>}, {pipeline_mode = #tpu.pipeline_mode<synchronous>, transform_indices = @transform_4, window_bounds = array<i64: 32, 128>}, {pipeline_mode = #tpu.pipeline_mode<synchronous>, transform_indices = @transform_5, window_bounds = array<i64: 32, 1>}, {pipeline_mode = #tpu.pipeline_mode<synchronous>, transform_indices = @transform_6, window_bounds = array<i64: 32, 1>}, {pipeline_mode = #tpu.pipeline_mode<synchronous>, transform_indices = @transform_7, window_bounds = array<i64: 1, 1>}, {transform_indices = @transform_8, window_bounds = array<i64: 1, 1024>}]} {
    %c0 = arith.constant 0 : index
    %c0_0 = arith.constant 0 : index
    %0 = vector.load %arg2[%c0, %c0_0] : memref<1024x24xf32, #tpu.memory_space<vmem>>, vector<1024x24xf32>
    %c0_1 = arith.constant 0 : index
    %c0_2 = arith.constant 0 : index
    %1 = vector.load %arg3[%c0_1, %c0_2] : memref<24x384xf32, #tpu.memory_space<vmem>>, vector<24x384xf32>
    %cst = arith.constant dense<0.000000e+00> : vector<1024x384xf32>
    %2 = tpu.matmul %0, %1, %cst {dimension_numbers = #tpu.dot_dimension_numbers<[1], [0], [0], [1], [0, 0, 1, 1], [], []>} : vector<1024x24xf32>, vector<24x384xf32>, vector<1024x384xf32> -> vector<1024x384xf32>
    %c0_3 = arith.constant 0 : index
    %c0_4 = arith.constant 0 : index
    %3 = vector.load %arg4[%c0_3, %c0_4] : memref<1x384xf32, #tpu.memory_space<vmem>>, vector<1x384xf32>
    %4 = vector.broadcast %3 : vector<1x384xf32> to vector<1024x384xf32>
    %5 = arith.addf %2, %4 : vector<1024x384xf32>
    %6 = vector.extract_strided_slice %5 {offsets = [0, 0], sizes = [1024, 128], strides = [1, 1]} : vector<1024x384xf32> to vector<1024x128xf32>
    %7 = vector.extract_strided_slice %5 {offsets = [0, 128], sizes = [1024, 128], strides = [1, 1]} : vector<1024x384xf32> to vector<1024x128xf32>
    %8 = arith.mulf %6, %7 : vector<1024x128xf32>
    %9 = vector.extract_strided_slice %5 {offsets = [0, 256], sizes = [1024, 128], strides = [1, 1]} : vector<1024x384xf32> to vector<1024x128xf32>
    %10 = arith.mulf %8, %9 : vector<1024x128xf32>
    %c0_5 = arith.constant 0 : index
    %c0_6 = arith.constant 0 : index
    %11 = vector.load %arg1[%c0_5, %c0_6] : memref<1024x128xbf16, #tpu.memory_space<vmem>>, vector<1024x128xbf16>
    %12 = arith.extf %11 : vector<1024x128xbf16> to vector<1024x128xf32>
    %13 = arith.mulf %12, %10 : vector<1024x128xf32>
    %c0_7 = arith.constant 0 : index
    %c0_8 = arith.constant 0 : index
    %14 = vector.load %arg5[%c0_7, %c0_8] : memref<32x128xf32, #tpu.memory_space<vmem>>, vector<32x128xf32>
    %cst_9 = arith.constant dense<0.000000e+00> : vector<32x1024xf32>
    %15 = tpu.matmul %14, %13, %cst_9 {dimension_numbers = #tpu.dot_dimension_numbers<[1], [1], [0], [0], [0, 0, 1, 0], [], []>} : vector<32x128xf32>, vector<1024x128xf32>, vector<32x1024xf32> -> vector<32x1024xf32>
    %c0_10 = arith.constant 0 : index
    %c0_11 = arith.constant 0 : index
    %16 = vector.load %arg6[%c0_10, %c0_11] : memref<32x1xf32, #tpu.memory_space<vmem>>, vector<32x1xf32>
    %17 = vector.broadcast %16 : vector<32x1xf32> to vector<32x1024xf32>
    %18 = arith.addf %15, %17 : vector<32x1024xf32>
    %cst_12 = arith.constant 0.000000e+00 : f32
    %19 = vector.broadcast %cst_12 : f32 to vector<32x1024xf32>
    %20 = arith.maximumf %18, %19 : vector<32x1024xf32>
    %c0_13 = arith.constant 0 : index
    %c0_14 = arith.constant 0 : index
    %21 = vector.load %arg7[%c0_13, %c0_14] : memref<32x1xf32, #tpu.memory_space<vmem>>, vector<32x1xf32>
    %22 = vector.broadcast %21 : vector<32x1xf32> to vector<32x1024xf32>
    %23 = arith.mulf %20, %22 : vector<32x1024xf32>
    %cst_15 = arith.constant dense<0.000000e+00> : vector<1024xf32>
    %24 = vector.multi_reduction <add>, %23, %cst_15 [0] : vector<32x1024xf32> to vector<1024xf32>
    %25 = vector.shape_cast %24 : vector<1024xf32> to vector<1x1024xf32>
    %c0_16 = arith.constant 0 : index
    %c0_17 = arith.constant 0 : index
    %26 = vector.load %arg8[%c0_16, %c0_17] : memref<1x1xf32, #tpu.memory_space<vmem>>, vector<1x1xf32>
    %27 = vector.broadcast %26 : vector<1x1xf32> to vector<1x1024xf32>
    %28 = arith.addf %25, %27 : vector<1x1024xf32>
    %cst_18 = arith.constant 0.000000e+00 : f32
    %29 = vector.broadcast %cst_18 : f32 to vector<1x1024xf32>
    %30 = arith.subf %29, %28 : vector<1x1024xf32>
    %31 = math.exp %30 : vector<1x1024xf32>
    %cst_19 = arith.constant 1.000000e+00 : f32
    %32 = vector.broadcast %cst_19 : f32 to vector<1x1024xf32>
    %33 = arith.addf %32, %31 : vector<1x1024xf32>
    %cst_20 = arith.constant 1.000000e+00 : f32
    %34 = vector.broadcast %cst_20 : f32 to vector<1x1024xf32>
    %35 = arith.divf %34, %33 : vector<1x1024xf32>
    %c0_21 = arith.constant 0 : index
    %c0_22 = arith.constant 0 : index
    %36 = vector.load %arg9[%c0_21, %c0_22] : memref<1x1024xf32, #tpu.memory_space<vmem>>, vector<1x1024xf32>
    tpu.vector_store %arg9[%c0_21, %c0_22], %35 {strides = array<i32>} : memref<1x1024xf32, #tpu.memory_space<vmem>>, vector<1x1024xf32>,
    return
  }
  func.func @transform_0(%arg0: i32) -> (i32, i32) {
    %c0_i32 = arith.constant 0 : i32
    %c0_i32_0 = arith.constant 0 : i32
    return %arg0, %c0_i32 : i32, i32
  }
  func.func @transform_1(%arg0: i32) -> (i32, i32) {
    %c0_i32 = arith.constant 0 : i32
    %c0_i32_0 = arith.constant 0 : i32
    return %arg0, %c0_i32 : i32, i32
  }
  func.func @transform_2(%arg0: i32) -> (i32, i32) {
    %c0_i32 = arith.constant 0 : i32
    %c0_i32_0 = arith.constant 0 : i32
    %c0_i32_1 = arith.constant 0 : i32
    return %c0_i32, %c0_i32_0 : i32, i32
  }
  func.func @transform_3(%arg0: i32) -> (i32, i32) {
    %c0_i32 = arith.constant 0 : i32
    %c0_i32_0 = arith.constant 0 : i32
    %c0_i32_1 = arith.constant 0 : i32
    return %c0_i32, %c0_i32_0 : i32, i32
  }
  func.func @transform_4(%arg0: i32) -> (i32, i32) {
    %c0_i32 = arith.constant 0 : i32
    %c0_i32_0 = arith.constant 0 : i32
    %c0_i32_1 = arith.constant 0 : i32
    return %c0_i32, %c0_i32_0 : i32, i32
  }
  func.func @transform_5(%arg0: i32) -> (i32, i32) {
    %c0_i32 = arith.constant 0 : i32
    %c0_i32_0 = arith.constant 0 : i32
    %c0_i32_1 = arith.constant 0 : i32
    return %c0_i32, %c0_i32_0 : i32, i32
  }
  func.func @transform_6(%arg0: i32) -> (i32, i32) {
    %c0_i32 = arith.constant 0 : i32
    %c0_i32_0 = arith.constant 0 : i32
    %c0_i32_1 = arith.constant 0 : i32
    return %c0_i32, %c0_i32_0 : i32, i32
  }
  func.func @transform_7(%arg0: i32) -> (i32, i32) {
    %c0_i32 = arith.constant 0 : i32
    %c0_i32_0 = arith.constant 0 : i32
    %c0_i32_1 = arith.constant 0 : i32
    return %c0_i32, %c0_i32_0 : i32, i32
  }
  func.func @transform_8(%arg0: i32) -> (i32, i32) {
    %c0_i32 = arith.constant 0 : i32
    %c0_i32_0 = arith.constant 0 : i32
    return %c0_i32, %arg0 : i32, i32
  }
}

</mosaic_0001>

<llo_original>
// kernel: _mlp_pallas.1
$region0: #{_mlp_pallas.1}
  #allocation0 [shape = 'u32[]', space=smem, size = 0x4, offset = 0x4, fixed_abs, tag = 'smem constant byte address 0x4 - core index']
  #allocation1 [shape = 'u32[144,128]{1,0:T(1,128)}', space=vmem, size = 0x12000, scoped, tag = 'internal scratch']
  #allocation2 [shape = 'f32[1,1]{1,0:T(1,128)S(1)}', space=vmem, size = 0x200, scoped, tag = 'scoped memory for _mlp_pallas.1']
  %s0 = inlined_call_operand.vmem [shape: bf16[3072,128], index: 0, kind: input, shape index: {}]
  %s1 = inlined_call_operand.vmem [shape: f32[3072,24], index: 1, kind: input, shape index: {}]
  %s2 = inlined_call_operand.vmem [shape: f32[24,384], index: 2, kind: input, shape index: {}]
  %s3 = inlined_call_operand.vmem [shape: f32[1,384], index: 3, kind: input, shape index: {}]
  %s4 = inlined_call_operand.vmem [shape: f32[32,128], index: 4, kind: input, shape index: {}]
  %s5 = inlined_call_operand.vmem [shape: f32[32,1], index: 5, kind: input, shape index: {}]
  %s6 = inlined_call_operand.vmem [shape: f32[32,1], index: 6, kind: input, shape index: {}]
  %s7 = inlined_call_operand.<no memory space> [shape: f32[1,1], index: 7, kind: input, shape index: {}]
  %s8 = inlined_call_operand.hbm [shape: f32[1,3072], index: 8, kind: output, shape index: {}]
  %s9 = sld [smem:[#allocation0]]
  $region65: #{_mlp_pallas.1} parent=0
    _
  %s11 = ssub.s32 1, %s9
  %s12 = scalar_select 0, %s11, %s9
  %v13 = vstv %s7
  %14 = vst [vmem:[#allocation2] sm:$0x1] %v13
  $region1: #{_mlp_pallas.1} parent=0
    #allocation3 [shape = 'u8[8192]{0}', space=vmem, size = 0x2000, scoped, tag = 'output window, operand 0']
    #allocation4 [shape = 's32[2]{0}', space=sflag, size = 0x8, scoped, tag = 'scoped memory for _mlp_pallas.1']
    %15 = vsyncpa [#allocation4], 0
    %s16 = scalar_lea.sflag [#allocation4], 1
    %17 = vsyncpa %s16, 0
    loop: start=0, step=1, limit=5
    $region2: #{_mlp_pallas.1} parent=1 // loop_pre_header
      _
    $region3: #{_mlp_pallas.1} parent=1 // loop_header
      %s19 = sphi 0, %s23
      %p20 = scmp.ge.s32.totalorder %s19, 5
      %s29 = sphi 0, %s31
      %s32 = sphi 0, %s29
      %s33 = sphi 0, %s32
      %s49 = sphi 0, %s33
      %s55 = sphi 0, %s57
      %s58 = sphi 0, %s55
      %s59 = sphi 0, %s58
      %s75 = sphi 0, %s59
      %s79 = sphi 0, %s79
      %s81 = sphi 0, %s79
      %s82 = sphi 0, %s81
      %s96 = sphi 0, %s82
      %s100 = sphi 0, %s100
      %s102 = sphi 0, %s100
      %s103 = sphi 0, %s102
      %s117 = sphi 0, %s103
      %s121 = sphi 0, %s121
      %s123 = sphi 0, %s121
      %s124 = sphi 0, %s123
      %s138 = sphi 0, %s124
      %s142 = sphi 0, %s142
      %s144 = sphi 0, %s142
      %s145 = sphi 0, %s144
      %s159 = sphi 0, %s145
      %s163 = sphi 0, %s163
      %s165 = sphi 0, %s163
      %s166 = sphi 0, %s165
      %s180 = sphi 0, %s166
      %s184 = sphi 0, %s184
      %s186 = sphi 0, %s184
      %s187 = sphi 0, %s186
      %s201 = sphi 0, %s187
      %s207 = sphi 0, %s209
      %s210 = sphi 0, %s207
      %s211 = sphi 0, %s210
      %s227 = sphi 0, %s211
    $region4: #{_mlp_pallas.1} parent=1 // loop_header_branch
      %22 = sbr.rel (%p20) target = $region8
    $region5: #{_mlp_pallas.1} parent=1 // loop_body
      %s24 = ssub.s32 %s19, 1
      %s25 = ssub.s32 %s19, 2
      %s26 = sadd.s32 %s19, 1
      %s27 = ssub.s32 %s19, %s26
      %p28 = scmp.eq.s32.totalorder %s27, 0
      %s30 = sadd.s32 %s29, 1
      %s31 = scalar_select %p28, %s29, %s30
      %p34 = pneg %p28
      %p35 = scmp.eq.s32.totalorder %s19, 2
      %p36 = por %p34, %p35
      %p37 = scmp.ne.s32.totalorder %s29, %s32
      %p38 = scmp.eq.s32.totalorder %s19, 0
      %p39 = por %p37, %p38
      %p40 = scmp.ne.s32.totalorder %s29, %s32
      %p41 = scmp.eq.s32.totalorder %s24, 2
      %p42 = por %p40, %p41
      %p43 = scmp.ne.s32.totalorder %s32, %s33
      %p44 = scmp.eq.s32.totalorder %s24, 0
      %p45 = por %p43, %p44
      %p46 = scmp.ne.s32.totalorder %s32, %s33
      %p47 = scmp.eq.s32.totalorder %s25, 2
      %p48 = por %p46, %p47
      %p50 = scmp.ne.s32.totalorder %s33, %s49
      %p51 = scmp.eq.s32.totalorder %s25, 0
      %p52 = por %p50, %p51
      %s53 = ssub.s32 %s19, %s26
      %p54 = scmp.eq.s32.totalorder %s53, 0
      %s56 = sadd.s32 %s55, 1
      %s57 = scalar_select %p54, %s55, %s56
      %p60 = pneg %p54
      %p61 = scmp.eq.s32.totalorder %s19, 2
      %p62 = por %p60, %p61
      %p63 = scmp.ne.s32.totalorder %s55, %s58
      %p64 = scmp.eq.s32.totalorder %s19, 0
      %p65 = por %p63, %p64
      %p66 = scmp.ne.s32.totalorder %s55, %s58
      %p67 = scmp.eq.s32.totalorder %s24, 2
      %p68 = por %p66, %p67
      %p69 = scmp.ne.s32.totalorder %s58, %s59
      %p70 = scmp.eq.s32.totalorder %s24, 0
      %p71 = por %p69, %p70
      %p72 = scmp.ne.s32.totalorder %s58, %s59
      %p73 = scmp.eq.s32.totalorder %s25, 2
      %p74 = por %p72, %p73
      %p76 = scmp.ne.s32.totalorder %s59, %s75
      %p77 = scmp.eq.s32.totalorder %s25, 0
      %p78 = por %p76, %p77
      %s80 = sadd.s32 %s79, 1
      %p83 = scmp.eq.s32.totalorder %s19, 2
      %p84 = scmp.ne.s32.totalorder %s79, %s81
      %p85 = scmp.eq.s32.totalorder %s19, 0
      %p86 = por %p84, %p85
      %p87 = scmp.ne.s32.totalorder %s79, %s81
      %p88 = scmp.eq.s32.totalorder %s24, 2
      %p89 = por %p87, %p88
      %p90 = scmp.ne.s32.totalorder %s81, %s82
      %p91 = scmp.eq.s32.totalorder %s24, 0
      %p92 = por %p90, %p91
      %p93 = scmp.ne.s32.totalorder %s81, %s82
      %p94 = scmp.eq.s32.totalorder %s25, 2
      %p95 = por %p93, %p94
      %p97 = scmp.ne.s32.totalorder %s82, %s96
      %p98 = scmp.eq.s32.totalorder %s25, 0
      %p99 = por %p97, %p98
      %s101 = sadd.s32 %s100, 1
      %p104 = scmp.eq.s32.totalorder %s19, 2
      %p105 = scmp.ne.s32.totalorder %s100, %s102
      %p106 = scmp.eq.s32.totalorder %s19, 0
      %p107 = por %p105, %p106
      %p108 = scmp.ne.s32.totalorder %s100, %s102
      %p109 = scmp.eq.s32.totalorder %s24, 2
      %p110 = por %p108, %p109
      %p111 = scmp.ne.s32.totalorder %s102, %s103
      %p112 = scmp.eq.s32.totalorder %s24, 0
      %p113 = por %p111, %p112
      %p114 = scmp.ne.s32.totalorder %s102, %s103
      %p115 = scmp.eq.s32.totalorder %s25, 2
      %p116 = por %p114, %p115
      %p118 = scmp.ne.s32.totalorder %s103, %s117
      %p119 = scmp.eq.s32.totalorder %s25, 0
      %p120 = por %p118, %p119
      %s122 = sadd.s32 %s121, 1
      %p125 = scmp.eq.s32.totalorder %s19, 2
      %p126 = scmp.ne.s32.totalorder %s121, %s123
      %p127 = scmp.eq.s32.totalorder %s19, 0
      %p128 = por %p126, %p127
      %p129 = scmp.ne.s32.totalorder %s121, %s123
      %p130 = scmp.eq.s32.totalorder %s24, 2
      %p131 = por %p129, %p130
      %p132 = scmp.ne.s32.totalorder %s123, %s124
      %p133 = scmp.eq.s32.totalorder %s24, 0
      %p134 = por %p132, %p133
      %p135 = scmp.ne.s32.totalorder %s123, %s124
      %p136 = scmp.eq.s32.totalorder %s25, 2
      %p137 = por %p135, %p136
      %p139 = scmp.ne.s32.totalorder %s124, %s138
      %p140 = scmp.eq.s32.totalorder %s25, 0
      %p141 = por %p139, %p140
      %s143 = sadd.s32 %s142, 1
      %p146 = scmp.eq.s32.totalorder %s19, 2
      %p147 = scmp.ne.s32.totalorder %s142, %s144
      %p148 = scmp.eq.s32.totalorder %s19, 0
      %p149 = por %p147, %p148
      %p150 = scmp.ne.s32.totalorder %s142, %s144
      %p151 = scmp.eq.s32.totalorder %s24, 2
      %p152 = por %p150, %p151
      %p153 = scmp.ne.s32.totalorder %s144, %s145
      %p154 = scmp.eq.s32.totalorder %s24, 0
      %p155 = por %p153, %p154
      %p156 = scmp.ne.s32.totalorder %s144, %s145
      %p157 = scmp.eq.s32.totalorder %s25, 2
      %p158 = por %p156, %p157
      %p160 = scmp.ne.s32.totalorder %s145, %s159
      %p161 = scmp.eq.s32.totalorder %s25, 0
      %p162 = por %p160, %p161
      %s164 = sadd.s32 %s163, 1
      %p167 = scmp.eq.s32.totalorder %s19, 2
      %p168 = scmp.ne.s32.totalorder %s163, %s165
      %p169 = scmp.eq.s32.totalorder %s19, 0
      %p170 = por %p168, %p169
      %p171 = scmp.ne.s32.totalorder %s163, %s165
      %p172 = scmp.eq.s32.totalorder %s24, 2
      %p173 = por %p171, %p172
      %p174 = scmp.ne.s32.totalorder %s165, %s166
      %p175 = scmp.eq.s32.totalorder %s24, 0
      %p176 = por %p174, %p175
      %p177 = scmp.ne.s32.totalorder %s165, %s166
      %p178 = scmp.eq.s32.totalorder %s25, 2
      %p179 = por %p177, %p178
      %p181 = scmp.ne.s32.totalorder %s166, %s180
      %p182 = scmp.eq.s32.totalorder %s25, 0
      %p183 = por %p181, %p182
      %s185 = sadd.s32 %s184, 1
      %p188 = scmp.eq.s32.totalorder %s19, 2
      %p189 = scmp.ne.s32.totalorder %s184, %s186
      %p190 = scmp.eq.s32.totalorder %s19, 0
      %p191 = por %p189, %p190
      %p192 = scmp.ne.s32.totalorder %s184, %s186
      %p193 = scmp.eq.s32.totalorder %s24, 2
      %p194 = por %p192, %p193
      %p195 = scmp.ne.s32.totalorder %s186, %s187
      %p196 = scmp.eq.s32.totalorder %s24, 0
      %p197 = por %p195, %p196
      %p198 = scmp.ne.s32.totalorder %s186, %s187
      %p199 = scmp.eq.s32.totalorder %s25, 2
      %p200 = por %p198, %p199
      %p202 = scmp.ne.s32.totalorder %s187, %s201
      %p203 = scmp.eq.s32.totalorder %s25, 0
      %p204 = por %p202, %p203
      %s205 = ssub.s32 %s19, %s26
      %p206 = scmp.eq.s32.totalorder %s205, 0
      %s208 = sadd.s32 %s207, 1
      %s209 = scalar_select %p206, %s207, %s208
      %p212 = pneg %p206
      %p213 = scmp.eq.s32.totalorder %s19, 2
      %p214 = por %p212, %p213
      %p215 = scmp.ne.s32.totalorder %s207, %s210
      %p216 = scmp.eq.s32.totalorder %s19, 0
      %p217 = por %p215, %p216
      %p218 = scmp.ne.s32.totalorder %s207, %s210
      %p219 = scmp.eq.s32.totalorder %s24, 2
      %p220 = por %p218, %p219
      %p221 = scmp.ne.s32.totalorder %s210, %s211
      %p222 = scmp.eq.s32.totalorder %s24, 0
      %p223 = por %p221, %p222
      %p224 = scmp.ne.s32.totalorder %s210, %s211
      %p225 = scmp.eq.s32.totalorder %s25, 2
      %p226 = por %p224, %p225
      %p228 = scmp.ne.s32.totalorder %s211, %s227
      %p229 = scmp.eq.s32.totalorder %s25, 0
      %p230 = por %p228, %p229
      %p231 = scmp.le.s32.totalorder 1, %s19
      %p232 = scmp.lt.s32.totalorder %s19, 4
      %p233 = pnand %p231, %p232
      %p234 = pneg %p233
      // Predicated region
      $region9: #{_mlp_pallas.1} parent=5 // pred_check
        _
      $region10: #{_mlp_pallas.1} parent=5 // pred_check_branch
        %236 = sbr.rel (%p233) target = $region12
      $region11: #{_mlp_pallas.1} parent=5 // pred_region
        %s237 = ssub.s32 %s19, 1
        // Predicated region
        $region13: #{_mlp_pallas.1} parent=11 // pred_check
          %p238 = pneg %p92
        $region14: #{_mlp_pallas.1} parent=11 // pred_check_branch
          %240 = sbr.rel (%p238) target = $region16
        $region15: #{_mlp_pallas.1} parent=11 // pred_region
          _
        $region16: #{_mlp_pallas.1} parent=11 // pred_fallthru
          _
        // Predicated region
        $region17: #{_mlp_pallas.1} parent=11 // pred_check
          %p241 = pneg %p113
        $region18: #{_mlp_pallas.1} parent=11 // pred_check_branch
          %243 = sbr.rel (%p241) target = $region20
        $region19: #{_mlp_pallas.1} parent=11 // pred_region
          _
        $region20: #{_mlp_pallas.1} parent=11 // pred_fallthru
          _
        // Predicated region
        $region21: #{_mlp_pallas.1} parent=11 // pred_check
          %p244 = pneg %p134
        $region22: #{_mlp_pallas.1} parent=11 // pred_check_branch
          %246 = sbr.rel (%p244) target = $region24
        $region23: #{_mlp_pallas.1} parent=11 // pred_region
          _
        $region24: #{_mlp_pallas.1} parent=11 // pred_fallthru
          _
        // Predicated region
        $region25: #{_mlp_pallas.1} parent=11 // pred_check
          %p247 = pneg %p155
        $region26: #{_mlp_pallas.1} parent=11 // pred_check_branch
          %249 = sbr.rel (%p247) target = $region28
        $region27: #{_mlp_pallas.1} parent=11 // pred_region
          _
        $region28: #{_mlp_pallas.1} parent=11 // pred_fallthru
          _
        // Predicated region
        $region29: #{_mlp_pallas.1} parent=11 // pred_check
          %p250 = pneg %p176
        $region30: #{_mlp_pallas.1} parent=11 // pred_check_branch
          %252 = sbr.rel (%p250) target = $region32
        $region31: #{_mlp_pallas.1} parent=11 // pred_region
          _
        $region32: #{_mlp_pallas.1} parent=11 // pred_fallthru
          _
        // Predicated region
        $region33: #{_mlp_pallas.1} parent=11 // pred_check
          %p253 = pneg %p197
        $region34: #{_mlp_pallas.1} parent=11 // pred_check_branch
          %255 = sbr.rel (%p253) target = $region36
        $region35: #{_mlp_pallas.1} parent=11 // pred_region
          _
        $region36: #{_mlp_pallas.1} parent=11 // pred_fallthru
          _
      $region12: #{_mlp_pallas.1} parent=5 // pred_fallthru
        _
      %p256 = scmp.lt.s32.totalorder %s19, 3
      // Predicated region
      $region37: #{_mlp_pallas.1} parent=5 // pred_check
        %p257 = pneg %p256
      $region38: #{_mlp_pallas.1} parent=5 // pred_check_branch
        %259 = sbr.rel (%p257) target = $region40
      $region39: #{_mlp_pallas.1} parent=5 // pred_region
        // Predicated region
        $region41: #{_mlp_pallas.1} parent=39 // pred_check
          %p260 = pneg %p39
        $region42: #{_mlp_pallas.1} parent=39 // pred_check_branch
          %262 = sbr.rel (%p260) target = $region44
        $region43: #{_mlp_pallas.1} parent=39 // pred_region
          %s263 = smul.u32 128, %s19
          %p264 = scmp.lt.s32.totalorder %s263, 383
          %s265 = scalar_select %p264, %s263, 383
          %s266 = smul.addr %s265, 4
          %s267 = scalar_lea.vmem %s0, %s266
          %s268 = smul.u32 128, %s19
        $region44: #{_mlp_pallas.1} parent=39 // pred_fallthru
          _
        // Predicated region
        $region45: #{_mlp_pallas.1} parent=39 // pred_check
          %p269 = pneg %p65
        $region46: #{_mlp_pallas.1} parent=39 // pred_check_branch
          %271 = sbr.rel (%p269) target = $region48
        $region47: #{_mlp_pallas.1} parent=39 // pred_region
          %s272 = smul.u32 128, %s19
          %p273 = scmp.lt.s32.totalorder %s272, 383
          %s274 = scalar_select %p273, %s272, 383
          %s275 = smul.addr %s274, 8
          %s276 = scalar_lea.vmem %s1, %s275
          %s277 = smul.u32 128, %s19
        $region48: #{_mlp_pallas.1} parent=39 // pred_fallthru
          _
      $region40: #{_mlp_pallas.1} parent=5 // pred_fallthru
        _
      %p278 = scmp.le.s32.totalorder 1, %s19
      %p279 = scmp.lt.s32.totalorder %s19, 4
      %p280 = pnand %p278, %p279
      %p281 = pneg %p280
      // Predicated region
      $region49: #{_mlp_pallas.1} parent=5 // pred_check
        _
      $region50: #{_mlp_pallas.1} parent=5 // pred_check_branch
        %283 = sbr.rel (%p280) target = $region52
      $region51: #{_mlp_pallas.1} parent=5 // pred_region
        %s284 = ssub.s32 %s19, 1
        %s285 = smul.u32 128, %s24
        %p286 = scmp.lt.s32.totalorder %s285, 383
        %s287 = scalar_select %p286, %s285, 383
        %s288 = smul.addr %s287, 4
        %s289 = scalar_lea.vmem %s0, %s288
        %p290 = pneg %p45
        %p291 = pneg %p42
        %s292 = smul.u32 128, %s24
        %p293 = scmp.lt.s32.totalorder %s292, 383
        %s294 = scalar_select %p293, %s292, 383
        %s295 = smul.addr %s294, 8
        %s296 = scalar_lea.vmem %s1, %s295
        %p297 = pneg %p71
        %p298 = pneg %p68
        %p299 = pneg %p92
        %p300 = pneg %p89
        %p301 = pneg %p113
        %p302 = pneg %p110
        %p303 = pneg %p134
        %p304 = pneg %p131
        %p305 = pneg %p155
        %p306 = pneg %p152
        %p307 = pneg %p176
        %p308 = pneg %p173
        %p309 = pneg %p197
        %p310 = pneg %p194
        %p311 = pneg %p223
        %p312 = pneg %p220
        %s313 = sand.u32 %s210, 1
        %s314 = scalar_lea.sflag [#allocation4], %s313
        %s315 = sand.u32 %s210, 1
        %s316 = smul.addr %s315, 8
        %s317 = scalar_lea.vmem [#allocation3], %s316
        %s318 = smul.u32 128, %s24
        %p319 = scmp.lt.s32.totalorder %s318, 383
        %s320 = scalar_select %p319, %s318, 383
        %s321 = smul.addr %s320, 4
        %s322 = scalar_lea.vmem %s0, %s321
        %s323 = smul.u32 128, %s24
        %s324 = smul.u32 128, %s24
        %p325 = scmp.lt.s32.totalorder %s324, 383
        %s326 = scalar_select %p325, %s324, 383
        %s327 = smul.addr %s326, 8
        %s328 = scalar_lea.vmem %s1, %s327
        %s329 = smul.u32 128, %s24
        %s330 = smul.u32 8, %s24
        %v331 = vld [vmem:[%s328] sm:$0xff]
        %v332 = vld [vmem:[%s328 + $0x8] sm:$0xff]
        %v333 = vld [vmem:[%s328 + $0x10] sm:$0xff]
        %v334 = vld [vmem:[%s328 + $0x18] sm:$0xff]
        %v335 = vld [vmem:[%s328 + $0x20] sm:$0xff]
        %v336 = vld [vmem:[%s328 + $0x28] sm:$0xff]
        %v337 = vld [vmem:[%s328 + $0x30] sm:$0xff]
        %v338 = vld [vmem:[%s328 + $0x38] sm:$0xff]
        %v339 = vld [vmem:[%s328 + $0x40] sm:$0xff]
        %v340 = vld [vmem:[%s328 + $0x48] sm:$0xff]
        %v341 = vld [vmem:[%s328 + $0x50] sm:$0xff]
        %v342 = vld [vmem:[%s328 + $0x58] sm:$0xff]
        %v343 = vld [vmem:[%s328 + $0x60] sm:$0xff]
        %v344 = vld [vmem:[%s328 + $0x68] sm:$0xff]
        %v345 = vld [vmem:[%s328 + $0x70] sm:$0xff]
        %v346 = vld [vmem:[%s328 + $0x78] sm:$0xff]
        %v347 = vld [vmem:[%s328 + $0x80] sm:$0xff]
        %v348 = vld [vmem:[%s328 + $0x88] sm:$0xff]
        %v349 = vld [vmem:[%s328 + $0x90] sm:$0xff]
        %v350 = vld [vmem:[%s328 + $0x98] sm:$0xff]
        %v351 = vld [vmem:[%s328 + $0xa0] sm:$0xff]
        %v352 = vld [vmem:[%s328 + $0xa8] sm:$0xff]
        %v353 = vld [vmem:[%s328 + $0xb0] sm:$0xff]
        %v354 = vld [vmem:[%s328 + $0xb8] sm:$0xff]
        %v355 = vld [vmem:[%s328 + $0xc0] sm:$0xff]
        %v356 = vld [vmem:[%s328 + $0xc8] sm:$0xff]
        %v357 = vld [vmem:[%s328 + $0xd0] sm:$0xff]
        %v358 = vld [vmem:[%s328 + $0xd8] sm:$0xff]
        %v359 = vld [vmem:[%s328 + $0xe0] sm:$0xff]
        %v360 = vld [vmem:[%s328 + $0xe8] sm:$0xff]
        %v361 = vld [vmem:[%s328 + $0xf0] sm:$0xff]
        %v362 = vld [vmem:[%s328 + $0xf8] sm:$0xff]
        %v363 = vld [vmem:[%s328 + $0x100] sm:$0xff]
        %v364 = vld [vmem:[%s328 + $0x108] sm:$0xff]
        %v365 = vld [vmem:[%s328 + $0x110] sm:$0xff]
        %v366 = vld [vmem:[%s328 + $0x118] sm:$0xff]
        %v367 = vld [vmem:[%s328 + $0x120] sm:$0xff]
        %v368 = vld [vmem:[%s328 + $0x128] sm:$0xff]
        %v369 = vld [vmem:[%s328 + $0x130] sm:$0xff]
        %v370 = vld [vmem:[%s328 + $0x138] sm:$0xff]
        %v371 = vld [vmem:[%s328 + $0x140] sm:$0xff]
        %v372 = vld [vmem:[%s328 + $0x148] sm:$0xff]
        %v373 = vld [vmem:[%s328 + $0x150] sm:$0xff]
        %v374 = vld [vmem:[%s328 + $0x158] sm:$0xff]
        %v375 = vld [vmem:[%s328 + $0x160] sm:$0xff]
        %v376 = vld [vmem:[%s328 + $0x168] sm:$0xff]
        %v377 = vld [vmem:[%s328 + $0x170] sm:$0xff]
        %v378 = vld [vmem:[%s328 + $0x178] sm:$0xff]
        %v379 = vld [vmem:[%s328 + $0x180] sm:$0xff]
        %v380 = vld [vmem:[%s328 + $0x188] sm:$0xff]
        %v381 = vld [vmem:[%s328 + $0x190] sm:$0xff]
        %v382 = vld [vmem:[%s328 + $0x198] sm:$0xff]
        %v383 = vld [vmem:[%s328 + $0x1a0] sm:$0xff]
        %v384 = vld [vmem:[%s328 + $0x1a8] sm:$0xff]
        %v385 = vld [vmem:[%s328 + $0x1b0] sm:$0xff]
        %v386 = vld [vmem:[%s328 + $0x1b8] sm:$0xff]
        %v387 = vld [vmem:[%s328 + $0x1c0] sm:$0xff]
        %v388 = vld [vmem:[%s328 + $0x1c8] sm:$0xff]
        %v389 = vld [vmem:[%s328 + $0x1d0] sm:$0xff]
        %v390 = vld [vmem:[%s328 + $0x1d8] sm:$0xff]
        %v391 = vld [vmem:[%s328 + $0x1e0] sm:$0xff]
        %v392 = vld [vmem:[%s328 + $0x1e8] sm:$0xff]
        %v393 = vld [vmem:[%s328 + $0x1f0] sm:$0xff]
        %v394 = vld [vmem:[%s328 + $0x1f8] sm:$0xff]
        %v395 = vld [vmem:[%s328 + $0x200] sm:$0xff]
        %v396 = vld [vmem:[%s328 + $0x208] sm:$0xff]
        %v397 = vld [vmem:[%s328 + $0x210] sm:$0xff]
        %v398 = vld [vmem:[%s328 + $0x218] sm:$0xff]
        %v399 = vld [vmem:[%s328 + $0x220] sm:$0xff]
        %v400 = vld [vmem:[%s328 + $0x228] sm:$0xff]
        %v401 = vld [vmem:[%s328 + $0x230] sm:$0xff]
        %v402 = vld [vmem:[%s328 + $0x238] sm:$0xff]
        %v403 = vld [vmem:[%s328 + $0x240] sm:$0xff]
        %v404 = vld [vmem:[%s328 + $0x248] sm:$0xff]
        %v405 = vld [vmem:[%s328 + $0x250] sm:$0xff]
        %v406 = vld [vmem:[%s328 + $0x258] sm:$0xff]
        %v407 = vld [vmem:[%s328 + $0x260] sm:$0xff]
        %v408 = vld [vmem:[%s328 + $0x268] sm:$0xff]
        %v409 = vld [vmem:[%s328 + $0x270] sm:$0xff]
        %v410 = vld [vmem:[%s328 + $0x278] sm:$0xff]
        %v411 = vld [vmem:[%s328 + $0x280] sm:$0xff]
        %v412 = vld [vmem:[%s328 + $0x288] sm:$0xff]
        %v413 = vld [vmem:[%s328 + $0x290] sm:$0xff]
        %v414 = vld [vmem:[%s328 + $0x298] sm:$0xff]
        %v415 = vld [vmem:[%s328 + $0x2a0] sm:$0xff]
        %v416 = vld [vmem:[%s328 + $0x2a8] sm:$0xff]
        %v417 = vld [vmem:[%s328 + $0x2b0] sm:$0xff]
        %v418 = vld [vmem:[%s328 + $0x2b8] sm:$0xff]
        %v419 = vld [vmem:[%s328 + $0x2c0] sm:$0xff]
        %v420 = vld [vmem:[%s328 + $0x2c8] sm:$0xff]
        %v421 = vld [vmem:[%s328 + $0x2d0] sm:$0xff]
        %v422 = vld [vmem:[%s328 + $0x2d8] sm:$0xff]
        %v423 = vld [vmem:[%s328 + $0x2e0] sm:$0xff]
        %v424 = vld [vmem:[%s328 + $0x2e8] sm:$0xff]
        %v425 = vld [vmem:[%s328 + $0x2f0] sm:$0xff]
        %v426 = vld [vmem:[%s328 + $0x2f8] sm:$0xff]
        %v427 = vld [vmem:[%s328 + $0x300] sm:$0xff]
        %v428 = vld [vmem:[%s328 + $0x308] sm:$0xff]
        %v429 = vld [vmem:[%s328 + $0x310] sm:$0xff]
        %v430 = vld [vmem:[%s328 + $0x318] sm:$0xff]
        %v431 = vld [vmem:[%s328 + $0x320] sm:$0xff]
        %v432 = vld [vmem:[%s328 + $0x328] sm:$0xff]
        %v433 = vld [vmem:[%s328 + $0x330] sm:$0xff]
        %v434 = vld [vmem:[%s328 + $0x338] sm:$0xff]
        %v435 = vld [vmem:[%s328 + $0x340] sm:$0xff]
        %v436 = vld [vmem:[%s328 + $0x348] sm:$0xff]
        %v437 = vld [vmem:[%s328 + $0x350] sm:$0xff]
        %v438 = vld [vmem:[%s328 + $0x358] sm:$0xff]
        %v439 = vld [vmem:[%s328 + $0x360] sm:$0xff]
        %v440 = vld [vmem:[%s328 + $0x368] sm:$0xff]
        %v441 = vld [vmem:[%s328 + $0x370] sm:$0xff]
        %v442 = vld [vmem:[%s328 + $0x378] sm:$0xff]
        %v443 = vld [vmem:[%s328 + $0x380] sm:$0xff]
        %v444 = vld [vmem:[%s328 + $0x388] sm:$0xff]
        %v445 = vld [vmem:[%s328 + $0x390] sm:$0xff]
        %v446 = vld [vmem:[%s328 + $0x398] sm:$0xff]
        %v447 = vld [vmem:[%s328 + $0x3a0] sm:$0xff]
        %v448 = vld [vmem:[%s328 + $0x3a8] sm:$0xff]
        %v449 = vld [vmem:[%s328 + $0x3b0] sm:$0xff]
        %v450 = vld [vmem:[%s328 + $0x3b8] sm:$0xff]
        %v451 = vld [vmem:[%s328 + $0x3c0] sm:$0xff]
        %v452 = vld [vmem:[%s328 + $0x3c8] sm:$0xff]
        %v453 = vld [vmem:[%s328 + $0x3d0] sm:$0xff]
        %v454 = vld [vmem:[%s328 + $0x3d8] sm:$0xff]
        %v455 = vld [vmem:[%s328 + $0x3e0] sm:$0xff]
        %v456 = vld [vmem:[%s328 + $0x3e8] sm:$0xff]
        %v457 = vld [vmem:[%s328 + $0x3f0] sm:$0xff]
        %v458 = vld [vmem:[%s328 + $0x3f8] sm:$0xff]
        %v459 = vld [vmem:[%s2] sm:$0xff]
        %v460 = vld [vmem:[%s2 + $0x8] sm:$0xff]
        %v461 = vld [vmem:[%s2 + $0x10] sm:$0xff]
        %v462 = vld [vmem:[%s2 + $0x18] sm:$0xff]
        %v463 = vld [vmem:[%s2 + $0x20] sm:$0xff]
        %v464 = vld [vmem:[%s2 + $0x28] sm:$0xff]
        %v465 = vld [vmem:[%s2 + $0x30] sm:$0xff]
        %v466 = vld [vmem:[%s2 + $0x38] sm:$0xff]
        %v467 = vld [vmem:[%s2 + $0x40] sm:$0xff]
        %v468 = vld [vmem:[%s3] sm:$0x7]
        %v470 = vlaneseq
        %v471 = vshrl.u32 %v470, 7
        %v472 = vsub.s32 0, %v471
        %v473 = vrot.slane %v468, %v472
        %v474 = vlaneseq
        %v475 = vshrl.u32 %v474, 7
        %v476 = vsub.s32 1, %v475
        %v477 = vrot.slane %v468, %v476
        %v478 = vlaneseq
        %v479 = vshrl.u32 %v478, 7
        %v480 = vsub.s32 2, %v479
        %v481 = vrot.slane %v468, %v480
        %vm485 = vcmask 195584
        %v487 = vsel %vm485, %v331, 0
        %v490 = vsel %vm485, %v332, 0
        %v493 = vsel %vm485, %v333, 0
        %v496 = vsel %vm485, %v334, 0
        %v499 = vsel %vm485, %v335, 0
        %v502 = vsel %vm485, %v336, 0
        %v505 = vsel %vm485, %v337, 0
        %v508 = vsel %vm485, %v338, 0
        %v511 = vsel %vm485, %v339, 0
        %v514 = vsel %vm485, %v340, 0
        %v517 = vsel %vm485, %v341, 0
        %v520 = vsel %vm485, %v342, 0
        %v523 = vsel %vm485, %v343, 0
        %v526 = vsel %vm485, %v344, 0
        %v529 = vsel %vm485, %v345, 0
        %v532 = vsel %vm485, %v346, 0
        %v535 = vsel %vm485, %v347, 0
        %v538 = vsel %vm485, %v348, 0
        %v541 = vsel %vm485, %v349, 0
        %v544 = vsel %vm485, %v350, 0
        %v547 = vsel %vm485, %v351, 0
        %v550 = vsel %vm485, %v352, 0
        %v553 = vsel %vm485, %v353, 0
        %v556 = vsel %vm485, %v354, 0
        %v559 = vsel %vm485, %v355, 0
        %v562 = vsel %vm485, %v356, 0
        %v565 = vsel %vm485, %v357, 0
        %v568 = vsel %vm485, %v358, 0
        %v571 = vsel %vm485, %v359, 0
        %v574 = vsel %vm485, %v360, 0
        %v577 = vsel %vm485, %v361, 0
        %v580 = vsel %vm485, %v362, 0
        %v583 = vsel %vm485, %v363, 0
        %v586 = vsel %vm485, %v364, 0
        %v589 = vsel %vm485, %v365, 0
        %v592 = vsel %vm485, %v366, 0
        %v595 = vsel %vm485, %v367, 0
        %v598 = vsel %vm485, %v368, 0
        %v601 = vsel %vm485, %v369, 0
        %v604 = vsel %vm485, %v370, 0
        %v607 = vsel %vm485, %v371, 0
        %v610 = vsel %vm485, %v372, 0
        %v613 = vsel %vm485, %v373, 0
        %v616 = vsel %vm485, %v374, 0
        %v619 = vsel %vm485, %v375, 0
        %v622 = vsel %vm485, %v376, 0
        %v625 = vsel %vm485, %v377, 0
        %v628 = vsel %vm485, %v378, 0
        %v631 = vsel %vm485, %v379, 0
        %v634 = vsel %vm485, %v380, 0
        %v637 = vsel %vm485, %v381, 0
        %v640 = vsel %vm485, %v382, 0
        %v643 = vsel %vm485, %v383, 0
        %v646 = vsel %vm485, %v384, 0
        %v649 = vsel %vm485, %v385, 0
        %v652 = vsel %vm485, %v386, 0
        %v655 = vsel %vm485, %v387, 0
        %v658 = vsel %vm485, %v388, 0
        %v661 = vsel %vm485, %v389, 0
        %v664 = vsel %vm485, %v390, 0
        %v667 = vsel %vm485, %v391, 0
        %v670 = vsel %vm485, %v392, 0
        %v673 = vsel %vm485, %v393, 0
        %v676 = vsel %vm485, %v394, 0
        %v679 = vsel %vm485, %v395, 0
        %v682 = vsel %vm485, %v396, 0
        %v685 = vsel %vm485, %v397, 0
        %v688 = vsel %vm485, %v398, 0
        %v691 = vsel %vm485, %v399, 0
        %v694 = vsel %vm485, %v400, 0
        %v697 = vsel %vm485, %v401, 0
        %v700 = vsel %vm485, %v402, 0
        %v703 = vsel %vm485, %v403, 0
        %v706 = vsel %vm485, %v404, 0
        %v709 = vsel %vm485, %v405, 0
        %v712 = vsel %vm485, %v406, 0
        %v715 = vsel %vm485, %v407, 0
        %v718 = vsel %vm485, %v408, 0
        %v721 = vsel %vm485, %v409, 0
        %v724 = vsel %vm485, %v410, 0
        %v727 = vsel %vm485, %v411, 0
        %v730 = vsel %vm485, %v412, 0
        %v733 = vsel %vm485, %v413, 0
        %v736 = vsel %vm485, %v414, 0
        %v739 = vsel %vm485, %v415, 0
        %v742 = vsel %vm485, %v416, 0
        %v745 = vsel %vm485, %v417, 0
        %v748 = vsel %vm485, %v418, 0
        %v751 = vsel %vm485, %v419, 0
        %v754 = vsel %vm485, %v420, 0
        %v757 = vsel %vm485, %v421, 0
        %v760 = vsel %vm485, %v422, 0
        %v763 = vsel %vm485, %v423, 0
        %v766 = vsel %vm485, %v424, 0
        %v769 = vsel %vm485, %v425, 0
        %v772 = vsel %vm485, %v426, 0
        %v775 = vsel %vm485, %v427, 0
        %v778 = vsel %vm485, %v428, 0
        %v781 = vsel %vm485, %v429, 0
        %v784 = vsel %vm485, %v430, 0
        %v787 = vsel %vm485, %v431, 0
        %v790 = vsel %vm485, %v432, 0
        %v793 = vsel %vm485, %v433, 0
        %v796 = vsel %vm485, %v434, 0
        %v799 = vsel %vm485, %v435, 0
        %v802 = vsel %vm485, %v436, 0
        %v805 = vsel %vm485, %v437, 0
        %v808 = vsel %vm485, %v438, 0
        %v811 = vsel %vm485, %v439, 0
        %v814 = vsel %vm485, %v440, 0
        %v817 = vsel %vm485, %v441, 0
        %v820 = vsel %vm485, %v442, 0
        %v823 = vsel %vm485, %v443, 0
        %v826 = vsel %vm485, %v444, 0
        %v829 = vsel %vm485, %v445, 0
        %v832 = vsel %vm485, %v446, 0
        %v835 = vsel %vm485, %v447, 0
        %v838 = vsel %vm485, %v448, 0
        %v841 = vsel %vm485, %v449, 0
        %v844 = vsel %vm485, %v450, 0
        %v847 = vsel %vm485, %v451, 0
        %v850 = vsel %vm485, %v452, 0
        %v853 = vsel %vm485, %v453, 0
        %v856 = vsel %vm485, %v454, 0
        %v859 = vsel %vm485, %v455, 0
        %v862 = vsel %vm485, %v456, 0
        %v865 = vsel %vm485, %v457, 0
        %v868 = vsel %vm485, %v458, 0
        %870 = vmatprep.subr.mxu0 %v460
        %871 = vmatpush1.msra.mxu0 %v459
        %872 = vmatprep.subr.mxu0 %v463
        %873 = vmatpush1.msra.mxu0 %v462
        %874 = vmatprep.subr.mxu0 %v466
        %875 = vmatpush1.msra.mxu0 %v465
        %876 = vmatprep.subr.mxu0 0.0
        %877 = vmatpush1.msra.mxu0 0.0
        %878 = vmatprep.subr.mxu0 0.0
        %879 = vmatpush1.msra.mxu0 0.0
        %880 = vmatprep.subr.mxu0 0.0
        %881 = vmatpush1.msra.mxu0 0.0
        %882 = vmatprep.subr.mxu0 0.0
        %883 = vmatpush1.msra.mxu0 0.0
        %884 = vmatprep.subr.mxu0 0.0
        %885 = vmatpush1.msra.mxu0 0.0
        %886 = vmatprep.subr.mxu0 0.0
        %887 = vmatpush1.msra.mxu0 0.0
        %888 = vmatprep.subr.mxu0 0.0
        %889 = vmatpush1.msra.mxu0 0.0
        %890 = vmatprep.subr.mxu0 0.0
        %891 = vmatpush1.msra.mxu0 0.0
        %892 = vmatprep.subr.mxu0 0.0
        %893 = vmatpush1.msra.mxu0 0.0
        %894 = vmatprep.subr.mxu0 0.0
        %895 = vmatpush1.msra.mxu0 0.0
        %896 = vmatprep.subr.mxu0 0.0
        %897 = vmatpush1.msra.mxu0 0.0
        %898 = vmatprep.subr.mxu0 0.0
        %899 = vmatpush1.msra.mxu0 0.0
        %900 = vmatprep.subr.mxu0 0.0
        %901 = vmatpush1.msra.mxu0 0.0
        %902 = vmatprep.subr.mxu0 0.0
        %903 = vmatpush1.msra.mxu0 0.0
        %904 = vmatprep.subr.mxu0 0.0
        %905 = vmatpush1.msra.mxu0 0.0
        %906 = vmatprep.subr.mxu0 0.0
        %907 = vmatpush1.msra.mxu0 0.0
        %908 = vmatprep.subr.mxu0 0.0
        %909 = vmatpush1.msra.mxu0 0.0
        %910 = vmatprep.subr.mxu0 0.0
        %911 = vmatpush1.msra.mxu0 0.0
        %912 = vmatprep.subr.mxu0 0.0
        %913 = vmatpush1.msra.mxu0 0.0
        %914 = vmatprep.subr.mxu0 0.0
        %915 = vmatpush1.msra.mxu0 0.0
        %916 = vmatprep.subr.mxu0 0.0
        %917 = vmatpush1.msra.mxu0 0.0
        %918 = vmatprep.subr.mxu0 0.0
        %919 = vmatpush1.msra.mxu0 0.0
        %920 = vmatprep.subr.mxu0 0.0
        %921 = vmatpush1.msra.mxu0 0.0
        %922 = vmatprep.subr.mxu0 0.0
        %923 = vmatpush1.msra.mxu0 0.0
        %924 = vmatprep.subr.mxu0 0.0
        %925 = vmatpush1.msra.mxu0 0.0
        %926 = vmatprep.subr.mxu0 0.0
        %927 = vmatpush1.msra.mxu0 0.0
        %928 = vmatprep.subr.mxu0 0.0
        %929 = vmatpush1.msra.mxu0 0.0
        %930 = vmatprep.subr.mxu0 0.0
        %931 = vmatpush1.msra.mxu0 0.0
        %932 = vmatprep.subr.mxu0 0.0
        %933 = vmatpush1.msra.mxu0 0.0
        %934 = vmatprep.mubr.f32.mxu0 0.0
        %935 = vmatmul.mubr.f32.gmra.mrb[0].mxu0 %v487
        %v936 = vpop.f32.mrb[0].mxu0
        %v937 = vadd.f32 %v473, %v936
        %v938 = vpop.f32.mrb[0].mxu0
        %v939 = vadd.f32 %v477, %v938
        %940 = vmatprep.mubr.f32.mxu0 0.0
        %941 = vmatmul.mubr.f32.gmra.mrb[0].mxu0 %v490
        %v942 = vpop.f32.mrb[0].mxu0
        %v943 = vadd.f32 %v473, %v942
        %v944 = vpop.f32.mrb[0].mxu0
        %v945 = vadd.f32 %v477, %v944
        %946 = vmatprep.mubr.f32.mxu0 0.0
        %947 = vmatmul.mubr.f32.gmra.mrb[0].mxu0 %v493
        %v948 = vpop.f32.mrb[0].mxu0
        %v949 = vadd.f32 %v473, %v948
        %v950 = vpop.f32.mrb[0].mxu0
        %v951 = vadd.f32 %v477, %v950
        %952 = vmatprep.mubr.f32.mxu0 0.0
        %953 = vmatmul.mubr.f32.gmra.mrb[0].mxu0 %v496
        %v954 = vpop.f32.mrb[0].mxu0
        %v955 = vadd.f32 %v473, %v954
        %v956 = vpop.f32.mrb[0].mxu0
        %v957 = vadd.f32 %v477, %v956
        %958 = vmatprep.mubr.f32.mxu0 0.0
        %959 = vmatmul.mubr.f32.gmra.mrb[0].mxu0 %v499
        %v960 = vpop.f32.mrb[0].mxu0
        %v961 = vadd.f32 %v473, %v960
        %v962 = vpop.f32.mrb[0].mxu0
        %v963 = vadd.f32 %v477, %v962
        %964 = vmatprep.mubr.f32.mxu0 0.0
        %965 = vmatmul.mubr.f32.gmra.mrb[0].mxu0 %v502
        %v966 = vpop.f32.mrb[0].mxu0
        %v967 = vadd.f32 %v473, %v966
        %v968 = vpop.f32.mrb[0].mxu0
        %v969 = vadd.f32 %v477, %v968
        %970 = vmatprep.mubr.f32.mxu0 0.0
        %971 = vmatmul.mubr.f32.gmra.mrb[0].mxu0 %v505
        %v972 = vpop.f32.mrb[0].mxu0
        %v973 = vadd.f32 %v473, %v972
        %v974 = vpop.f32.mrb[0].mxu0
        %v975 = vadd.f32 %v477, %v974
        %976 = vmatprep.mubr.f32.mxu0 0.0
        %977 = vmatmul.mubr.f32.gmra.mrb[0].mxu0 %v508
        %v978 = vpop.f32.mrb[0].mxu0
        %v979 = vadd.f32 %v473, %v978
        %v980 = vpop.f32.mrb[0].mxu0
        %v981 = vadd.f32 %v477, %v980
        %982 = vmatprep.mubr.f32.mxu0 0.0
        %983 = vmatmul.mubr.f32.gmra.mrb[0].mxu0 %v511
        %v984 = vpop.f32.mrb[0].mxu0
        %v985 = vadd.f32 %v473, %v984
        %v986 = vpop.f32.mrb[0].mxu0
        %v987 = vadd.f32 %v477, %v986
        %988 = vmatprep.mubr.f32.mxu0 0.0
        %989 = vmatmul.mubr.f32.gmra.mrb[0].mxu0 %v514
        %v990 = vpop.f32.mrb[0].mxu0
        %v991 = vadd.f32 %v473, %v990
        %v992 = vpop.f32.mrb[0].mxu0
        %v993 = vadd.f32 %v477, %v992
        %994 = vmatprep.mubr.f32.mxu0 0.0
        %995 = vmatmul.mubr.f32.gmra.mrb[0].mxu0 %v517
        %v996 = vpop.f32.mrb[0].mxu0
        %v997 = vadd.f32 %v473, %v996
        %v998 = vpop.f32.mrb[0].mxu0
        %v999 = vadd.f32 %v477, %v998
        %1000 = vmatprep.mubr.f32.mxu0 0.0
        %1001 = vmatmul.mubr.f32.gmra.mrb[0].mxu0 %v520
        %v1002 = vpop.f32.mrb[0].mxu0
        %v1003 = vadd.f32 %v473, %v1002
        %v1004 = vpop.f32.mrb[0].mxu0
        %v1005 = vadd.f32 %v477, %v1004
        %1006 = vmatprep.mubr.f32.mxu0 0.0
        %1007 = vmatmul.mubr.f32.gmra.mrb[0].mxu0 %v523
        %v1008 = vpop.f32.mrb[0].mxu0
        %v1009 = vadd.f32 %v473, %v1008
        %v1010 = vpop.f32.mrb[0].mxu0
        %v1011 = vadd.f32 %v477, %v1010
        %1012 = vmatprep.mubr.f32.mxu0 0.0
        %1013 = vmatmul.mubr.f32.gmra.mrb[0].mxu0 %v526
        %v1014 = vpop.f32.mrb[0].mxu0
        %v1015 = vadd.f32 %v473, %v1014
        %v1016 = vpop.f32.mrb[0].mxu0
        %v1017 = vadd.f32 %v477, %v1016
        %1018 = vmatprep.mubr.f32.mxu0 0.0
        %1019 = vmatmul.mubr.f32.gmra.mrb[0].mxu0 %v529
        %v1020 = vpop.f32.mrb[0].mxu0
        %v1021 = vadd.f32 %v473, %v1020
        %v1022 = vpop.f32.mrb[0].mxu0
        %v1023 = vadd.f32 %v477, %v1022
        %1024 = vmatprep.mubr.f32.mxu0 0.0
        %1025 = vmatmul.mubr.f32.gmra.mrb[0].mxu0 %v532
        %v1026 = vpop.f32.mrb[0].mxu0
        %v1027 = vadd.f32 %v473, %v1026
        %v1028 = vpop.f32.mrb[0].mxu0
        %v1029 = vadd.f32 %v477, %v1028
        %1030 = vmatprep.mubr.f32.mxu0 0.0
        %1031 = vmatmul.mubr.f32.gmra.mrb[0].mxu0 %v535
        %v1032 = vpop.f32.mrb[0].mxu0
        %v1033 = vadd.f32 %v473, %v1032
        %v1034 = vpop.f32.mrb[0].mxu0
        %v1035 = vadd.f32 %v477, %v1034
        %1036 = vmatprep.mubr.f32.mxu0 0.0
        %1037 = vmatmul.mubr.f32.gmra.mrb[0].mxu0 %v538
        %v1038 = vpop.f32.mrb[0].mxu0
        %v1039 = vadd.f32 %v473, %v1038
        %v1040 = vpop.f32.mrb[0].mxu0
        %v1041 = vadd.f32 %v477, %v1040
        %1042 = vmatprep.mubr.f32.mxu0 0.0
        %1043 = vmatmul.mubr.f32.gmra.mrb[0].mxu0 %v541
        %v1044 = vpop.f32.mrb[0].mxu0
        %v1045 = vadd.f32 %v473, %v1044
        %v1046 = vpop.f32.mrb[0].mxu0
        %v1047 = vadd.f32 %v477, %v1046
        %1048 = vmatprep.mubr.f32.mxu0 0.0
        %1049 = vmatmul.mubr.f32.gmra.mrb[0].mxu0 %v544
        %v1050 = vpop.f32.mrb[0].mxu0
        %v1051 = vadd.f32 %v473, %v1050
        %v1052 = vpop.f32.mrb[0].mxu0
        %v1053 = vadd.f32 %v477, %v1052
        %1054 = vmatprep.mubr.f32.mxu0 0.0
        %1055 = vmatmul.mubr.f32.gmra.mrb[0].mxu0 %v547
        %v1056 = vpop.f32.mrb[0].mxu0
        %v1057 = vadd.f32 %v473, %v1056
        %v1058 = vpop.f32.mrb[0].mxu0
        %v1059 = vadd.f32 %v477, %v1058
        %1060 = vmatprep.mubr.f32.mxu0 0.0
        %1061 = vmatmul.mubr.f32.gmra.mrb[0].mxu0 %v550
        %v1062 = vpop.f32.mrb[0].mxu0
        %v1063 = vadd.f32 %v473, %v1062
        %v1064 = vpop.f32.mrb[0].mxu0
        %v1065 = vadd.f32 %v477, %v1064
        %1066 = vmatprep.mubr.f32.mxu0 0.0
        %1067 = vmatmul.mubr.f32.gmra.mrb[0].mxu0 %v553
        %v1068 = vpop.f32.mrb[0].mxu0
        %v1069 = vadd.f32 %v473, %v1068
        %v1070 = vpop.f32.mrb[0].mxu0
        %v1071 = vadd.f32 %v477, %v1070
        %1072 = vmatprep.mubr.f32.mxu0 0.0
        %1073 = vmatmul.mubr.f32.gmra.mrb[0].mxu0 %v556
        %v1074 = vpop.f32.mrb[0].mxu0
        %v1075 = vadd.f32 %v473, %v1074
        %v1076 = vpop.f32.mrb[0].mxu0
        %v1077 = vadd.f32 %v477, %v1076
        %1078 = vmatprep.mubr.f32.mxu0 0.0
        %1079 = vmatmul.mubr.f32.gmra.mrb[0].mxu0 %v559
        %v1080 = vpop.f32.mrb[0].mxu0
        %v1081 = vadd.f32 %v473, %v1080
        %v1082 = vpop.f32.mrb[0].mxu0
        %v1083 = vadd.f32 %v477, %v1082
        %1084 = vmatprep.mubr.f32.mxu0 0.0
        %1085 = vmatmul.mubr.f32.gmra.mrb[0].mxu0 %v562
        %v1086 = vpop.f32.mrb[0].mxu0
        %v1087 = vadd.f32 %v473, %v1086
        %v1088 = vpop.f32.mrb[0].mxu0
        %v1089 = vadd.f32 %v477, %v1088
        %1090 = vmatprep.mubr.f32.mxu0 0.0
        %1091 = vmatmul.mubr.f32.gmra.mrb[0].mxu0 %v565
        %v1092 = vpop.f32.mrb[0].mxu0
        %v1093 = vadd.f32 %v473, %v1092
        %v1094 = vpop.f32.mrb[0].mxu0
        %v1095 = vadd.f32 %v477, %v1094
        %1096 = vmatprep.mubr.f32.mxu0 0.0
        %1097 = vmatmul.mubr.f32.gmra.mrb[0].mxu0 %v568
        %v1098 = vpop.f32.mrb[0].mxu0
        %v1099 = vadd.f32 %v473, %v1098
        %v1100 = vpop.f32.mrb[0].mxu0
        %v1101 = vadd.f32 %v477, %v1100
        %1102 = vmatprep.mubr.f32.mxu0 0.0
        %1103 = vmatmul.mubr.f32.gmra.mrb[0].mxu0 %v571
        %v1104 = vpop.f32.mrb[0].mxu0
        %v1105 = vadd.f32 %v473, %v1104
        %v1106 = vpop.f32.mrb[0].mxu0
        %v1107 = vadd.f32 %v477, %v1106
        %1108 = vmatprep.mubr.f32.mxu0 0.0
        %1109 = vmatmul.mubr.f32.gmra.mrb[0].mxu0 %v574
        %v1110 = vpop.f32.mrb[0].mxu0
        %v1111 = vadd.f32 %v473, %v1110
        %v1112 = vpop.f32.mrb[0].mxu0
        %v1113 = vadd.f32 %v477, %v1112
        %1114 = vmatprep.mubr.f32.mxu0 0.0
        %1115 = vmatmul.mubr.f32.gmra.mrb[0].mxu0 %v577
        %v1116 = vpop.f32.mrb[0].mxu0
        %v1117 = vadd.f32 %v473, %v1116
        %v1118 = vpop.f32.mrb[0].mxu0
        %v1119 = vadd.f32 %v477, %v1118
        %1120 = vmatprep.mubr.f32.mxu0 0.0
        %1121 = vmatmul.mubr.f32.gmra.mrb[0].mxu0 %v580
        %v1122 = vpop.f32.mrb[0].mxu0
        %v1123 = vadd.f32 %v473, %v1122
        %v1124 = vpop.f32.mrb[0].mxu0
        %v1125 = vadd.f32 %v477, %v1124
        %1126 = vmatprep.mubr.f32.mxu0 0.0
        %1127 = vmatmul.mubr.f32.gmra.mrb[0].mxu0 %v583
        %v1128 = vpop.f32.mrb[0].mxu0
        %v1129 = vadd.f32 %v473, %v1128
        %v1130 = vpop.f32.mrb[0].mxu0
        %v1131 = vadd.f32 %v477, %v1130
        %1132 = vmatprep.mubr.f32.mxu0 0.0
        %1133 = vmatmul.mubr.f32.gmra.mrb[0].mxu0 %v586
        %v1134 = vpop.f32.mrb[0].mxu0
        %v1135 = vadd.f32 %v473, %v1134
        %v1136 = vpop.f32.mrb[0].mxu0
        %v1137 = vadd.f32 %v477, %v1136
        %1138 = vmatprep.mubr.f32.mxu0 0.0
        %1139 = vmatmul.mubr.f32.gmra.mrb[0].mxu0 %v589
        %v1140 = vpop.f32.mrb[0].mxu0
        %v1141 = vadd.f32 %v473, %v1140
        %v1142 = vpop.f32.mrb[0].mxu0
        %v1143 = vadd.f32 %v477, %v1142
        %1144 = vmatprep.mubr.f32.mxu0 0.0
        %1145 = vmatmul.mubr.f32.gmra.mrb[0].mxu0 %v592
        %v1146 = vpop.f32.mrb[0].mxu0
        %v1147 = vadd.f32 %v473, %v1146
        %v1148 = vpop.f32.mrb[0].mxu0
        %v1149 = vadd.f32 %v477, %v1148
        %1150 = vmatprep.mubr.f32.mxu0 0.0
        %1151 = vmatmul.mubr.f32.gmra.mrb[0].mxu0 %v595
        %v1152 = vpop.f32.mrb[0].mxu0
        %v1153 = vadd.f32 %v473, %v1152
        %v1154 = vpop.f32.mrb[0].mxu0
        %v1155 = vadd.f32 %v477, %v1154
        %1156 = vmatprep.mubr.f32.mxu0 0.0
        %1157 = vmatmul.mubr.f32.gmra.mrb[0].mxu0 %v598
        %v1158 = vpop.f32.mrb[0].mxu0
        %v1159 = vadd.f32 %v473, %v1158
        %v1160 = vpop.f32.mrb[0].mxu0
        %v1161 = vadd.f32 %v477, %v1160
        %1162 = vmatprep.mubr.f32.mxu0 0.0
        %1163 = vmatmul.mubr.f32.gmra.mrb[0].mxu0 %v601
        %v1164 = vpop.f32.mrb[0].mxu0
        %v1165 = vadd.f32 %v473, %v1164
        %v1166 = vpop.f32.mrb[0].mxu0
        %v1167 = vadd.f32 %v477, %v1166
        %1168 = vmatprep.mubr.f32.mxu0 0.0
        %1169 = vmatmul.mubr.f32.gmra.mrb[0].mxu0 %v604
        %v1170 = vpop.f32.mrb[0].mxu0
        %v1171 = vadd.f32 %v473, %v1170
        %v1172 = vpop.f32.mrb[0].mxu0
        %v1173 = vadd.f32 %v477, %v1172
        %1174 = vmatprep.mubr.f32.mxu0 0.0
        %1175 = vmatmul.mubr.f32.gmra.mrb[0].mxu0 %v607
        %v1176 = vpop.f32.mrb[0].mxu0
        %v1177 = vadd.f32 %v473, %v1176
        %v1178 = vpop.f32.mrb[0].mxu0
        %v1179 = vadd.f32 %v477, %v1178
        %1180 = vmatprep.mubr.f32.mxu0 0.0
        %1181 = vmatmul.mubr.f32.gmra.mrb[0].mxu0 %v610
        %v1182 = vpop.f32.mrb[0].mxu0
        %v1183 = vadd.f32 %v473, %v1182
        %v1184 = vpop.f32.mrb[0].mxu0
        %v1185 = vadd.f32 %v477, %v1184
        %1186 = vmatprep.mubr.f32.mxu0 0.0
        %1187 = vmatmul.mubr.f32.gmra.mrb[0].mxu0 %v613
        %v1188 = vpop.f32.mrb[0].mxu0
        %v1189 = vadd.f32 %v473, %v1188
        %v1190 = vpop.f32.mrb[0].mxu0
        %v1191 = vadd.f32 %v477, %v1190
        %1192 = vmatprep.mubr.f32.mxu0 0.0
        %1193 = vmatmul.mubr.f32.gmra.mrb[0].mxu0 %v616
        %v1194 = vpop.f32.mrb[0].mxu0
        %v1195 = vadd.f32 %v473, %v1194
        %v1196 = vpop.f32.mrb[0].mxu0
        %v1197 = vadd.f32 %v477, %v1196
        %1198 = vmatprep.mubr.f32.mxu0 0.0
        %1199 = vmatmul.mubr.f32.gmra.mrb[0].mxu0 %v619
        %v1200 = vpop.f32.mrb[0].mxu0
        %v1201 = vadd.f32 %v473, %v1200
        %v1202 = vpop.f32.mrb[0].mxu0
        %v1203 = vadd.f32 %v477, %v1202
        %1204 = vmatprep.mubr.f32.mxu0 0.0
        %1205 = vmatmul.mubr.f32.gmra.mrb[0].mxu0 %v622
        %v1206 = vpop.f32.mrb[0].mxu0
        %v1207 = vadd.f32 %v473, %v1206
        %v1208 = vpop.f32.mrb[0].mxu0
        %v1209 = vadd.f32 %v477, %v1208
        %1210 = vmatprep.mubr.f32.mxu0 0.0
        %1211 = vmatmul.mubr.f32.gmra.mrb[0].mxu0 %v625
        %v1212 = vpop.f32.mrb[0].mxu0
        %v1213 = vadd.f32 %v473, %v1212
        %v1214 = vpop.f32.mrb[0].mxu0
        %v1215 = vadd.f32 %v477, %v1214
        %1216 = vmatprep.mubr.f32.mxu0 0.0
        %1217 = vmatmul.mubr.f32.gmra.mrb[0].mxu0 %v628
        %v1218 = vpop.f32.mrb[0].mxu0
        %v1219 = vadd.f32 %v473, %v1218
        %v1220 = vpop.f32.mrb[0].mxu0
        %v1221 = vadd.f32 %v477, %v1220
        %1222 = vmatprep.mubr.f32.mxu0 0.0
        %1223 = vmatmul.mubr.f32.gmra.mrb[0].mxu0 %v631
        %v1224 = vpop.f32.mrb[0].mxu0
        %v1225 = vadd.f32 %v473, %v1224
        %v1226 = vpop.f32.mrb[0].mxu0
        %v1227 = vadd.f32 %v477, %v1226
        %1228 = vmatprep.mubr.f32.mxu0 0.0
        %1229 = vmatmul.mubr.f32.gmra.mrb[0].mxu0 %v634
        %v1230 = vpop.f32.mrb[0].mxu0
        %v1231 = vadd.f32 %v473, %v1230
        %v1232 = vpop.f32.mrb[0].mxu0
        %v1233 = vadd.f32 %v477, %v1232
        %1234 = vmatprep.mubr.f32.mxu0 0.0
        %1235 = vmatmul.mubr.f32.gmra.mrb[0].mxu0 %v637
        %v1236 = vpop.f32.mrb[0].mxu0
        %v1237 = vadd.f32 %v473, %v1236
        %v1238 = vpop.f32.mrb[0].mxu0
        %v1239 = vadd.f32 %v477, %v1238
        %1240 = vmatprep.mubr.f32.mxu0 0.0
        %1241 = vmatmul.mubr.f32.gmra.mrb[0].mxu0 %v640
        %v1242 = vpop.f32.mrb[0].mxu0
        %v1243 = vadd.f32 %v473, %v1242
        %v1244 = vpop.f32.mrb[0].mxu0
        %v1245 = vadd.f32 %v477, %v1244
        %1246 = vmatprep.mubr.f32.mxu0 0.0
        %1247 = vmatmul.mubr.f32.gmra.mrb[0].mxu0 %v643
        %v1248 = vpop.f32.mrb[0].mxu0
        %v1249 = vadd.f32 %v473, %v1248
        %v1250 = vpop.f32.mrb[0].mxu0
        %v1251 = vadd.f32 %v477, %v1250
        %1252 = vmatprep.mubr.f32.mxu0 0.0
        %1253 = vmatmul.mubr.f32.gmra.mrb[0].mxu0 %v646
        %v1254 = vpop.f32.mrb[0].mxu0
        %v1255 = vadd.f32 %v473, %v1254
        %v1256 = vpop.f32.mrb[0].mxu0
        %v1257 = vadd.f32 %v477, %v1256
        %1258 = vmatprep.mubr.f32.mxu0 0.0
        %1259 = vmatmul.mubr.f32.gmra.mrb[0].mxu0 %v649
        %v1260 = vpop.f32.mrb[0].mxu0
        %v1261 = vadd.f32 %v473, %v1260
        %v1262 = vpop.f32.mrb[0].mxu0
        %v1263 = vadd.f32 %v477, %v1262
        %1264 = vmatprep.mubr.f32.mxu0 0.0
        %1265 = vmatmul.mubr.f32.gmra.mrb[0].mxu0 %v652
        %v1266 = vpop.f32.mrb[0].mxu0
        %v1267 = vadd.f32 %v473, %v1266
        %v1268 = vpop.f32.mrb[0].mxu0
        %v1269 = vadd.f32 %v477, %v1268
        %1270 = vmatprep.mubr.f32.mxu0 0.0
        %1271 = vmatmul.mubr.f32.gmra.mrb[0].mxu0 %v655
        %v1272 = vpop.f32.mrb[0].mxu0
        %v1273 = vadd.f32 %v473, %v1272
        %v1274 = vpop.f32.mrb[0].mxu0
        %v1275 = vadd.f32 %v477, %v1274
        %1276 = vmatprep.mubr.f32.mxu0 0.0
        %1277 = vmatmul.mubr.f32.gmra.mrb[0].mxu0 %v658
        %v1278 = vpop.f32.mrb[0].mxu0
        %v1279 = vadd.f32 %v473, %v1278
        %v1280 = vpop.f32.mrb[0].mxu0
        %v1281 = vadd.f32 %v477, %v1280
        %1282 = vmatprep.mubr.f32.mxu0 0.0
        %1283 = vmatmul.mubr.f32.gmra.mrb[0].mxu0 %v661
        %v1284 = vpop.f32.mrb[0].mxu0
        %v1285 = vadd.f32 %v473, %v1284
        %v1286 = vpop.f32.mrb[0].mxu0
        %v1287 = vadd.f32 %v477, %v1286
        %1288 = vmatprep.mubr.f32.mxu0 0.0
        %1289 = vmatmul.mubr.f32.gmra.mrb[0].mxu0 %v664
        %v1290 = vpop.f32.mrb[0].mxu0
        %v1291 = vadd.f32 %v473, %v1290
        %v1292 = vpop.f32.mrb[0].mxu0
        %v1293 = vadd.f32 %v477, %v1292
        %1294 = vmatprep.mubr.f32.mxu0 0.0
        %1295 = vmatmul.mubr.f32.gmra.mrb[0].mxu0 %v667
        %v1296 = vpop.f32.mrb[0].mxu0
        %v1297 = vadd.f32 %v473, %v1296
        %v1298 = vpop.f32.mrb[0].mxu0
        %v1299 = vadd.f32 %v477, %v1298
        %1300 = vmatprep.mubr.f32.mxu0 0.0
        %1301 = vmatmul.mubr.f32.gmra.mrb[0].mxu0 %v670
        %v1302 = vpop.f32.mrb[0].mxu0
        %v1303 = vadd.f32 %v473, %v1302
        %v1304 = vpop.f32.mrb[0].mxu0
        %v1305 = vadd.f32 %v477, %v1304
        %1306 = vmatprep.mubr.f32.mxu0 0.0
        %1307 = vmatmul.mubr.f32.gmra.mrb[0].mxu0 %v673
        %v1308 = vpop.f32.mrb[0].mxu0
        %v1309 = vadd.f32 %v473, %v1308
        %v1310 = vpop.f32.mrb[0].mxu0
        %v1311 = vadd.f32 %v477, %v1310
        %1312 = vmatprep.mubr.f32.mxu0 0.0
        %1313 = vmatmul.mubr.f32.gmra.mrb[0].mxu0 %v676
        %v1314 = vpop.f32.mrb[0].mxu0
        %v1315 = vadd.f32 %v473, %v1314
        %v1316 = vpop.f32.mrb[0].mxu0
        %v1317 = vadd.f32 %v477, %v1316
        %1318 = vmatprep.mubr.f32.mxu0 0.0
        %1319 = vmatmul.mubr.f32.gmra.mrb[0].mxu0 %v679
        %v1320 = vpop.f32.mrb[0].mxu0
        %v1321 = vadd.f32 %v473, %v1320
        %v1322 = vpop.f32.mrb[0].mxu0
        %v1323 = vadd.f32 %v477, %v1322
        %1324 = vmatprep.mubr.f32.mxu0 0.0
        %1325 = vmatmul.mubr.f32.gmra.mrb[0].mxu0 %v682
        %v1326 = vpop.f32.mrb[0].mxu0
        %v1327 = vadd.f32 %v473, %v1326
        %v1328 = vpop.f32.mrb[0].mxu0
        %v1329 = vadd.f32 %v477, %v1328
        %1330 = vmatprep.mubr.f32.mxu0 0.0
        %1331 = vmatmul.mubr.f32.gmra.mrb[0].mxu0 %v685
        %v1332 = vpop.f32.mrb[0].mxu0
        %v1333 = vadd.f32 %v473, %v1332
        %v1334 = vpop.f32.mrb[0].mxu0
        %v1335 = vadd.f32 %v477, %v1334
        %1336 = vmatprep.mubr.f32.mxu0 0.0
        %1337 = vmatmul.mubr.f32.gmra.mrb[0].mxu0 %v688
        %v1338 = vpop.f32.mrb[0].mxu0
        %v1339 = vadd.f32 %v473, %v1338
        %v1340 = vpop.f32.mrb[0].mxu0
        %v1341 = vadd.f32 %v477, %v1340
        %1342 = vmatprep.mubr.f32.mxu0 0.0
        %1343 = vmatmul.mubr.f32.gmra.mrb[0].mxu0 %v691
        %v1344 = vpop.f32.mrb[0].mxu0
        %v1345 = vadd.f32 %v473, %v1344
        %v1346 = vpop.f32.mrb[0].mxu0
        %v1347 = vadd.f32 %v477, %v1346
        %1348 = vmatprep.mubr.f32.mxu0 0.0
        %1349 = vmatmul.mubr.f32.gmra.mrb[0].mxu0 %v694
        %v1350 = vpop.f32.mrb[0].mxu0
        %v1351 = vadd.f32 %v473, %v1350
        %v1352 = vpop.f32.mrb[0].mxu0
        %v1353 = vadd.f32 %v477, %v1352
        %1354 = vmatprep.mubr.f32.mxu0 0.0
        %1355 = vmatmul.mubr.f32.gmra.mrb[0].mxu0 %v697
        %v1356 = vpop.f32.mrb[0].mxu0
        %v1357 = vadd.f32 %v473, %v1356
        %v1358 = vpop.f32.mrb[0].mxu0
        %v1359 = vadd.f32 %v477, %v1358
        %1360 = vmatprep.mubr.f32.mxu0 0.0
        %1361 = vmatmul.mubr.f32.gmra.mrb[0].mxu0 %v700
        %v1362 = vpop.f32.mrb[0].mxu0
        %v1363 = vadd.f32 %v473, %v1362
        %v1364 = vpop.f32.mrb[0].mxu0
        %v1365 = vadd.f32 %v477, %v1364
        %1366 = vmatprep.mubr.f32.mxu0 0.0
        %1367 = vmatmul.mubr.f32.gmra.mrb[0].mxu0 %v703
        %v1368 = vpop.f32.mrb[0].mxu0
        %v1369 = vadd.f32 %v473, %v1368
        %v1370 = vpop.f32.mrb[0].mxu0
        %v1371 = vadd.f32 %v477, %v1370
        %1372 = vmatprep.mubr.f32.mxu0 0.0
        %1373 = vmatmul.mubr.f32.gmra.mrb[0].mxu0 %v706
        %v1374 = vpop.f32.mrb[0].mxu0
        %v1375 = vadd.f32 %v473, %v1374
        %v1376 = vpop.f32.mrb[0].mxu0
        %v1377 = vadd.f32 %v477, %v1376
        %1378 = vmatprep.mubr.f32.mxu0 0.0
        %1379 = vmatmul.mubr.f32.gmra.mrb[0].mxu0 %v709
        %v1380 = vpop.f32.mrb[0].mxu0
        %v1381 = vadd.f32 %v473, %v1380
        %v1382 = vpop.f32.mrb[0].mxu0
        %v1383 = vadd.f32 %v477, %v1382
        %1384 = vmatprep.mubr.f32.mxu0 0.0
        %1385 = vmatmul.mubr.f32.gmra.mrb[0].mxu0 %v712
        %v1386 = vpop.f32.mrb[0].mxu0
        %v1387 = vadd.f32 %v473, %v1386
        %v1388 = vpop.f32.mrb[0].mxu0
        %v1389 = vadd.f32 %v477, %v1388
        %1390 = vmatprep.mubr.f32.mxu0 0.0
        %1391 = vmatmul.mubr.f32.gmra.mrb[0].mxu0 %v715
        %v1392 = vpop.f32.mrb[0].mxu0
        %v1393 = vadd.f32 %v473, %v1392
        %v1394 = vpop.f32.mrb[0].mxu0
        %v1395 = vadd.f32 %v477, %v1394
        %1396 = vmatprep.mubr.f32.mxu0 0.0
        %1397 = vmatmul.mubr.f32.gmra.mrb[0].mxu0 %v718
        %v1398 = vpop.f32.mrb[0].mxu0
        %v1399 = vadd.f32 %v473, %v1398
        %v1400 = vpop.f32.mrb[0].mxu0
        %v1401 = vadd.f32 %v477, %v1400
        %1402 = vmatprep.mubr.f32.mxu0 0.0
        %1403 = vmatmul.mubr.f32.gmra.mrb[0].mxu0 %v721
        %v1404 = vpop.f32.mrb[0].mxu0
        %v1405 = vadd.f32 %v473, %v1404
        %v1406 = vpop.f32.mrb[0].mxu0
        %v1407 = vadd.f32 %v477, %v1406
        %1408 = vmatprep.mubr.f32.mxu0 0.0
        %1409 = vmatmul.mubr.f32.gmra.mrb[0].mxu0 %v724
        %v1410 = vpop.f32.mrb[0].mxu0
        %v1411 = vadd.f32 %v473, %v1410
        %v1412 = vpop.f32.mrb[0].mxu0
        %v1413 = vadd.f32 %v477, %v1412
        %1414 = vmatprep.mubr.f32.mxu0 0.0
        %1415 = vmatmul.mubr.f32.gmra.mrb[0].mxu0 %v727
        %v1416 = vpop.f32.mrb[0].mxu0
        %v1417 = vadd.f32 %v473, %v1416
        %v1418 = vpop.f32.mrb[0].mxu0
        %v1419 = vadd.f32 %v477, %v1418
        %1420 = vmatprep.mubr.f32.mxu0 0.0
        %1421 = vmatmul.mubr.f32.gmra.mrb[0].mxu0 %v730
        %v1422 = vpop.f32.mrb[0].mxu0
        %v1423 = vadd.f32 %v473, %v1422
        %v1424 = vpop.f32.mrb[0].mxu0
        %v1425 = vadd.f32 %v477, %v1424
        %1426 = vmatprep.mubr.f32.mxu0 0.0
        %1427 = vmatmul.mubr.f32.gmra.mrb[0].mxu0 %v733
        %v1428 = vpop.f32.mrb[0].mxu0
        %v1429 = vadd.f32 %v473, %v1428
        %v1430 = vpop.f32.mrb[0].mxu0
        %v1431 = vadd.f32 %v477, %v1430
        %1432 = vmatprep.mubr.f32.mxu0 0.0
        %1433 = vmatmul.mubr.f32.gmra.mrb[0].mxu0 %v736
        %v1434 = vpop.f32.mrb[0].mxu0
        %v1435 = vadd.f32 %v473, %v1434
        %v1436 = vpop.f32.mrb[0].mxu0
        %v1437 = vadd.f32 %v477, %v1436
        %1438 = vmatprep.mubr.f32.mxu0 0.0
        %1439 = vmatmul.mubr.f32.gmra.mrb[0].mxu0 %v739
        %v1440 = vpop.f32.mrb[0].mxu0
        %v1441 = vadd.f32 %v473, %v1440
        %v1442 = vpop.f32.mrb[0].mxu0
        %v1443 = vadd.f32 %v477, %v1442
        %1444 = vmatprep.mubr.f32.mxu0 0.0
        %1445 = vmatmul.mubr.f32.gmra.mrb[0].mxu0 %v742
        %v1446 = vpop.f32.mrb[0].mxu0
        %v1447 = vadd.f32 %v473, %v1446
        %v1448 = vpop.f32.mrb[0].mxu0
        %v1449 = vadd.f32 %v477, %v1448
        %1450 = vmatprep.mubr.f32.mxu0 0.0
        %1451 = vmatmul.mubr.f32.gmra.mrb[0].mxu0 %v745
        %v1452 = vpop.f32.mrb[0].mxu0
        %v1453 = vadd.f32 %v473, %v1452
        %v1454 = vpop.f32.mrb[0].mxu0
        %v1455 = vadd.f32 %v477, %v1454
        %1456 = vmatprep.mubr.f32.mxu0 0.0
        %1457 = vmatmul.mubr.f32.gmra.mrb[0].mxu0 %v748
        %v1458 = vpop.f32.mrb[0].mxu0
        %v1459 = vadd.f32 %v473, %v1458
        %v1460 = vpop.f32.mrb[0].mxu0
        %v1461 = vadd.f32 %v477, %v1460
        %1462 = vmatprep.mubr.f32.mxu0 0.0
        %1463 = vmatmul.mubr.f32.gmra.mrb[0].mxu0 %v751
        %v1464 = vpop.f32.mrb[0].mxu0
        %v1465 = vadd.f32 %v473, %v1464
        %v1466 = vpop.f32.mrb[0].mxu0
        %v1467 = vadd.f32 %v477, %v1466
        %1468 = vmatprep.mubr.f32.mxu0 0.0
        %1469 = vmatmul.mubr.f32.gmra.mrb[0].mxu0 %v754
        %v1470 = vpop.f32.mrb[0].mxu0
        %v1471 = vadd.f32 %v473, %v1470
        %v1472 = vpop.f32.mrb[0].mxu0
        %v1473 = vadd.f32 %v477, %v1472
        %1474 = vmatprep.mubr.f32.mxu0 0.0
        %1475 = vmatmul.mubr.f32.gmra.mrb[0].mxu0 %v757
        %v1476 = vpop.f32.mrb[0].mxu0
        %v1477 = vadd.f32 %v473, %v1476
        %v1478 = vpop.f32.mrb[0].mxu0
        %v1479 = vadd.f32 %v477, %v1478
        %1480 = vmatprep.mubr.f32.mxu0 0.0
        %1481 = vmatmul.mubr.f32.gmra.mrb[0].mxu0 %v760
        %v1482 = vpop.f32.mrb[0].mxu0
        %v1483 = vadd.f32 %v473, %v1482
        %v1484 = vpop.f32.mrb[0].mxu0
        %v1485 = vadd.f32 %v477, %v1484
        %1486 = vmatprep.mubr.f32.mxu0 0.0
        %1487 = vmatmul.mubr.f32.gmra.mrb[0].mxu0 %v763
        %v1488 = vpop.f32.mrb[0].mxu0
        %v1489 = vadd.f32 %v473, %v1488
        %v1490 = vpop.f32.mrb[0].mxu0
        %v1491 = vadd.f32 %v477, %v1490
        %1492 = vmatprep.mubr.f32.mxu0 0.0
        %1493 = vmatmul.mubr.f32.gmra.mrb[0].mxu0 %v766
        %v1494 = vpop.f32.mrb[0].mxu0
        %v1495 = vadd.f32 %v473, %v1494
        %v1496 = vpop.f32.mrb[0].mxu0
        %v1497 = vadd.f32 %v477, %v1496
        %1498 = vmatprep.mubr.f32.mxu0 0.0
        %1499 = vmatmul.mubr.f32.gmra.mrb[0].mxu0 %v769
        %v1500 = vpop.f32.mrb[0].mxu0
        %v1501 = vadd.f32 %v473, %v1500
        %v1502 = vpop.f32.mrb[0].mxu0
        %v1503 = vadd.f32 %v477, %v1502
        %1504 = vmatprep.mubr.f32.mxu0 0.0
        %1505 = vmatmul.mubr.f32.gmra.mrb[0].mxu0 %v772
        %v1506 = vpop.f32.mrb[0].mxu0
        %v1507 = vadd.f32 %v473, %v1506
        %v1508 = vpop.f32.mrb[0].mxu0
        %v1509 = vadd.f32 %v477, %v1508
        %1510 = vmatprep.mubr.f32.mxu0 0.0
        %1511 = vmatmul.mubr.f32.gmra.mrb[0].mxu0 %v775
        %v1512 = vpop.f32.mrb[0].mxu0
        %v1513 = vadd.f32 %v473, %v1512
        %v1514 = vpop.f32.mrb[0].mxu0
        %v1515 = vadd.f32 %v477, %v1514
        %1516 = vmatprep.mubr.f32.mxu0 0.0
        %1517 = vmatmul.mubr.f32.gmra.mrb[0].mxu0 %v778
        %v1518 = vpop.f32.mrb[0].mxu0
        %v1519 = vadd.f32 %v473, %v1518
        %v1520 = vpop.f32.mrb[0].mxu0
        %v1521 = vadd.f32 %v477, %v1520
        %1522 = vmatprep.mubr.f32.mxu0 0.0
        %1523 = vmatmul.mubr.f32.gmra.mrb[0].mxu0 %v781
        %v1524 = vpop.f32.mrb[0].mxu0
        %v1525 = vadd.f32 %v473, %v1524
        %v1526 = vpop.f32.mrb[0].mxu0
        %v1527 = vadd.f32 %v477, %v1526
        %1528 = vmatprep.mubr.f32.mxu0 0.0
        %1529 = vmatmul.mubr.f32.gmra.mrb[0].mxu0 %v784
        %v1530 = vpop.f32.mrb[0].mxu0
        %v1531 = vadd.f32 %v473, %v1530
        %v1532 = vpop.f32.mrb[0].mxu0
        %v1533 = vadd.f32 %v477, %v1532
        %1534 = vmatprep.mubr.f32.mxu0 0.0
        %1535 = vmatmul.mubr.f32.gmra.mrb[0].mxu0 %v787
        %v1536 = vpop.f32.mrb[0].mxu0
        %v1537 = vadd.f32 %v473, %v1536
        %v1538 = vpop.f32.mrb[0].mxu0
        %v1539 = vadd.f32 %v477, %v1538
        %1540 = vmatprep.mubr.f32.mxu0 0.0
        %1541 = vmatmul.mubr.f32.gmra.mrb[0].mxu0 %v790
        %v1542 = vpop.f32.mrb[0].mxu0
        %v1543 = vadd.f32 %v473, %v1542
        %v1544 = vpop.f32.mrb[0].mxu0
        %v1545 = vadd.f32 %v477, %v1544
        %1546 = vmatprep.mubr.f32.mxu0 0.0
        %1547 = vmatmul.mubr.f32.gmra.mrb[0].mxu0 %v793
        %v1548 = vpop.f32.mrb[0].mxu0
        %v1549 = vadd.f32 %v473, %v1548
        %v1550 = vpop.f32.mrb[0].mxu0
        %v1551 = vadd.f32 %v477, %v1550
        %1552 = vmatprep.mubr.f32.mxu0 0.0
        %1553 = vmatmul.mubr.f32.gmra.mrb[0].mxu0 %v796
        %v1554 = vpop.f32.mrb[0].mxu0
        %v1555 = vadd.f32 %v473, %v1554
        %v1556 = vpop.f32.mrb[0].mxu0
        %v1557 = vadd.f32 %v477, %v1556
        %1558 = vmatprep.mubr.f32.mxu0 0.0
        %1559 = vmatmul.mubr.f32.gmra.mrb[0].mxu0 %v799
        %v1560 = vpop.f32.mrb[0].mxu0
        %v1561 = vadd.f32 %v473, %v1560
        %v1562 = vpop.f32.mrb[0].mxu0
        %v1563 = vadd.f32 %v477, %v1562
        %1564 = vmatprep.mubr.f32.mxu0 0.0
        %1565 = vmatmul.mubr.f32.gmra.mrb[0].mxu0 %v802
        %v1566 = vpop.f32.mrb[0].mxu0
        %v1567 = vadd.f32 %v473, %v1566
        %v1568 = vpop.f32.mrb[0].mxu0
        %v1569 = vadd.f32 %v477, %v1568
        %1570 = vmatprep.mubr.f32.mxu0 0.0
        %1571 = vmatmul.mubr.f32.gmra.mrb[0].mxu0 %v805
        %v1572 = vpop.f32.mrb[0].mxu0
        %v1573 = vadd.f32 %v473, %v1572
        %v1574 = vpop.f32.mrb[0].mxu0
        %v1575 = vadd.f32 %v477, %v1574
        %1576 = vmatprep.mubr.f32.mxu0 0.0
        %1577 = vmatmul.mubr.f32.gmra.mrb[0].mxu0 %v808
        %v1578 = vpop.f32.mrb[0].mxu0
        %v1579 = vadd.f32 %v473, %v1578
        %v1580 = vpop.f32.mrb[0].mxu0
        %v1581 = vadd.f32 %v477, %v1580
        %1582 = vmatprep.mubr.f32.mxu0 0.0
        %1583 = vmatmul.mubr.f32.gmra.mrb[0].mxu0 %v811
        %v1584 = vpop.f32.mrb[0].mxu0
        %v1585 = vadd.f32 %v473, %v1584
        %v1586 = vpop.f32.mrb[0].mxu0
        %v1587 = vadd.f32 %v477, %v1586
        %1588 = vmatprep.mubr.f32.mxu0 0.0
        %1589 = vmatmul.mubr.f32.gmra.mrb[0].mxu0 %v814
        %v1590 = vpop.f32.mrb[0].mxu0
        %v1591 = vadd.f32 %v473, %v1590
        %v1592 = vpop.f32.mrb[0].mxu0
        %v1593 = vadd.f32 %v477, %v1592
        %1594 = vmatprep.mubr.f32.mxu0 0.0
        %1595 = vmatmul.mubr.f32.gmra.mrb[0].mxu0 %v817
        %v1596 = vpop.f32.mrb[0].mxu0
        %v1597 = vadd.f32 %v473, %v1596
        %v1598 = vpop.f32.mrb[0].mxu0
        %v1599 = vadd.f32 %v477, %v1598
        %1600 = vmatprep.mubr.f32.mxu0 0.0
        %1601 = vmatmul.mubr.f32.gmra.mrb[0].mxu0 %v820
        %v1602 = vpop.f32.mrb[0].mxu0
        %v1603 = vadd.f32 %v473, %v1602
        %v1604 = vpop.f32.mrb[0].mxu0
        %v1605 = vadd.f32 %v477, %v1604
        %1606 = vmatprep.mubr.f32.mxu0 0.0
        %1607 = vmatmul.mubr.f32.gmra.mrb[0].mxu0 %v823
        %v1608 = vpop.f32.mrb[0].mxu0
        %v1609 = vadd.f32 %v473, %v1608
        %v1610 = vpop.f32.mrb[0].mxu0
        %v1611 = vadd.f32 %v477, %v1610
        %1612 = vmatprep.mubr.f32.mxu0 0.0
        %1613 = vmatmul.mubr.f32.gmra.mrb[0].mxu0 %v826
        %v1614 = vpop.f32.mrb[0].mxu0
        %v1615 = vadd.f32 %v473, %v1614
        %v1616 = vpop.f32.mrb[0].mxu0
        %v1617 = vadd.f32 %v477, %v1616
        %1618 = vmatprep.mubr.f32.mxu0 0.0
        %1619 = vmatmul.mubr.f32.gmra.mrb[0].mxu0 %v829
        %v1620 = vpop.f32.mrb[0].mxu0
        %v1621 = vadd.f32 %v473, %v1620
        %v1622 = vpop.f32.mrb[0].mxu0
        %v1623 = vadd.f32 %v477, %v1622
        %1624 = vmatprep.mubr.f32.mxu0 0.0
        %1625 = vmatmul.mubr.f32.gmra.mrb[0].mxu0 %v832
        %v1626 = vpop.f32.mrb[0].mxu0
        %v1627 = vadd.f32 %v473, %v1626
        %v1628 = vpop.f32.mrb[0].mxu0
        %v1629 = vadd.f32 %v477, %v1628
        %1630 = vmatprep.mubr.f32.mxu0 0.0
        %1631 = vmatmul.mubr.f32.gmra.mrb[0].mxu0 %v835
        %v1632 = vpop.f32.mrb[0].mxu0
        %v1633 = vadd.f32 %v473, %v1632
        %v1634 = vpop.f32.mrb[0].mxu0
        %v1635 = vadd.f32 %v477, %v1634
        %1636 = vmatprep.mubr.f32.mxu0 0.0
        %1637 = vmatmul.mubr.f32.gmra.mrb[0].mxu0 %v838
        %v1638 = vpop.f32.mrb[0].mxu0
        %v1639 = vadd.f32 %v473, %v1638
        %v1640 = vpop.f32.mrb[0].mxu0
        %v1641 = vadd.f32 %v477, %v1640
        %1642 = vmatprep.mubr.f32.mxu0 0.0
        %1643 = vmatmul.mubr.f32.gmra.mrb[0].mxu0 %v841
        %v1644 = vpop.f32.mrb[0].mxu0
        %v1645 = vadd.f32 %v473, %v1644
        %v1646 = vpop.f32.mrb[0].mxu0
        %v1647 = vadd.f32 %v477, %v1646
        %1648 = vmatprep.mubr.f32.mxu0 0.0
        %1649 = vmatmul.mubr.f32.gmra.mrb[0].mxu0 %v844
        %v1650 = vpop.f32.mrb[0].mxu0
        %v1651 = vadd.f32 %v473, %v1650
        %v1652 = vpop.f32.mrb[0].mxu0
        %v1653 = vadd.f32 %v477, %v1652
        %1654 = vmatprep.mubr.f32.mxu0 0.0
        %1655 = vmatmul.mubr.f32.gmra.mrb[0].mxu0 %v847
        %v1656 = vpop.f32.mrb[0].mxu0
        %v1657 = vadd.f32 %v473, %v1656
        %v1658 = vpop.f32.mrb[0].mxu0
        %v1659 = vadd.f32 %v477, %v1658
        %1660 = vmatprep.mubr.f32.mxu0 0.0
        %1661 = vmatmul.mubr.f32.gmra.mrb[0].mxu0 %v850
        %v1662 = vpop.f32.mrb[0].mxu0
        %v1663 = vadd.f32 %v473, %v1662
        %v1664 = vpop.f32.mrb[0].mxu0
        %v1665 = vadd.f32 %v477, %v1664
        %1666 = vmatprep.mubr.f32.mxu0 0.0
        %1667 = vmatmul.mubr.f32.gmra.mrb[0].mxu0 %v853
        %v1668 = vpop.f32.mrb[0].mxu0
        %v1669 = vadd.f32 %v473, %v1668
        %v1670 = vpop.f32.mrb[0].mxu0
        %v1671 = vadd.f32 %v477, %v1670
        %1672 = vmatprep.mubr.f32.mxu0 0.0
        %1673 = vmatmul.mubr.f32.gmra.mrb[0].mxu0 %v856
        %v1674 = vpop.f32.mrb[0].mxu0
        %v1675 = vadd.f32 %v473, %v1674
        %v1676 = vpop.f32.mrb[0].mxu0
        %v1677 = vadd.f32 %v477, %v1676
        %1678 = vmatprep.mubr.f32.mxu0 0.0
        %1679 = vmatmul.mubr.f32.gmra.mrb[0].mxu0 %v859
        %v1680 = vpop.f32.mrb[0].mxu0
        %v1681 = vadd.f32 %v473, %v1680
        %v1682 = vpop.f32.mrb[0].mxu0
        %v1683 = vadd.f32 %v477, %v1682
        %1684 = vmatprep.mubr.f32.mxu0 0.0
        %1685 = vmatmul.mubr.f32.gmra.mrb[0].mxu0 %v862
        %v1686 = vpop.f32.mrb[0].mxu0
        %v1687 = vadd.f32 %v473, %v1686
        %v1688 = vpop.f32.mrb[0].mxu0
        %v1689 = vadd.f32 %v477, %v1688
        %1690 = vmatprep.mubr.f32.mxu0 0.0
        %1691 = vmatmul.mubr.f32.gmra.mrb[0].mxu0 %v865
        %v1692 = vpop.f32.mrb[0].mxu0
        %v1693 = vadd.f32 %v473, %v1692
        %v1694 = vpop.f32.mrb[0].mxu0
        %v1695 = vadd.f32 %v477, %v1694
        %1696 = vmatprep.mubr.f32.mxu0 0.0
        %1697 = vmatmul.mubr.f32.gmra.mrb[0].mxu0 %v868
        %v1698 = vpop.f32.mrb[0].mxu0
        %v1699 = vadd.f32 %v473, %v1698
        %v1700 = vpop.f32.mrb[0].mxu0
        %v1701 = vadd.f32 %v477, %v1700
        %1702 = vdwg.mxu0
        %1703 = vmatprep.subr.mxu0 0.0
        %1704 = vmatpush1.msra.mxu0 %v461
        %1705 = vmatprep.subr.mxu0 0.0
        %1706 = vmatpush1.msra.mxu0 %v464
        %1707 = vmatprep.subr.mxu0 0.0
        %1708 = vmatpush1.msra.mxu0 %v467
        %1709 = vmatprep.subr.mxu0 0.0
        %1710 = vmatpush1.msra.mxu0 0.0
        %1711 = vmatprep.subr.mxu0 0.0
        %1712 = vmatpush1.msra.mxu0 0.0
        %1713 = vmatprep.subr.mxu0 0.0
        %1714 = vmatpush1.msra.mxu0 0.0
        %1715 = vmatprep.subr.mxu0 0.0
        %1716 = vmatpush1.msra.mxu0 0.0
        %1717 = vmatprep.subr.mxu0 0.0
        %1718 = vmatpush1.msra.mxu0 0.0
        %1719 = vmatprep.subr.mxu0 0.0
        %1720 = vmatpush1.msra.mxu0 0.0
        %1721 = vmatprep.subr.mxu0 0.0
        %1722 = vmatpush1.msra.mxu0 0.0
        %1723 = vmatprep.subr.mxu0 0.0
        %1724 = vmatpush1.msra.mxu0 0.0
        %1725 = vmatprep.subr.mxu0 0.0
        %1726 = vmatpush1.msra.mxu0 0.0
        %1727 = vmatprep.subr.mxu0 0.0
        %1728 = vmatpush1.msra.mxu0 0.0
        %1729 = vmatprep.subr.mxu0 0.0
        %1730 = vmatpush1.msra.mxu0 0.0
        %1731 = vmatprep.subr.mxu0 0.0
        %1732 = vmatpush1.msra.mxu0 0.0
        %1733 = vmatprep.subr.mxu0 0.0
        %1734 = vmatpush1.msra.mxu0 0.0
        %1735 = vmatprep.subr.mxu0 0.0
        %1736 = vmatpush1.msra.mxu0 0.0
        %1737 = vmatprep.subr.mxu0 0.0
        %1738 = vmatpush1.msra.mxu0 0.0
        %1739 = vmatprep.subr.mxu0 0.0
        %1740 = vmatpush1.msra.mxu0 0.0
        %1741 = vmatprep.subr.mxu0 0.0
        %1742 = vmatpush1.msra.mxu0 0.0
        %1743 = vmatprep.subr.mxu0 0.0
        %1744 = vmatpush1.msra.mxu0 0.0
        %1745 = vmatprep.subr.mxu0 0.0
        %1746 = vmatpush1.msra.mxu0 0.0
        %1747 = vmatprep.subr.mxu0 0.0
        %1748 = vmatpush1.msra.mxu0 0.0
        %1749 = vmatprep.subr.mxu0 0.0
        %1750 = vmatpush1.msra.mxu0 0.0
        %1751 = vmatprep.subr.mxu0 0.0
        %1752 = vmatpush1.msra.mxu0 0.0
        %1753 = vmatprep.subr.mxu0 0.0
        %1754 = vmatpush1.msra.mxu0 0.0
        %1755 = vmatprep.subr.mxu0 0.0
        %1756 = vmatpush1.msra.mxu0 0.0
        %1757 = vmatprep.subr.mxu0 0.0
        %1758 = vmatpush1.msra.mxu0 0.0
        %1759 = vmatprep.subr.mxu0 0.0
        %1760 = vmatpush1.msra.mxu0 0.0
        %1761 = vmatprep.subr.mxu0 0.0
        %1762 = vmatpush1.msra.mxu0 0.0
        %1763 = vmatprep.subr.mxu0 0.0
        %1764 = vmatpush1.msra.mxu0 0.0
        %1765 = vmatprep.subr.mxu0 0.0
        %1766 = vmatpush1.msra.mxu0 0.0
        %1767 = vmatprep.mubr.f32.mxu0 0.0
        %1768 = vmatmul.mubr.f32.gmra.mrb[0].mxu0 %v487
        %v1769 = vpop.f32.mrb[0].mxu0
        %v1770 = vadd.f32 %v481, %v1769
        %v1771 = vpop.f32.mrb[0].mxu0
        %1772 = vmatprep.mubr.f32.mxu0 0.0
        %1773 = vmatmul.mubr.f32.gmra.mrb[0].mxu0 %v490
        %v1774 = vpop.f32.mrb[0].mxu0
        %v1775 = vadd.f32 %v481, %v1774
        %v1776 = vpop.f32.mrb[0].mxu0
        %1777 = vmatprep.mubr.f32.mxu0 0.0
        %1778 = vmatmul.mubr.f32.gmra.mrb[0].mxu0 %v493
        %v1779 = vpop.f32.mrb[0].mxu0
        %v1780 = vadd.f32 %v481, %v1779
        %v1781 = vpop.f32.mrb[0].mxu0
        %1782 = vmatprep.mubr.f32.mxu0 0.0
        %1783 = vmatmul.mubr.f32.gmra.mrb[0].mxu0 %v496
        %v1784 = vpop.f32.mrb[0].mxu0
        %v1785 = vadd.f32 %v481, %v1784
        %v1786 = vpop.f32.mrb[0].mxu0
        %1787 = vmatprep.mubr.f32.mxu0 0.0
        %1788 = vmatmul.mubr.f32.gmra.mrb[0].mxu0 %v499
        %v1789 = vpop.f32.mrb[0].mxu0
        %v1790 = vadd.f32 %v481, %v1789
        %v1791 = vpop.f32.mrb[0].mxu0
        %1792 = vmatprep.mubr.f32.mxu0 0.0
        %1793 = vmatmul.mubr.f32.gmra.mrb[0].mxu0 %v502
        %v1794 = vpop.f32.mrb[0].mxu0
        %v1795 = vadd.f32 %v481, %v1794
        %v1796 = vpop.f32.mrb[0].mxu0
        %1797 = vmatprep.mubr.f32.mxu0 0.0
        %1798 = vmatmul.mubr.f32.gmra.mrb[0].mxu0 %v505
        %v1799 = vpop.f32.mrb[0].mxu0
        %v1800 = vadd.f32 %v481, %v1799
        %v1801 = vpop.f32.mrb[0].mxu0
        %1802 = vmatprep.mubr.f32.mxu0 0.0
        %1803 = vmatmul.mubr.f32.gmra.mrb[0].mxu0 %v508
        %v1804 = vpop.f32.mrb[0].mxu0
        %v1805 = vadd.f32 %v481, %v1804
        %v1806 = vpop.f32.mrb[0].mxu0
        %1807 = vmatprep.mubr.f32.mxu0 0.0
        %1808 = vmatmul.mubr.f32.gmra.mrb[0].mxu0 %v511
        %v1809 = vpop.f32.mrb[0].mxu0
        %v1810 = vadd.f32 %v481, %v1809
        %v1811 = vpop.f32.mrb[0].mxu0
        %1812 = vmatprep.mubr.f32.mxu0 0.0
        %1813 = vmatmul.mubr.f32.gmra.mrb[0].mxu0 %v514
        %v1814 = vpop.f32.mrb[0].mxu0
        %v1815 = vadd.f32 %v481, %v1814
        %v1816 = vpop.f32.mrb[0].mxu0
        %1817 = vmatprep.mubr.f32.mxu0 0.0
        %1818 = vmatmul.mubr.f32.gmra.mrb[0].mxu0 %v517
        %v1819 = vpop.f32.mrb[0].mxu0
        %v1820 = vadd.f32 %v481, %v1819
        %v1821 = vpop.f32.mrb[0].mxu0
        %1822 = vmatprep.mubr.f32.mxu0 0.0
        %1823 = vmatmul.mubr.f32.gmra.mrb[0].mxu0 %v520
        %v1824 = vpop.f32.mrb[0].mxu0
        %v1825 = vadd.f32 %v481, %v1824
        %v1826 = vpop.f32.mrb[0].mxu0
        %1827 = vmatprep.mubr.f32.mxu0 0.0
        %1828 = vmatmul.mubr.f32.gmra.mrb[0].mxu0 %v523
        %v1829 = vpop.f32.mrb[0].mxu0
        %v1830 = vadd.f32 %v481, %v1829
        %v1831 = vpop.f32.mrb[0].mxu0
        %1832 = vmatprep.mubr.f32.mxu0 0.0
        %1833 = vmatmul.mubr.f32.gmra.mrb[0].mxu0 %v526
        %v1834 = vpop.f32.mrb[0].mxu0
        %v1835 = vadd.f32 %v481, %v1834
        %v1836 = vpop.f32.mrb[0].mxu0
        %1837 = vmatprep.mubr.f32.mxu0 0.0
        %1838 = vmatmul.mubr.f32.gmra.mrb[0].mxu0 %v529
        %v1839 = vpop.f32.mrb[0].mxu0
        %v1840 = vadd.f32 %v481, %v1839
        %v1841 = vpop.f32.mrb[0].mxu0
        %1842 = vmatprep.mubr.f32.mxu0 0.0
        %1843 = vmatmul.mubr.f32.gmra.mrb[0].mxu0 %v532
        %v1844 = vpop.f32.mrb[0].mxu0
        %v1845 = vadd.f32 %v481, %v1844
        %v1846 = vpop.f32.mrb[0].mxu0
        %1847 = vmatprep.mubr.f32.mxu0 0.0
        %1848 = vmatmul.mubr.f32.gmra.mrb[0].mxu0 %v535
        %v1849 = vpop.f32.mrb[0].mxu0
        %v1850 = vadd.f32 %v481, %v1849
        %v1851 = vpop.f32.mrb[0].mxu0
        %1852 = vmatprep.mubr.f32.mxu0 0.0
        %1853 = vmatmul.mubr.f32.gmra.mrb[0].mxu0 %v538
        %v1854 = vpop.f32.mrb[0].mxu0
        %v1855 = vadd.f32 %v481, %v1854
        %v1856 = vpop.f32.mrb[0].mxu0
        %1857 = vmatprep.mubr.f32.mxu0 0.0
        %1858 = vmatmul.mubr.f32.gmra.mrb[0].mxu0 %v541
        %v1859 = vpop.f32.mrb[0].mxu0
        %v1860 = vadd.f32 %v481, %v1859
        %v1861 = vpop.f32.mrb[0].mxu0
        %1862 = vmatprep.mubr.f32.mxu0 0.0
        %1863 = vmatmul.mubr.f32.gmra.mrb[0].mxu0 %v544
        %v1864 = vpop.f32.mrb[0].mxu0
        %v1865 = vadd.f32 %v481, %v1864
        %v1866 = vpop.f32.mrb[0].mxu0
        %1867 = vmatprep.mubr.f32.mxu0 0.0
        %1868 = vmatmul.mubr.f32.gmra.mrb[0].mxu0 %v547
        %v1869 = vpop.f32.mrb[0].mxu0
        %v1870 = vadd.f32 %v481, %v1869
        %v1871 = vpop.f32.mrb[0].mxu0
        %1872 = vmatprep.mubr.f32.mxu0 0.0
        %1873 = vmatmul.mubr.f32.gmra.mrb[0].mxu0 %v550
        %v1874 = vpop.f32.mrb[0].mxu0
        %v1875 = vadd.f32 %v481, %v1874
        %v1876 = vpop.f32.mrb[0].mxu0
        %1877 = vmatprep.mubr.f32.mxu0 0.0
        %1878 = vmatmul.mubr.f32.gmra.mrb[0].mxu0 %v553
        %v1879 = vpop.f32.mrb[0].mxu0
        %v1880 = vadd.f32 %v481, %v1879
        %v1881 = vpop.f32.mrb[0].mxu0
        %1882 = vmatprep.mubr.f32.mxu0 0.0
        %1883 = vmatmul.mubr.f32.gmra.mrb[0].mxu0 %v556
        %v1884 = vpop.f32.mrb[0].mxu0
        %v1885 = vadd.f32 %v481, %v1884
        %v1886 = vpop.f32.mrb[0].mxu0
        %1887 = vmatprep.mubr.f32.mxu0 0.0
        %1888 = vmatmul.mubr.f32.gmra.mrb[0].mxu0 %v559
        %v1889 = vpop.f32.mrb[0].mxu0
        %v1890 = vadd.f32 %v481, %v1889
        %v1891 = vpop.f32.mrb[0].mxu0
        %1892 = vmatprep.mubr.f32.mxu0 0.0
        %1893 = vmatmul.mubr.f32.gmra.mrb[0].mxu0 %v562
        %v1894 = vpop.f32.mrb[0].mxu0
        %v1895 = vadd.f32 %v481, %v1894
        %v1896 = vpop.f32.mrb[0].mxu0
        %1897 = vmatprep.mubr.f32.mxu0 0.0
        %1898 = vmatmul.mubr.f32.gmra.mrb[0].mxu0 %v565
        %v1899 = vpop.f32.mrb[0].mxu0
        %v1900 = vadd.f32 %v481, %v1899
        %v1901 = vpop.f32.mrb[0].mxu0
        %1902 = vmatprep.mubr.f32.mxu0 0.0
        %1903 = vmatmul.mubr.f32.gmra.mrb[0].mxu0 %v568
        %v1904 = vpop.f32.mrb[0].mxu0
        %v1905 = vadd.f32 %v481, %v1904
        %v1906 = vpop.f32.mrb[0].mxu0
        %1907 = vmatprep.mubr.f32.mxu0 0.0
        %1908 = vmatmul.mubr.f32.gmra.mrb[0].mxu0 %v571
        %v1909 = vpop.f32.mrb[0].mxu0
        %v1910 = vadd.f32 %v481, %v1909
        %v1911 = vpop.f32.mrb[0].mxu0
        %1912 = vmatprep.mubr.f32.mxu0 0.0
        %1913 = vmatmul.mubr.f32.gmra.mrb[0].mxu0 %v574
        %v1914 = vpop.f32.mrb[0].mxu0
        %v1915 = vadd.f32 %v481, %v1914
        %v1916 = vpop.f32.mrb[0].mxu0
        %1917 = vmatprep.mubr.f32.mxu0 0.0
        %1918 = vmatmul.mubr.f32.gmra.mrb[0].mxu0 %v577
        %v1919 = vpop.f32.mrb[0].mxu0
        %v1920 = vadd.f32 %v481, %v1919
        %v1921 = vpop.f32.mrb[0].mxu0
        %1922 = vmatprep.mubr.f32.mxu0 0.0
        %1923 = vmatmul.mubr.f32.gmra.mrb[0].mxu0 %v580
        %v1924 = vpop.f32.mrb[0].mxu0
        %v1925 = vadd.f32 %v481, %v1924
        %v1926 = vpop.f32.mrb[0].mxu0
        %1927 = vmatprep.mubr.f32.mxu0 0.0
        %1928 = vmatmul.mubr.f32.gmra.mrb[0].mxu0 %v583
        %v1929 = vpop.f32.mrb[0].mxu0
        %v1930 = vadd.f32 %v481, %v1929
        %v1931 = vpop.f32.mrb[0].mxu0
        %1932 = vmatprep.mubr.f32.mxu0 0.0
        %1933 = vmatmul.mubr.f32.gmra.mrb[0].mxu0 %v586
        %v1934 = vpop.f32.mrb[0].mxu0
        %v1935 = vadd.f32 %v481, %v1934
        %v1936 = vpop.f32.mrb[0].mxu0
        %1937 = vmatprep.mubr.f32.mxu0 0.0
        %1938 = vmatmul.mubr.f32.gmra.mrb[0].mxu0 %v589
        %v1939 = vpop.f32.mrb[0].mxu0
        %v1940 = vadd.f32 %v481, %v1939
        %v1941 = vpop.f32.mrb[0].mxu0
        %1942 = vmatprep.mubr.f32.mxu0 0.0
        %1943 = vmatmul.mubr.f32.gmra.mrb[0].mxu0 %v592
        %v1944 = vpop.f32.mrb[0].mxu0
        %v1945 = vadd.f32 %v481, %v1944
        %v1946 = vpop.f32.mrb[0].mxu0
        %1947 = vmatprep.mubr.f32.mxu0 0.0
        %1948 = vmatmul.mubr.f32.gmra.mrb[0].mxu0 %v595
        %v1949 = vpop.f32.mrb[0].mxu0
        %v1950 = vadd.f32 %v481, %v1949
        %v1951 = vpop.f32.mrb[0].mxu0
        %1952 = vmatprep.mubr.f32.mxu0 0.0
        %1953 = vmatmul.mubr.f32.gmra.mrb[0].mxu0 %v598
        %v1954 = vpop.f32.mrb[0].mxu0
        %v1955 = vadd.f32 %v481, %v1954
        %v1956 = vpop.f32.mrb[0].mxu0
        %1957 = vmatprep.mubr.f32.mxu0 0.0
        %1958 = vmatmul.mubr.f32.gmra.mrb[0].mxu0 %v601
        %v1959 = vpop.f32.mrb[0].mxu0
        %v1960 = vadd.f32 %v481, %v1959
        %v1961 = vpop.f32.mrb[0].mxu0
        %1962 = vmatprep.mubr.f32.mxu0 0.0
        %1963 = vmatmul.mubr.f32.gmra.mrb[0].mxu0 %v604
        %v1964 = vpop.f32.mrb[0].mxu0
        %v1965 = vadd.f32 %v481, %v1964
        %v1966 = vpop.f32.mrb[0].mxu0
        %1967 = vmatprep.mubr.f32.mxu0 0.0
        %1968 = vmatmul.mubr.f32.gmra.mrb[0].mxu0 %v607
        %v1969 = vpop.f32.mrb[0].mxu0
        %v1970 = vadd.f32 %v481, %v1969
        %v1971 = vpop.f32.mrb[0].mxu0
        %1972 = vmatprep.mubr.f32.mxu0 0.0
        %1973 = vmatmul.mubr.f32.gmra.mrb[0].mxu0 %v610
        %v1974 = vpop.f32.mrb[0].mxu0
        %v1975 = vadd.f32 %v481, %v1974
        %v1976 = vpop.f32.mrb[0].mxu0
        %1977 = vmatprep.mubr.f32.mxu0 0.0
        %1978 = vmatmul.mubr.f32.gmra.mrb[0].mxu0 %v613
        %v1979 = vpop.f32.mrb[0].mxu0
        %v1980 = vadd.f32 %v481, %v1979
        %v1981 = vpop.f32.mrb[0].mxu0
        %1982 = vmatprep.mubr.f32.mxu0 0.0
        %1983 = vmatmul.mubr.f32.gmra.mrb[0].mxu0 %v616
        %v1984 = vpop.f32.mrb[0].mxu0
        %v1985 = vadd.f32 %v481, %v1984
        %v1986 = vpop.f32.mrb[0].mxu0
        %1987 = vmatprep.mubr.f32.mxu0 0.0
        %1988 = vmatmul.mubr.f32.gmra.mrb[0].mxu0 %v619
        %v1989 = vpop.f32.mrb[0].mxu0
        %v1990 = vadd.f32 %v481, %v1989
        %v1991 = vpop.f32.mrb[0].mxu0
        %1992 = vmatprep.mubr.f32.mxu0 0.0
        %1993 = vmatmul.mubr.f32.gmra.mrb[0].mxu0 %v622
        %v1994 = vpop.f32.mrb[0].mxu0
        %v1995 = vadd.f32 %v481, %v1994
        %v1996 = vpop.f32.mrb[0].mxu0
        %1997 = vmatprep.mubr.f32.mxu0 0.0
        %1998 = vmatmul.mubr.f32.gmra.mrb[0].mxu0 %v625
        %v1999 = vpop.f32.mrb[0].mxu0
        %v2000 = vadd.f32 %v481, %v1999
        %v2001 = vpop.f32.mrb[0].mxu0
        %2002 = vmatprep.mubr.f32.mxu0 0.0
        %2003 = vmatmul.mubr.f32.gmra.mrb[0].mxu0 %v628
        %v2004 = vpop.f32.mrb[0].mxu0
        %v2005 = vadd.f32 %v481, %v2004
        %v2006 = vpop.f32.mrb[0].mxu0
        %2007 = vmatprep.mubr.f32.mxu0 0.0
        %2008 = vmatmul.mubr.f32.gmra.mrb[0].mxu0 %v631
        %v2009 = vpop.f32.mrb[0].mxu0
        %v2010 = vadd.f32 %v481, %v2009
        %v2011 = vpop.f32.mrb[0].mxu0
        %2012 = vmatprep.mubr.f32.mxu0 0.0
        %2013 = vmatmul.mubr.f32.gmra.mrb[0].mxu0 %v634
        %v2014 = vpop.f32.mrb[0].mxu0
        %v2015 = vadd.f32 %v481, %v2014
        %v2016 = vpop.f32.mrb[0].mxu0
        %2017 = vmatprep.mubr.f32.mxu0 0.0
        %2018 = vmatmul.mubr.f32.gmra.mrb[0].mxu0 %v637
        %v2019 = vpop.f32.mrb[0].mxu0
        %v2020 = vadd.f32 %v481, %v2019
        %v2021 = vpop.f32.mrb[0].mxu0
        %2022 = vmatprep.mubr.f32.mxu0 0.0
        %2023 = vmatmul.mubr.f32.gmra.mrb[0].mxu0 %v640
        %v2024 = vpop.f32.mrb[0].mxu0
        %v2025 = vadd.f32 %v481, %v2024
        %v2026 = vpop.f32.mrb[0].mxu0
        %2027 = vmatprep.mubr.f32.mxu0 0.0
        %2028 = vmatmul.mubr.f32.gmra.mrb[0].mxu0 %v643
        %v2029 = vpop.f32.mrb[0].mxu0
        %v2030 = vadd.f32 %v481, %v2029
        %v2031 = vpop.f32.mrb[0].mxu0
        %2032 = vmatprep.mubr.f32.mxu0 0.0
        %2033 = vmatmul.mubr.f32.gmra.mrb[0].mxu0 %v646
        %v2034 = vpop.f32.mrb[0].mxu0
        %v2035 = vadd.f32 %v481, %v2034
        %v2036 = vpop.f32.mrb[0].mxu0
        %2037 = vmatprep.mubr.f32.mxu0 0.0
        %2038 = vmatmul.mubr.f32.gmra.mrb[0].mxu0 %v649
        %v2039 = vpop.f32.mrb[0].mxu0
        %v2040 = vadd.f32 %v481, %v2039
        %v2041 = vpop.f32.mrb[0].mxu0
        %2042 = vmatprep.mubr.f32.mxu0 0.0
        %2043 = vmatmul.mubr.f32.gmra.mrb[0].mxu0 %v652
        %v2044 = vpop.f32.mrb[0].mxu0
        %v2045 = vadd.f32 %v481, %v2044
        %v2046 = vpop.f32.mrb[0].mxu0
        %2047 = vmatprep.mubr.f32.mxu0 0.0
        %2048 = vmatmul.mubr.f32.gmra.mrb[0].mxu0 %v655
        %v2049 = vpop.f32.mrb[0].mxu0
        %v2050 = vadd.f32 %v481, %v2049
        %v2051 = vpop.f32.mrb[0].mxu0
        %2052 = vmatprep.mubr.f32.mxu0 0.0
        %2053 = vmatmul.mubr.f32.gmra.mrb[0].mxu0 %v658
        %v2054 = vpop.f32.mrb[0].mxu0
        %v2055 = vadd.f32 %v481, %v2054
        %v2056 = vpop.f32.mrb[0].mxu0
        %2057 = vmatprep.mubr.f32.mxu0 0.0
        %2058 = vmatmul.mubr.f32.gmra.mrb[0].mxu0 %v661
        %v2059 = vpop.f32.mrb[0].mxu0
        %v2060 = vadd.f32 %v481, %v2059
        %v2061 = vpop.f32.mrb[0].mxu0
        %2062 = vmatprep.mubr.f32.mxu0 0.0
        %2063 = vmatmul.mubr.f32.gmra.mrb[0].mxu0 %v664
        %v2064 = vpop.f32.mrb[0].mxu0
        %v2065 = vadd.f32 %v481, %v2064
        %v2066 = vpop.f32.mrb[0].mxu0
        %2067 = vmatprep.mubr.f32.mxu0 0.0
        %2068 = vmatmul.mubr.f32.gmra.mrb[0].mxu0 %v667
        %v2069 = vpop.f32.mrb[0].mxu0
        %v2070 = vadd.f32 %v481, %v2069
        %v2071 = vpop.f32.mrb[0].mxu0
        %2072 = vmatprep.mubr.f32.mxu0 0.0
        %2073 = vmatmul.mubr.f32.gmra.mrb[0].mxu0 %v670
        %v2074 = vpop.f32.mrb[0].mxu0
        %v2075 = vadd.f32 %v481, %v2074
        %v2076 = vpop.f32.mrb[0].mxu0
        %2077 = vmatprep.mubr.f32.mxu0 0.0
        %2078 = vmatmul.mubr.f32.gmra.mrb[0].mxu0 %v673
        %v2079 = vpop.f32.mrb[0].mxu0
        %v2080 = vadd.f32 %v481, %v2079
        %v2081 = vpop.f32.mrb[0].mxu0
        %2082 = vmatprep.mubr.f32.mxu0 0.0
        %2083 = vmatmul.mubr.f32.gmra.mrb[0].mxu0 %v676
        %v2084 = vpop.f32.mrb[0].mxu0
        %v2085 = vadd.f32 %v481, %v2084
        %v2086 = vpop.f32.mrb[0].mxu0
        %2087 = vmatprep.mubr.f32.mxu0 0.0
        %2088 = vmatmul.mubr.f32.gmra.mrb[0].mxu0 %v679
        %v2089 = vpop.f32.mrb[0].mxu0
        %v2090 = vadd.f32 %v481, %v2089
        %v2091 = vpop.f32.mrb[0].mxu0
        %2092 = vmatprep.mubr.f32.mxu0 0.0
        %2093 = vmatmul.mubr.f32.gmra.mrb[0].mxu0 %v682
        %v2094 = vpop.f32.mrb[0].mxu0
        %v2095 = vadd.f32 %v481, %v2094
        %v2096 = vpop.f32.mrb[0].mxu0
        %2097 = vmatprep.mubr.f32.mxu0 0.0
        %2098 = vmatmul.mubr.f32.gmra.mrb[0].mxu0 %v685
        %v2099 = vpop.f32.mrb[0].mxu0
        %v2100 = vadd.f32 %v481, %v2099
        %v2101 = vpop.f32.mrb[0].mxu0
        %2102 = vmatprep.mubr.f32.mxu0 0.0
        %2103 = vmatmul.mubr.f32.gmra.mrb[0].mxu0 %v688
        %v2104 = vpop.f32.mrb[0].mxu0
        %v2105 = vadd.f32 %v481, %v2104
        %v2106 = vpop.f32.mrb[0].mxu0
        %2107 = vmatprep.mubr.f32.mxu0 0.0
        %2108 = vmatmul.mubr.f32.gmra.mrb[0].mxu0 %v691
        %v2109 = vpop.f32.mrb[0].mxu0
        %v2110 = vadd.f32 %v481, %v2109
        %v2111 = vpop.f32.mrb[0].mxu0
        %2112 = vmatprep.mubr.f32.mxu0 0.0
        %2113 = vmatmul.mubr.f32.gmra.mrb[0].mxu0 %v694
        %v2114 = vpop.f32.mrb[0].mxu0
        %v2115 = vadd.f32 %v481, %v2114
        %v2116 = vpop.f32.mrb[0].mxu0
        %2117 = vmatprep.mubr.f32.mxu0 0.0
        %2118 = vmatmul.mubr.f32.gmra.mrb[0].mxu0 %v697
        %v2119 = vpop.f32.mrb[0].mxu0
        %v2120 = vadd.f32 %v481, %v2119
        %v2121 = vpop.f32.mrb[0].mxu0
        %2122 = vmatprep.mubr.f32.mxu0 0.0
        %2123 = vmatmul.mubr.f32.gmra.mrb[0].mxu0 %v700
        %v2124 = vpop.f32.mrb[0].mxu0
        %v2125 = vadd.f32 %v481, %v2124
        %v2126 = vpop.f32.mrb[0].mxu0
        %2127 = vmatprep.mubr.f32.mxu0 0.0
        %2128 = vmatmul.mubr.f32.gmra.mrb[0].mxu0 %v703
        %v2129 = vpop.f32.mrb[0].mxu0
        %v2130 = vadd.f32 %v481, %v2129
        %v2131 = vpop.f32.mrb[0].mxu0
        %2132 = vmatprep.mubr.f32.mxu0 0.0
        %2133 = vmatmul.mubr.f32.gmra.mrb[0].mxu0 %v706
        %v2134 = vpop.f32.mrb[0].mxu0
        %v2135 = vadd.f32 %v481, %v2134
        %v2136 = vpop.f32.mrb[0].mxu0
        %2137 = vmatprep.mubr.f32.mxu0 0.0
        %2138 = vmatmul.mubr.f32.gmra.mrb[0].mxu0 %v709
        %v2139 = vpop.f32.mrb[0].mxu0
        %v2140 = vadd.f32 %v481, %v2139
        %v2141 = vpop.f32.mrb[0].mxu0
        %2142 = vmatprep.mubr.f32.mxu0 0.0
        %2143 = vmatmul.mubr.f32.gmra.mrb[0].mxu0 %v712
        %v2144 = vpop.f32.mrb[0].mxu0
        %v2145 = vadd.f32 %v481, %v2144
        %v2146 = vpop.f32.mrb[0].mxu0
        %2147 = vmatprep.mubr.f32.mxu0 0.0
        %2148 = vmatmul.mubr.f32.gmra.mrb[0].mxu0 %v715
        %v2149 = vpop.f32.mrb[0].mxu0
        %v2150 = vadd.f32 %v481, %v2149
        %v2151 = vpop.f32.mrb[0].mxu0
        %2152 = vmatprep.mubr.f32.mxu0 0.0
        %2153 = vmatmul.mubr.f32.gmra.mrb[0].mxu0 %v718
        %v2154 = vpop.f32.mrb[0].mxu0
        %v2155 = vadd.f32 %v481, %v2154
        %v2156 = vpop.f32.mrb[0].mxu0
        %2157 = vmatprep.mubr.f32.mxu0 0.0
        %2158 = vmatmul.mubr.f32.gmra.mrb[0].mxu0 %v721
        %v2159 = vpop.f32.mrb[0].mxu0
        %v2160 = vadd.f32 %v481, %v2159
        %v2161 = vpop.f32.mrb[0].mxu0
        %2162 = vmatprep.mubr.f32.mxu0 0.0
        %2163 = vmatmul.mubr.f32.gmra.mrb[0].mxu0 %v724
        %v2164 = vpop.f32.mrb[0].mxu0
        %v2165 = vadd.f32 %v481, %v2164
        %v2166 = vpop.f32.mrb[0].mxu0
        %2167 = vmatprep.mubr.f32.mxu0 0.0
        %2168 = vmatmul.mubr.f32.gmra.mrb[0].mxu0 %v727
        %v2169 = vpop.f32.mrb[0].mxu0
        %v2170 = vadd.f32 %v481, %v2169
        %v2171 = vpop.f32.mrb[0].mxu0
        %2172 = vmatprep.mubr.f32.mxu0 0.0
        %2173 = vmatmul.mubr.f32.gmra.mrb[0].mxu0 %v730
        %v2174 = vpop.f32.mrb[0].mxu0
        %v2175 = vadd.f32 %v481, %v2174
        %v2176 = vpop.f32.mrb[0].mxu0
        %2177 = vmatprep.mubr.f32.mxu0 0.0
        %2178 = vmatmul.mubr.f32.gmra.mrb[0].mxu0 %v733
        %v2179 = vpop.f32.mrb[0].mxu0
        %v2180 = vadd.f32 %v481, %v2179
        %v2181 = vpop.f32.mrb[0].mxu0
        %2182 = vmatprep.mubr.f32.mxu0 0.0
        %2183 = vmatmul.mubr.f32.gmra.mrb[0].mxu0 %v736
        %v2184 = vpop.f32.mrb[0].mxu0
        %v2185 = vadd.f32 %v481, %v2184
        %v2186 = vpop.f32.mrb[0].mxu0
        %2187 = vmatprep.mubr.f32.mxu0 0.0
        %2188 = vmatmul.mubr.f32.gmra.mrb[0].mxu0 %v739
        %v2189 = vpop.f32.mrb[0].mxu0
        %v2190 = vadd.f32 %v481, %v2189
        %v2191 = vpop.f32.mrb[0].mxu0
        %2192 = vmatprep.mubr.f32.mxu0 0.0
        %2193 = vmatmul.mubr.f32.gmra.mrb[0].mxu0 %v742
        %v2194 = vpop.f32.mrb[0].mxu0
        %v2195 = vadd.f32 %v481, %v2194
        %v2196 = vpop.f32.mrb[0].mxu0
        %2197 = vmatprep.mubr.f32.mxu0 0.0
        %2198 = vmatmul.mubr.f32.gmra.mrb[0].mxu0 %v745
        %v2199 = vpop.f32.mrb[0].mxu0
        %v2200 = vadd.f32 %v481, %v2199
        %v2201 = vpop.f32.mrb[0].mxu0
        %2202 = vmatprep.mubr.f32.mxu0 0.0
        %2203 = vmatmul.mubr.f32.gmra.mrb[0].mxu0 %v748
        %v2204 = vpop.f32.mrb[0].mxu0
        %v2205 = vadd.f32 %v481, %v2204
        %v2206 = vpop.f32.mrb[0].mxu0
        %2207 = vmatprep.mubr.f32.mxu0 0.0
        %2208 = vmatmul.mubr.f32.gmra.mrb[0].mxu0 %v751
        %v2209 = vpop.f32.mrb[0].mxu0
        %v2210 = vadd.f32 %v481, %v2209
        %v2211 = vpop.f32.mrb[0].mxu0
        %2212 = vmatprep.mubr.f32.mxu0 0.0
        %2213 = vmatmul.mubr.f32.gmra.mrb[0].mxu0 %v754
        %v2214 = vpop.f32.mrb[0].mxu0
        %v2215 = vadd.f32 %v481, %v2214
        %v2216 = vpop.f32.mrb[0].mxu0
        %2217 = vmatprep.mubr.f32.mxu0 0.0
        %2218 = vmatmul.mubr.f32.gmra.mrb[0].mxu0 %v757
        %v2219 = vpop.f32.mrb[0].mxu0
        %v2220 = vadd.f32 %v481, %v2219
        %v2221 = vpop.f32.mrb[0].mxu0
        %2222 = vmatprep.mubr.f32.mxu0 0.0
        %2223 = vmatmul.mubr.f32.gmra.mrb[0].mxu0 %v760
        %v2224 = vpop.f32.mrb[0].mxu0
        %v2225 = vadd.f32 %v481, %v2224
        %v2226 = vpop.f32.mrb[0].mxu0
        %2227 = vmatprep.mubr.f32.mxu0 0.0
        %2228 = vmatmul.mubr.f32.gmra.mrb[0].mxu0 %v763
        %v2229 = vpop.f32.mrb[0].mxu0
        %v2230 = vadd.f32 %v481, %v2229
        %v2231 = vpop.f32.mrb[0].mxu0
        %2232 = vmatprep.mubr.f32.mxu0 0.0
        %2233 = vmatmul.mubr.f32.gmra.mrb[0].mxu0 %v766
        %v2234 = vpop.f32.mrb[0].mxu0
        %v2235 = vadd.f32 %v481, %v2234
        %v2236 = vpop.f32.mrb[0].mxu0
        %2237 = vmatprep.mubr.f32.mxu0 0.0
        %2238 = vmatmul.mubr.f32.gmra.mrb[0].mxu0 %v769
        %v2239 = vpop.f32.mrb[0].mxu0
        %v2240 = vadd.f32 %v481, %v2239
        %v2241 = vpop.f32.mrb[0].mxu0
        %2242 = vmatprep.mubr.f32.mxu0 0.0
        %2243 = vmatmul.mubr.f32.gmra.mrb[0].mxu0 %v772
        %v2244 = vpop.f32.mrb[0].mxu0
        %v2245 = vadd.f32 %v481, %v2244
        %v2246 = vpop.f32.mrb[0].mxu0
        %2247 = vmatprep.mubr.f32.mxu0 0.0
        %2248 = vmatmul.mubr.f32.gmra.mrb[0].mxu0 %v775
        %v2249 = vpop.f32.mrb[0].mxu0
        %v2250 = vadd.f32 %v481, %v2249
        %v2251 = vpop.f32.mrb[0].mxu0
        %2252 = vmatprep.mubr.f32.mxu0 0.0
        %2253 = vmatmul.mubr.f32.gmra.mrb[0].mxu0 %v778
        %v2254 = vpop.f32.mrb[0].mxu0
        %v2255 = vadd.f32 %v481, %v2254
        %v2256 = vpop.f32.mrb[0].mxu0
        %2257 = vmatprep.mubr.f32.mxu0 0.0
        %2258 = vmatmul.mubr.f32.gmra.mrb[0].mxu0 %v781
        %v2259 = vpop.f32.mrb[0].mxu0
        %v2260 = vadd.f32 %v481, %v2259
        %v2261 = vpop.f32.mrb[0].mxu0
        %2262 = vmatprep.mubr.f32.mxu0 0.0
        %2263 = vmatmul.mubr.f32.gmra.mrb[0].mxu0 %v784
        %v2264 = vpop.f32.mrb[0].mxu0
        %v2265 = vadd.f32 %v481, %v2264
        %v2266 = vpop.f32.mrb[0].mxu0
        %2267 = vmatprep.mubr.f32.mxu0 0.0
        %2268 = vmatmul.mubr.f32.gmra.mrb[0].mxu0 %v787
        %v2269 = vpop.f32.mrb[0].mxu0
        %v2270 = vadd.f32 %v481, %v2269
        %v2271 = vpop.f32.mrb[0].mxu0
        %2272 = vmatprep.mubr.f32.mxu0 0.0
        %2273 = vmatmul.mubr.f32.gmra.mrb[0].mxu0 %v790
        %v2274 = vpop.f32.mrb[0].mxu0
        %v2275 = vadd.f32 %v481, %v2274
        %v2276 = vpop.f32.mrb[0].mxu0
        %2277 = vmatprep.mubr.f32.mxu0 0.0
        %2278 = vmatmul.mubr.f32.gmra.mrb[0].mxu0 %v793
        %v2279 = vpop.f32.mrb[0].mxu0
        %v2280 = vadd.f32 %v481, %v2279
        %v2281 = vpop.f32.mrb[0].mxu0
        %2282 = vmatprep.mubr.f32.mxu0 0.0
        %2283 = vmatmul.mubr.f32.gmra.mrb[0].mxu0 %v796
        %v2284 = vpop.f32.mrb[0].mxu0
        %v2285 = vadd.f32 %v481, %v2284
        %v2286 = vpop.f32.mrb[0].mxu0
        %2287 = vmatprep.mubr.f32.mxu0 0.0
        %2288 = vmatmul.mubr.f32.gmra.mrb[0].mxu0 %v799
        %v2289 = vpop.f32.mrb[0].mxu0
        %v2290 = vadd.f32 %v481, %v2289
        %v2291 = vpop.f32.mrb[0].mxu0
        %2292 = vmatprep.mubr.f32.mxu0 0.0
        %2293 = vmatmul.mubr.f32.gmra.mrb[0].mxu0 %v802
        %v2294 = vpop.f32.mrb[0].mxu0
        %v2295 = vadd.f32 %v481, %v2294
        %v2296 = vpop.f32.mrb[0].mxu0
        %2297 = vmatprep.mubr.f32.mxu0 0.0
        %2298 = vmatmul.mubr.f32.gmra.mrb[0].mxu0 %v805
        %v2299 = vpop.f32.mrb[0].mxu0
        %v2300 = vadd.f32 %v481, %v2299
        %v2301 = vpop.f32.mrb[0].mxu0
        %2302 = vmatprep.mubr.f32.mxu0 0.0
        %2303 = vmatmul.mubr.f32.gmra.mrb[0].mxu0 %v808
        %v2304 = vpop.f32.mrb[0].mxu0
        %v2305 = vadd.f32 %v481, %v2304
        %v2306 = vpop.f32.mrb[0].mxu0
        %2307 = vmatprep.mubr.f32.mxu0 0.0
        %2308 = vmatmul.mubr.f32.gmra.mrb[0].mxu0 %v811
        %v2309 = vpop.f32.mrb[0].mxu0
        %v2310 = vadd.f32 %v481, %v2309
        %v2311 = vpop.f32.mrb[0].mxu0
        %2312 = vmatprep.mubr.f32.mxu0 0.0
        %2313 = vmatmul.mubr.f32.gmra.mrb[0].mxu0 %v814
        %v2314 = vpop.f32.mrb[0].mxu0
        %v2315 = vadd.f32 %v481, %v2314
        %v2316 = vpop.f32.mrb[0].mxu0
        %2317 = vmatprep.mubr.f32.mxu0 0.0
        %2318 = vmatmul.mubr.f32.gmra.mrb[0].mxu0 %v817
        %v2319 = vpop.f32.mrb[0].mxu0
        %v2320 = vadd.f32 %v481, %v2319
        %v2321 = vpop.f32.mrb[0].mxu0
        %2322 = vmatprep.mubr.f32.mxu0 0.0
        %2323 = vmatmul.mubr.f32.gmra.mrb[0].mxu0 %v820
        %v2324 = vpop.f32.mrb[0].mxu0
        %v2325 = vadd.f32 %v481, %v2324
        %v2326 = vpop.f32.mrb[0].mxu0
        %2327 = vmatprep.mubr.f32.mxu0 0.0
        %2328 = vmatmul.mubr.f32.gmra.mrb[0].mxu0 %v823
        %v2329 = vpop.f32.mrb[0].mxu0
        %v2330 = vadd.f32 %v481, %v2329
        %v2331 = vpop.f32.mrb[0].mxu0
        %2332 = vmatprep.mubr.f32.mxu0 0.0
        %2333 = vmatmul.mubr.f32.gmra.mrb[0].mxu0 %v826
        %v2334 = vpop.f32.mrb[0].mxu0
        %v2335 = vadd.f32 %v481, %v2334
        %v2336 = vpop.f32.mrb[0].mxu0
        %2337 = vmatprep.mubr.f32.mxu0 0.0
        %2338 = vmatmul.mubr.f32.gmra.mrb[0].mxu0 %v829
        %v2339 = vpop.f32.mrb[0].mxu0
        %v2340 = vadd.f32 %v481, %v2339
        %v2341 = vpop.f32.mrb[0].mxu0
        %2342 = vmatprep.mubr.f32.mxu0 0.0
        %2343 = vmatmul.mubr.f32.gmra.mrb[0].mxu0 %v832
        %v2344 = vpop.f32.mrb[0].mxu0
        %v2345 = vadd.f32 %v481, %v2344
        %v2346 = vpop.f32.mrb[0].mxu0
        %2347 = vmatprep.mubr.f32.mxu0 0.0
        %2348 = vmatmul.mubr.f32.gmra.mrb[0].mxu0 %v835
        %v2349 = vpop.f32.mrb[0].mxu0
        %v2350 = vadd.f32 %v481, %v2349
        %v2351 = vpop.f32.mrb[0].mxu0
        %2352 = vmatprep.mubr.f32.mxu0 0.0
        %2353 = vmatmul.mubr.f32.gmra.mrb[0].mxu0 %v838
        %v2354 = vpop.f32.mrb[0].mxu0
        %v2355 = vadd.f32 %v481, %v2354
        %v2356 = vpop.f32.mrb[0].mxu0
        %2357 = vmatprep.mubr.f32.mxu0 0.0
        %2358 = vmatmul.mubr.f32.gmra.mrb[0].mxu0 %v841
        %v2359 = vpop.f32.mrb[0].mxu0
        %v2360 = vadd.f32 %v481, %v2359
        %v2361 = vpop.f32.mrb[0].mxu0
        %2362 = vmatprep.mubr.f32.mxu0 0.0
        %2363 = vmatmul.mubr.f32.gmra.mrb[0].mxu0 %v844
        %v2364 = vpop.f32.mrb[0].mxu0
        %v2365 = vadd.f32 %v481, %v2364
        %v2366 = vpop.f32.mrb[0].mxu0
        %2367 = vmatprep.mubr.f32.mxu0 0.0
        %2368 = vmatmul.mubr.f32.gmra.mrb[0].mxu0 %v847
        %v2369 = vpop.f32.mrb[0].mxu0
        %v2370 = vadd.f32 %v481, %v2369
        %v2371 = vpop.f32.mrb[0].mxu0
        %2372 = vmatprep.mubr.f32.mxu0 0.0
        %2373 = vmatmul.mubr.f32.gmra.mrb[0].mxu0 %v850
        %v2374 = vpop.f32.mrb[0].mxu0
        %v2375 = vadd.f32 %v481, %v2374
        %v2376 = vpop.f32.mrb[0].mxu0
        %2377 = vmatprep.mubr.f32.mxu0 0.0
        %2378 = vmatmul.mubr.f32.gmra.mrb[0].mxu0 %v853
        %v2379 = vpop.f32.mrb[0].mxu0
        %v2380 = vadd.f32 %v481, %v2379
        %v2381 = vpop.f32.mrb[0].mxu0
        %2382 = vmatprep.mubr.f32.mxu0 0.0
        %2383 = vmatmul.mubr.f32.gmra.mrb[0].mxu0 %v856
        %v2384 = vpop.f32.mrb[0].mxu0
        %v2385 = vadd.f32 %v481, %v2384
        %v2386 = vpop.f32.mrb[0].mxu0
        %2387 = vmatprep.mubr.f32.mxu0 0.0
        %2388 = vmatmul.mubr.f32.gmra.mrb[0].mxu0 %v859
        %v2389 = vpop.f32.mrb[0].mxu0
        %v2390 = vadd.f32 %v481, %v2389
        %v2391 = vpop.f32.mrb[0].mxu0
        %2392 = vmatprep.mubr.f32.mxu0 0.0
        %2393 = vmatmul.mubr.f32.gmra.mrb[0].mxu0 %v862
        %v2394 = vpop.f32.mrb[0].mxu0
        %v2395 = vadd.f32 %v481, %v2394
        %v2396 = vpop.f32.mrb[0].mxu0
        %2397 = vmatprep.mubr.f32.mxu0 0.0
        %2398 = vmatmul.mubr.f32.gmra.mrb[0].mxu0 %v865
        %v2399 = vpop.f32.mrb[0].mxu0
        %v2400 = vadd.f32 %v481, %v2399
        %v2401 = vpop.f32.mrb[0].mxu0
        %2402 = vmatprep.mubr.f32.mxu0 0.0
        %2403 = vmatmul.mubr.f32.gmra.mrb[0].mxu0 %v868
        %v2404 = vpop.f32.mrb[0].mxu0
        %v2405 = vadd.f32 %v481, %v2404
        %v2406 = vpop.f32.mrb[0].mxu0
        %2407 = vdwg.mxu0
        %v2408 = vmul.f32 %v937, %v939
        %v2409 = vmul.f32 %v943, %v945
        %v2410 = vmul.f32 %v949, %v951
        %v2411 = vmul.f32 %v955, %v957
        %v2412 = vmul.f32 %v961, %v963
        %v2413 = vmul.f32 %v967, %v969
        %v2414 = vmul.f32 %v973, %v975
        %v2415 = vmul.f32 %v979, %v981
        %v2416 = vmul.f32 %v985, %v987
        %v2417 = vmul.f32 %v991, %v993
        %v2418 = vmul.f32 %v997, %v999
        %v2419 = vmul.f32 %v1003, %v1005
        %v2420 = vmul.f32 %v1009, %v1011
        %v2421 = vmul.f32 %v1015, %v1017
        %v2422 = vmul.f32 %v1021, %v1023
        %v2423 = vmul.f32 %v1027, %v1029
        %v2424 = vmul.f32 %v1033, %v1035
        %v2425 = vmul.f32 %v1039, %v1041
        %v2426 = vmul.f32 %v1045, %v1047
        %v2427 = vmul.f32 %v1051, %v1053
        %v2428 = vmul.f32 %v1057, %v1059
        %v2429 = vmul.f32 %v1063, %v1065
        %v2430 = vmul.f32 %v1069, %v1071
        %v2431 = vmul.f32 %v1075, %v1077
        %v2432 = vmul.f32 %v1081, %v1083
        %v2433 = vmul.f32 %v1087, %v1089
        %v2434 = vmul.f32 %v1093, %v1095
        %v2435 = vmul.f32 %v1099, %v1101
        %v2436 = vmul.f32 %v1105, %v1107
        %v2437 = vmul.f32 %v1111, %v1113
        %v2438 = vmul.f32 %v1117, %v1119
        %v2439 = vmul.f32 %v1123, %v1125
        %v2440 = vmul.f32 %v1129, %v1131
        %v2441 = vmul.f32 %v1135, %v1137
        %v2442 = vmul.f32 %v1141, %v1143
        %v2443 = vmul.f32 %v1147, %v1149
        %v2444 = vmul.f32 %v1153, %v1155
        %v2445 = vmul.f32 %v1159, %v1161
        %v2446 = vmul.f32 %v1165, %v1167
        %v2447 = vmul.f32 %v1171, %v1173
        %v2448 = vmul.f32 %v1177, %v1179
        %v2449 = vmul.f32 %v1183, %v1185
        %v2450 = vmul.f32 %v1189, %v1191
        %v2451 = vmul.f32 %v1195, %v1197
        %v2452 = vmul.f32 %v1201, %v1203
        %v2453 = vmul.f32 %v1207, %v1209
        %v2454 = vmul.f32 %v1213, %v1215
        %v2455 = vmul.f32 %v1219, %v1221
        %v2456 = vmul.f32 %v1225, %v1227
        %v2457 = vmul.f32 %v1231, %v1233
        %v2458 = vmul.f32 %v1237, %v1239
        %v2459 = vmul.f32 %v1243, %v1245
        %v2460 = vmul.f32 %v1249, %v1251
        %v2461 = vmul.f32 %v1255, %v1257
        %v2462 = vmul.f32 %v1261, %v1263
        %v2463 = vmul.f32 %v1267, %v1269
        %v2464 = vmul.f32 %v1273, %v1275
        %v2465 = vmul.f32 %v1279, %v1281
        %v2466 = vmul.f32 %v1285, %v1287
        %v2467 = vmul.f32 %v1291, %v1293
        %v2468 = vmul.f32 %v1297, %v1299
        %v2469 = vmul.f32 %v1303, %v1305
        %v2470 = vmul.f32 %v1309, %v1311
        %v2471 = vmul.f32 %v1315, %v1317
        %v2472 = vmul.f32 %v1321, %v1323
        %v2473 = vmul.f32 %v1327, %v1329
        %v2474 = vmul.f32 %v1333, %v1335
        %v2475 = vmul.f32 %v1339, %v1341
        %v2476 = vmul.f32 %v1345, %v1347
        %v2477 = vmul.f32 %v1351, %v1353
        %v2478 = vmul.f32 %v1357, %v1359
        %v2479 = vmul.f32 %v1363, %v1365
        %v2480 = vmul.f32 %v1369, %v1371
        %v2481 = vmul.f32 %v1375, %v1377
        %v2482 = vmul.f32 %v1381, %v1383
        %v2483 = vmul.f32 %v1387, %v1389
        %v2484 = vmul.f32 %v1393, %v1395
        %v2485 = vmul.f32 %v1399, %v1401
        %v2486 = vmul.f32 %v1405, %v1407
        %v2487 = vmul.f32 %v1411, %v1413
        %v2488 = vmul.f32 %v1417, %v1419
        %v2489 = vmul.f32 %v1423, %v1425
        %v2490 = vmul.f32 %v1429, %v1431
        %v2491 = vmul.f32 %v1435, %v1437
        %v2492 = vmul.f32 %v1441, %v1443
        %v2493 = vmul.f32 %v1447, %v1449
        %v2494 = vmul.f32 %v1453, %v1455
        %v2495 = vmul.f32 %v1459, %v1461
        %v2496 = vmul.f32 %v1465, %v1467
        %v2497 = vmul.f32 %v1471, %v1473
        %v2498 = vmul.f32 %v1477, %v1479
        %v2499 = vmul.f32 %v1483, %v1485
        %v2500 = vmul.f32 %v1489, %v1491
        %v2501 = vmul.f32 %v1495, %v1497
        %v2502 = vmul.f32 %v1501, %v1503
        %v2503 = vmul.f32 %v1507, %v1509
        %v2504 = vmul.f32 %v1513, %v1515
        %v2505 = vmul.f32 %v1519, %v1521
        %v2506 = vmul.f32 %v1525, %v1527
        %v2507 = vmul.f32 %v1531, %v1533
        %v2508 = vmul.f32 %v1537, %v1539
        %v2509 = vmul.f32 %v1543, %v1545
        %v2510 = vmul.f32 %v1549, %v1551
        %v2511 = vmul.f32 %v1555, %v1557
        %v2512 = vmul.f32 %v1561, %v1563
        %v2513 = vmul.f32 %v1567, %v1569
        %v2514 = vmul.f32 %v1573, %v1575
        %v2515 = vmul.f32 %v1579, %v1581
        %v2516 = vmul.f32 %v1585, %v1587
        %v2517 = vmul.f32 %v1591, %v1593
        %v2518 = vmul.f32 %v1597, %v1599
        %v2519 = vmul.f32 %v1603, %v1605
        %v2520 = vmul.f32 %v1609, %v1611
        %v2521 = vmul.f32 %v1615, %v1617
        %v2522 = vmul.f32 %v1621, %v1623
        %v2523 = vmul.f32 %v1627, %v1629
        %v2524 = vmul.f32 %v1633, %v1635
        %v2525 = vmul.f32 %v1639, %v1641
        %v2526 = vmul.f32 %v1645, %v1647
        %v2527 = vmul.f32 %v1651, %v1653
        %v2528 = vmul.f32 %v1657, %v1659
        %v2529 = vmul.f32 %v1663, %v1665
        %v2530 = vmul.f32 %v1669, %v1671
        %v2531 = vmul.f32 %v1675, %v1677
        %v2532 = vmul.f32 %v1681, %v1683
        %v2533 = vmul.f32 %v1687, %v1689
        %v2534 = vmul.f32 %v1693, %v1695
        %v2535 = vmul.f32 %v1699, %v1701
        %v2536 = vmul.f32 %v2408, %v1770
        %v2537 = vmul.f32 %v2409, %v1775
        %v2538 = vmul.f32 %v2410, %v1780
        %v2539 = vmul.f32 %v2411, %v1785
        %v2540 = vmul.f32 %v2412, %v1790
        %v2541 = vmul.f32 %v2413, %v1795
        %v2542 = vmul.f32 %v2414, %v1800
        %v2543 = vmul.f32 %v2415, %v1805
        %v2544 = vmul.f32 %v2416, %v1810
        %v2545 = vmul.f32 %v2417, %v1815
        %v2546 = vmul.f32 %v2418, %v1820
        %v2547 = vmul.f32 %v2419, %v1825
        %v2548 = vmul.f32 %v2420, %v1830
        %v2549 = vmul.f32 %v2421, %v1835
        %v2550 = vmul.f32 %v2422, %v1840
        %v2551 = vmul.f32 %v2423, %v1845
        %v2552 = vmul.f32 %v2424, %v1850
        %v2553 = vmul.f32 %v2425, %v1855
        %v2554 = vmul.f32 %v2426, %v1860
        %v2555 = vmul.f32 %v2427, %v1865
        %v2556 = vmul.f32 %v2428, %v1870
        %v2557 = vmul.f32 %v2429, %v1875
        %v2558 = vmul.f32 %v2430, %v1880
        %v2559 = vmul.f32 %v2431, %v1885
        %v2560 = vmul.f32 %v2432, %v1890
        %v2561 = vmul.f32 %v2433, %v1895
        %v2562 = vmul.f32 %v2434, %v1900
        %v2563 = vmul.f32 %v2435, %v1905
        %v2564 = vmul.f32 %v2436, %v1910
        %v2565 = vmul.f32 %v2437, %v1915
        %v2566 = vmul.f32 %v2438, %v1920
        %v2567 = vmul.f32 %v2439, %v1925
        %v2568 = vmul.f32 %v2440, %v1930
        %v2569 = vmul.f32 %v2441, %v1935
        %v2570 = vmul.f32 %v2442, %v1940
        %v2571 = vmul.f32 %v2443, %v1945
        %v2572 = vmul.f32 %v2444, %v1950
        %v2573 = vmul.f32 %v2445, %v1955
        %v2574 = vmul.f32 %v2446, %v1960
        %v2575 = vmul.f32 %v2447, %v1965
        %v2576 = vmul.f32 %v2448, %v1970
        %v2577 = vmul.f32 %v2449, %v1975
        %v2578 = vmul.f32 %v2450, %v1980
        %v2579 = vmul.f32 %v2451, %v1985
        %v2580 = vmul.f32 %v2452, %v1990
        %v2581 = vmul.f32 %v2453, %v1995
        %v2582 = vmul.f32 %v2454, %v2000
        %v2583 = vmul.f32 %v2455, %v2005
        %v2584 = vmul.f32 %v2456, %v2010
        %v2585 = vmul.f32 %v2457, %v2015
        %v2586 = vmul.f32 %v2458, %v2020
        %v2587 = vmul.f32 %v2459, %v2025
        %v2588 = vmul.f32 %v2460, %v2030
        %v2589 = vmul.f32 %v2461, %v2035
        %v2590 = vmul.f32 %v2462, %v2040
        %v2591 = vmul.f32 %v2463, %v2045
        %v2592 = vmul.f32 %v2464, %v2050
        %v2593 = vmul.f32 %v2465, %v2055
        %v2594 = vmul.f32 %v2466, %v2060
        %v2595 = vmul.f32 %v2467, %v2065
        %v2596 = vmul.f32 %v2468, %v2070
        %v2597 = vmul.f32 %v2469, %v2075
        %v2598 = vmul.f32 %v2470, %v2080
        %v2599 = vmul.f32 %v2471, %v2085
        %v2600 = vmul.f32 %v2472, %v2090
        %v2601 = vmul.f32 %v2473, %v2095
        %v2602 = vmul.f32 %v2474, %v2100
        %v2603 = vmul.f32 %v2475, %v2105
        %v2604 = vmul.f32 %v2476, %v2110
        %v2605 = vmul.f32 %v2477, %v2115
        %v2606 = vmul.f32 %v2478, %v2120
        %v2607 = vmul.f32 %v2479, %v2125
        %v2608 = vmul.f32 %v2480, %v2130
        %v2609 = vmul.f32 %v2481, %v2135
        %v2610 = vmul.f32 %v2482, %v2140
        %v2611 = vmul.f32 %v2483, %v2145
        %v2612 = vmul.f32 %v2484, %v2150
        %v2613 = vmul.f32 %v2485, %v2155
        %v2614 = vmul.f32 %v2486, %v2160
        %v2615 = vmul.f32 %v2487, %v2165
        %v2616 = vmul.f32 %v2488, %v2170
        %v2617 = vmul.f32 %v2489, %v2175
        %v2618 = vmul.f32 %v2490, %v2180
        %v2619 = vmul.f32 %v2491, %v2185
        %v2620 = vmul.f32 %v2492, %v2190
        %v2621 = vmul.f32 %v2493, %v2195
        %v2622 = vmul.f32 %v2494, %v2200
        %v2623 = vmul.f32 %v2495, %v2205
        %v2624 = vmul.f32 %v2496, %v2210
        %v2625 = vmul.f32 %v2497, %v2215
        %v2626 = vmul.f32 %v2498, %v2220
        %v2627 = vmul.f32 %v2499, %v2225
        %v2628 = vmul.f32 %v2500, %v2230
        %v2629 = vmul.f32 %v2501, %v2235
        %v2630 = vmul.f32 %v2502, %v2240
        %v2631 = vmul.f32 %v2503, %v2245
        %v2632 = vmul.f32 %v2504, %v2250
        %v2633 = vmul.f32 %v2505, %v2255
        %v2634 = vmul.f32 %v2506, %v2260
        %v2635 = vmul.f32 %v2507, %v2265
        %v2636 = vmul.f32 %v2508, %v2270
        %v2637 = vmul.f32 %v2509, %v2275
        %v2638 = vmul.f32 %v2510, %v2280
        %v2639 = vmul.f32 %v2511, %v2285
        %v2640 = vmul.f32 %v2512, %v2290
        %v2641 = vmul.f32 %v2513, %v2295
        %v2642 = vmul.f32 %v2514, %v2300
        %v2643 = vmul.f32 %v2515, %v2305
        %v2644 = vmul.f32 %v2516, %v2310
        %v2645 = vmul.f32 %v2517, %v2315
        %v2646 = vmul.f32 %v2518, %v2320
        %v2647 = vmul.f32 %v2519, %v2325
        %v2648 = vmul.f32 %v2520, %v2330
        %v2649 = vmul.f32 %v2521, %v2335
        %v2650 = vmul.f32 %v2522, %v2340
        %v2651 = vmul.f32 %v2523, %v2345
        %v2652 = vmul.f32 %v2524, %v2350
        %v2653 = vmul.f32 %v2525, %v2355
        %v2654 = vmul.f32 %v2526, %v2360
        %v2655 = vmul.f32 %v2527, %v2365
        %v2656 = vmul.f32 %v2528, %v2370
        %v2657 = vmul.f32 %v2529, %v2375
        %v2658 = vmul.f32 %v2530, %v2380
        %v2659 = vmul.f32 %v2531, %v2385
        %v2660 = vmul.f32 %v2532, %v2390
        %v2661 = vmul.f32 %v2533, %v2395
        %v2662 = vmul.f32 %v2534, %v2400
        %v2663 = vmul.f32 %v2535, %v2405
        %v2664 = vld [vmem:[%s322] sm:$0xf]
        %v2665 = vld [vmem:[%s322 + $0x4] sm:$0xf]
        %v2666 = vld [vmem:[%s322 + $0x8] sm:$0xf]
        %v2667 = vld [vmem:[%s322 + $0xc] sm:$0xf]
        %v2668 = vld [vmem:[%s322 + $0x10] sm:$0xf]
        %v2669 = vld [vmem:[%s322 + $0x14] sm:$0xf]
        %v2670 = vld [vmem:[%s322 + $0x18] sm:$0xf]
        %v2671 = vld [vmem:[%s322 + $0x1c] sm:$0xf]
        %v2672 = vld [vmem:[%s322 + $0x20] sm:$0xf]
        %v2673 = vld [vmem:[%s322 + $0x24] sm:$0xf]
        %v2674 = vld [vmem:[%s322 + $0x28] sm:$0xf]
        %v2675 = vld [vmem:[%s322 + $0x2c] sm:$0xf]
        %v2676 = vld [vmem:[%s322 + $0x30] sm:$0xf]
        %v2677 = vld [vmem:[%s322 + $0x34] sm:$0xf]
        %v2678 = vld [vmem:[%s322 + $0x38] sm:$0xf]
        %v2679 = vld [vmem:[%s322 + $0x3c] sm:$0xf]
        %v2680 = vld [vmem:[%s322 + $0x40] sm:$0xf]
        %v2681 = vld [vmem:[%s322 + $0x44] sm:$0xf]
        %v2682 = vld [vmem:[%s322 + $0x48] sm:$0xf]
        %v2683 = vld [vmem:[%s322 + $0x4c] sm:$0xf]
        %v2684 = vld [vmem:[%s322 + $0x50] sm:$0xf]
        %v2685 = vld [vmem:[%s322 + $0x54] sm:$0xf]
        %v2686 = vld [vmem:[%s322 + $0x58] sm:$0xf]
        %v2687 = vld [vmem:[%s322 + $0x5c] sm:$0xf]
        %v2688 = vld [vmem:[%s322 + $0x60] sm:$0xf]
        %v2689 = vld [vmem:[%s322 + $0x64] sm:$0xf]
        %v2690 = vld [vmem:[%s322 + $0x68] sm:$0xf]
        %v2691 = vld [vmem:[%s322 + $0x6c] sm:$0xf]
        %v2692 = vld [vmem:[%s322 + $0x70] sm:$0xf]
        %v2693 = vld [vmem:[%s322 + $0x74] sm:$0xf]
        %v2694 = vld [vmem:[%s322 + $0x78] sm:$0xf]
        %v2695 = vld [vmem:[%s322 + $0x7c] sm:$0xf]
        %v2696 = vld [vmem:[%s322 + $0x80] sm:$0xf]
        %v2697 = vld [vmem:[%s322 + $0x84] sm:$0xf]
        %v2698 = vld [vmem:[%s322 + $0x88] sm:$0xf]
        %v2699 = vld [vmem:[%s322 + $0x8c] sm:$0xf]
        %v2700 = vld [vmem:[%s322 + $0x90] sm:$0xf]
        %v2701 = vld [vmem:[%s322 + $0x94] sm:$0xf]
        %v2702 = vld [vmem:[%s322 + $0x98] sm:$0xf]
        %v2703 = vld [vmem:[%s322 + $0x9c] sm:$0xf]
        %v2704 = vld [vmem:[%s322 + $0xa0] sm:$0xf]
        %v2705 = vld [vmem:[%s322 + $0xa4] sm:$0xf]
        %v2706 = vld [vmem:[%s322 + $0xa8] sm:$0xf]
        %v2707 = vld [vmem:[%s322 + $0xac] sm:$0xf]
        %v2708 = vld [vmem:[%s322 + $0xb0] sm:$0xf]
        %v2709 = vld [vmem:[%s322 + $0xb4] sm:$0xf]
        %v2710 = vld [vmem:[%s322 + $0xb8] sm:$0xf]
        %v2711 = vld [vmem:[%s322 + $0xbc] sm:$0xf]
        %v2712 = vld [vmem:[%s322 + $0xc0] sm:$0xf]
        %v2713 = vld [vmem:[%s322 + $0xc4] sm:$0xf]
        %v2714 = vld [vmem:[%s322 + $0xc8] sm:$0xf]
        %v2715 = vld [vmem:[%s322 + $0xcc] sm:$0xf]
        %v2716 = vld [vmem:[%s322 + $0xd0] sm:$0xf]
        %v2717 = vld [vmem:[%s322 + $0xd4] sm:$0xf]
        %v2718 = vld [vmem:[%s322 + $0xd8] sm:$0xf]
        %v2719 = vld [vmem:[%s322 + $0xdc] sm:$0xf]
        %v2720 = vld [vmem:[%s322 + $0xe0] sm:$0xf]
        %v2721 = vld [vmem:[%s322 + $0xe4] sm:$0xf]
        %v2722 = vld [vmem:[%s322 + $0xe8] sm:$0xf]
        %v2723 = vld [vmem:[%s322 + $0xec] sm:$0xf]
        %v2724 = vld [vmem:[%s322 + $0xf0] sm:$0xf]
        %v2725 = vld [vmem:[%s322 + $0xf4] sm:$0xf]
        %v2726 = vld [vmem:[%s322 + $0xf8] sm:$0xf]
        %v2727 = vld [vmem:[%s322 + $0xfc] sm:$0xf]
        %v2728 = vld [vmem:[%s322 + $0x100] sm:$0xf]
        %v2729 = vld [vmem:[%s322 + $0x104] sm:$0xf]
        %v2730 = vld [vmem:[%s322 + $0x108] sm:$0xf]
        %v2731 = vld [vmem:[%s322 + $0x10c] sm:$0xf]
        %v2732 = vld [vmem:[%s322 + $0x110] sm:$0xf]
        %v2733 = vld [vmem:[%s322 + $0x114] sm:$0xf]
        %v2734 = vld [vmem:[%s322 + $0x118] sm:$0xf]
        %v2735 = vld [vmem:[%s322 + $0x11c] sm:$0xf]
        %v2736 = vld [vmem:[%s322 + $0x120] sm:$0xf]
        %v2737 = vld [vmem:[%s322 + $0x124] sm:$0xf]
        %v2738 = vld [vmem:[%s322 + $0x128] sm:$0xf]
        %v2739 = vld [vmem:[%s322 + $0x12c] sm:$0xf]
        %v2740 = vld [vmem:[%s322 + $0x130] sm:$0xf]
        %v2741 = vld [vmem:[%s322 + $0x134] sm:$0xf]
        %v2742 = vld [vmem:[%s322 + $0x138] sm:$0xf]
        %v2743 = vld [vmem:[%s322 + $0x13c] sm:$0xf]
        %v2744 = vld [vmem:[%s322 + $0x140] sm:$0xf]
        %v2745 = vld [vmem:[%s322 + $0x144] sm:$0xf]
        %v2746 = vld [vmem:[%s322 + $0x148] sm:$0xf]
        %v2747 = vld [vmem:[%s322 + $0x14c] sm:$0xf]
        %v2748 = vld [vmem:[%s322 + $0x150] sm:$0xf]
        %v2749 = vld [vmem:[%s322 + $0x154] sm:$0xf]
        %v2750 = vld [vmem:[%s322 + $0x158] sm:$0xf]
        %v2751 = vld [vmem:[%s322 + $0x15c] sm:$0xf]
        %v2752 = vld [vmem:[%s322 + $0x160] sm:$0xf]
        %v2753 = vld [vmem:[%s322 + $0x164] sm:$0xf]
        %v2754 = vld [vmem:[%s322 + $0x168] sm:$0xf]
        %v2755 = vld [vmem:[%s322 + $0x16c] sm:$0xf]
        %v2756 = vld [vmem:[%s322 + $0x170] sm:$0xf]
        %v2757 = vld [vmem:[%s322 + $0x174] sm:$0xf]
        %v2758 = vld [vmem:[%s322 + $0x178] sm:$0xf]
        %v2759 = vld [vmem:[%s322 + $0x17c] sm:$0xf]
        %v2760 = vld [vmem:[%s322 + $0x180] sm:$0xf]
        %v2761 = vld [vmem:[%s322 + $0x184] sm:$0xf]
        %v2762 = vld [vmem:[%s322 + $0x188] sm:$0xf]
        %v2763 = vld [vmem:[%s322 + $0x18c] sm:$0xf]
        %v2764 = vld [vmem:[%s322 + $0x190] sm:$0xf]
        %v2765 = vld [vmem:[%s322 + $0x194] sm:$0xf]
        %v2766 = vld [vmem:[%s322 + $0x198] sm:$0xf]
        %v2767 = vld [vmem:[%s322 + $0x19c] sm:$0xf]
        %v2768 = vld [vmem:[%s322 + $0x1a0] sm:$0xf]
        %v2769 = vld [vmem:[%s322 + $0x1a4] sm:$0xf]
        %v2770 = vld [vmem:[%s322 + $0x1a8] sm:$0xf]
        %v2771 = vld [vmem:[%s322 + $0x1ac] sm:$0xf]
        %v2772 = vld [vmem:[%s322 + $0x1b0] sm:$0xf]
        %v2773 = vld [vmem:[%s322 + $0x1b4] sm:$0xf]
        %v2774 = vld [vmem:[%s322 + $0x1b8] sm:$0xf]
        %v2775 = vld [vmem:[%s322 + $0x1bc] sm:$0xf]
        %v2776 = vld [vmem:[%s322 + $0x1c0] sm:$0xf]
        %v2777 = vld [vmem:[%s322 + $0x1c4] sm:$0xf]
        %v2778 = vld [vmem:[%s322 + $0x1c8] sm:$0xf]
        %v2779 = vld [vmem:[%s322 + $0x1cc] sm:$0xf]
        %v2780 = vld [vmem:[%s322 + $0x1d0] sm:$0xf]
        %v2781 = vld [vmem:[%s322 + $0x1d4] sm:$0xf]
        %v2782 = vld [vmem:[%s322 + $0x1d8] sm:$0xf]
        %v2783 = vld [vmem:[%s322 + $0x1dc] sm:$0xf]
        %v2784 = vld [vmem:[%s322 + $0x1e0] sm:$0xf]
        %v2785 = vld [vmem:[%s322 + $0x1e4] sm:$0xf]
        %v2786 = vld [vmem:[%s322 + $0x1e8] sm:$0xf]
        %v2787 = vld [vmem:[%s322 + $0x1ec] sm:$0xf]
        %v2788 = vld [vmem:[%s322 + $0x1f0] sm:$0xf]
        %v2789 = vld [vmem:[%s322 + $0x1f4] sm:$0xf]
        %v2790 = vld [vmem:[%s322 + $0x1f8] sm:$0xf]
        %v2791 = vld [vmem:[%s322 + $0x1fc] sm:$0xf]
        %v2792 = vunpack.c.l.bf16 %v2664
        %v2793 = vunpack.c.l.bf16 %v2665
        %v2794 = vunpack.c.l.bf16 %v2666
        %v2795 = vunpack.c.l.bf16 %v2667
        %v2796 = vunpack.c.l.bf16 %v2668
        %v2797 = vunpack.c.l.bf16 %v2669
        %v2798 = vunpack.c.l.bf16 %v2670
        %v2799 = vunpack.c.l.bf16 %v2671
        %v2800 = vunpack.c.l.bf16 %v2672
        %v2801 = vunpack.c.l.bf16 %v2673
        %v2802 = vunpack.c.l.bf16 %v2674
        %v2803 = vunpack.c.l.bf16 %v2675
        %v2804 = vunpack.c.l.bf16 %v2676
        %v2805 = vunpack.c.l.bf16 %v2677
        %v2806 = vunpack.c.l.bf16 %v2678
        %v2807 = vunpack.c.l.bf16 %v2679
        %v2808 = vunpack.c.l.bf16 %v2680
        %v2809 = vunpack.c.l.bf16 %v2681
        %v2810 = vunpack.c.l.bf16 %v2682
        %v2811 = vunpack.c.l.bf16 %v2683
        %v2812 = vunpack.c.l.bf16 %v2684
        %v2813 = vunpack.c.l.bf16 %v2685
        %v2814 = vunpack.c.l.bf16 %v2686
        %v2815 = vunpack.c.l.bf16 %v2687
        %v2816 = vunpack.c.l.bf16 %v2688
        %v2817 = vunpack.c.l.bf16 %v2689
        %v2818 = vunpack.c.l.bf16 %v2690
        %v2819 = vunpack.c.l.bf16 %v2691
        %v2820 = vunpack.c.l.bf16 %v2692
        %v2821 = vunpack.c.l.bf16 %v2693
        %v2822 = vunpack.c.l.bf16 %v2694
        %v2823 = vunpack.c.l.bf16 %v2695
        %v2824 = vunpack.c.l.bf16 %v2696
        %v2825 = vunpack.c.l.bf16 %v2697
        %v2826 = vunpack.c.l.bf16 %v2698
        %v2827 = vunpack.c.l.bf16 %v2699
        %v2828 = vunpack.c.l.bf16 %v2700
        %v2829 = vunpack.c.l.bf16 %v2701
        %v2830 = vunpack.c.l.bf16 %v2702
        %v2831 = vunpack.c.l.bf16 %v2703
        %v2832 = vunpack.c.l.bf16 %v2704
        %v2833 = vunpack.c.l.bf16 %v2705
        %v2834 = vunpack.c.l.bf16 %v2706
        %v2835 = vunpack.c.l.bf16 %v2707
        %v2836 = vunpack.c.l.bf16 %v2708
        %v2837 = vunpack.c.l.bf16 %v2709
        %v2838 = vunpack.c.l.bf16 %v2710
        %v2839 = vunpack.c.l.bf16 %v2711
        %v2840 = vunpack.c.l.bf16 %v2712
        %v2841 = vunpack.c.l.bf16 %v2713
        %v2842 = vunpack.c.l.bf16 %v2714
        %v2843 = vunpack.c.l.bf16 %v2715
        %v2844 = vunpack.c.l.bf16 %v2716
        %v2845 = vunpack.c.l.bf16 %v2717
        %v2846 = vunpack.c.l.bf16 %v2718
        %v2847 = vunpack.c.l.bf16 %v2719
        %v2848 = vunpack.c.l.bf16 %v2720
        %v2849 = vunpack.c.l.bf16 %v2721
        %v2850 = vunpack.c.l.bf16 %v2722
        %v2851 = vunpack.c.l.bf16 %v2723
        %v2852 = vunpack.c.l.bf16 %v2724
        %v2853 = vunpack.c.l.bf16 %v2725
        %v2854 = vunpack.c.l.bf16 %v2726
        %v2855 = vunpack.c.l.bf16 %v2727
        %v2856 = vunpack.c.l.bf16 %v2728
        %v2857 = vunpack.c.l.bf16 %v2729
        %v2858 = vunpack.c.l.bf16 %v2730
        %v2859 = vunpack.c.l.bf16 %v2731
        %v2860 = vunpack.c.l.bf16 %v2732
        %v2861 = vunpack.c.l.bf16 %v2733
        %v2862 = vunpack.c.l.bf16 %v2734
        %v2863 = vunpack.c.l.bf16 %v2735
        %v2864 = vunpack.c.l.bf16 %v2736
        %v2865 = vunpack.c.l.bf16 %v2737
        %v2866 = vunpack.c.l.bf16 %v2738
        %v2867 = vunpack.c.l.bf16 %v2739
        %v2868 = vunpack.c.l.bf16 %v2740
        %v2869 = vunpack.c.l.bf16 %v2741
        %v2870 = vunpack.c.l.bf16 %v2742
        %v2871 = vunpack.c.l.bf16 %v2743
        %v2872 = vunpack.c.l.bf16 %v2744
        %v2873 = vunpack.c.l.bf16 %v2745
        %v2874 = vunpack.c.l.bf16 %v2746
        %v2875 = vunpack.c.l.bf16 %v2747
        %v2876 = vunpack.c.l.bf16 %v2748
        %v2877 = vunpack.c.l.bf16 %v2749
        %v2878 = vunpack.c.l.bf16 %v2750
        %v2879 = vunpack.c.l.bf16 %v2751
        %v2880 = vunpack.c.l.bf16 %v2752
        %v2881 = vunpack.c.l.bf16 %v2753
        %v2882 = vunpack.c.l.bf16 %v2754
        %v2883 = vunpack.c.l.bf16 %v2755
        %v2884 = vunpack.c.l.bf16 %v2756
        %v2885 = vunpack.c.l.bf16 %v2757
        %v2886 = vunpack.c.l.bf16 %v2758
        %v2887 = vunpack.c.l.bf16 %v2759
        %v2888 = vunpack.c.l.bf16 %v2760
        %v2889 = vunpack.c.l.bf16 %v2761
        %v2890 = vunpack.c.l.bf16 %v2762
        %v2891 = vunpack.c.l.bf16 %v2763
        %v2892 = vunpack.c.l.bf16 %v2764
        %v2893 = vunpack.c.l.bf16 %v2765
        %v2894 = vunpack.c.l.bf16 %v2766
        %v2895 = vunpack.c.l.bf16 %v2767
        %v2896 = vunpack.c.l.bf16 %v2768
        %v2897 = vunpack.c.l.bf16 %v2769
        %v2898 = vunpack.c.l.bf16 %v2770
        %v2899 = vunpack.c.l.bf16 %v2771
        %v2900 = vunpack.c.l.bf16 %v2772
        %v2901 = vunpack.c.l.bf16 %v2773
        %v2902 = vunpack.c.l.bf16 %v2774
        %v2903 = vunpack.c.l.bf16 %v2775
        %v2904 = vunpack.c.l.bf16 %v2776
        %v2905 = vunpack.c.l.bf16 %v2777
        %v2906 = vunpack.c.l.bf16 %v2778
        %v2907 = vunpack.c.l.bf16 %v2779
        %v2908 = vunpack.c.l.bf16 %v2780
        %v2909 = vunpack.c.l.bf16 %v2781
        %v2910 = vunpack.c.l.bf16 %v2782
        %v2911 = vunpack.c.l.bf16 %v2783
        %v2912 = vunpack.c.l.bf16 %v2784
        %v2913 = vunpack.c.l.bf16 %v2785
        %v2914 = vunpack.c.l.bf16 %v2786
        %v2915 = vunpack.c.l.bf16 %v2787
        %v2916 = vunpack.c.l.bf16 %v2788
        %v2917 = vunpack.c.l.bf16 %v2789
        %v2918 = vunpack.c.l.bf16 %v2790
        %v2919 = vunpack.c.l.bf16 %v2791
        %v2920 = vmul.f32 %v2792, %v2536
        %v2921 = vmul.f32 %v2793, %v2537
        %v2922 = vmul.f32 %v2794, %v2538
        %v2923 = vmul.f32 %v2795, %v2539
        %v2924 = vmul.f32 %v2796, %v2540
        %v2925 = vmul.f32 %v2797, %v2541
        %v2926 = vmul.f32 %v2798, %v2542
        %v2927 = vmul.f32 %v2799, %v2543
        %v2928 = vmul.f32 %v2800, %v2544
        %v2929 = vmul.f32 %v2801, %v2545
        %v2930 = vmul.f32 %v2802, %v2546
        %v2931 = vmul.f32 %v2803, %v2547
        %v2932 = vmul.f32 %v2804, %v2548
        %v2933 = vmul.f32 %v2805, %v2549
        %v2934 = vmul.f32 %v2806, %v2550
        %v2935 = vmul.f32 %v2807, %v2551
        %v2936 = vmul.f32 %v2808, %v2552
        %v2937 = vmul.f32 %v2809, %v2553
        %v2938 = vmul.f32 %v2810, %v2554
        %v2939 = vmul.f32 %v2811, %v2555
        %v2940 = vmul.f32 %v2812, %v2556
        %v2941 = vmul.f32 %v2813, %v2557
        %v2942 = vmul.f32 %v2814, %v2558
        %v2943 = vmul.f32 %v2815, %v2559
        %v2944 = vmul.f32 %v2816, %v2560
        %v2945 = vmul.f32 %v2817, %v2561
        %v2946 = vmul.f32 %v2818, %v2562
        %v2947 = vmul.f32 %v2819, %v2563
        %v2948 = vmul.f32 %v2820, %v2564
        %v2949 = vmul.f32 %v2821, %v2565
        %v2950 = vmul.f32 %v2822, %v2566
        %v2951 = vmul.f32 %v2823, %v2567
        %v2952 = vmul.f32 %v2824, %v2568
        %v2953 = vmul.f32 %v2825, %v2569
        %v2954 = vmul.f32 %v2826, %v2570
        %v2955 = vmul.f32 %v2827, %v2571
        %v2956 = vmul.f32 %v2828, %v2572
        %v2957 = vmul.f32 %v2829, %v2573
        %v2958 = vmul.f32 %v2830, %v2574
        %v2959 = vmul.f32 %v2831, %v2575
        %v2960 = vmul.f32 %v2832, %v2576
        %v2961 = vmul.f32 %v2833, %v2577
        %v2962 = vmul.f32 %v2834, %v2578
        %v2963 = vmul.f32 %v2835, %v2579
        %v2964 = vmul.f32 %v2836, %v2580
        %v2965 = vmul.f32 %v2837, %v2581
        %v2966 = vmul.f32 %v2838, %v2582
        %v2967 = vmul.f32 %v2839, %v2583
        %v2968 = vmul.f32 %v2840, %v2584
        %v2969 = vmul.f32 %v2841, %v2585
        %v2970 = vmul.f32 %v2842, %v2586
        %v2971 = vmul.f32 %v2843, %v2587
        %v2972 = vmul.f32 %v2844, %v2588
        %v2973 = vmul.f32 %v2845, %v2589
        %v2974 = vmul.f32 %v2846, %v2590
        %v2975 = vmul.f32 %v2847, %v2591
        %v2976 = vmul.f32 %v2848, %v2592
        %v2977 = vmul.f32 %v2849, %v2593
        %v2978 = vmul.f32 %v2850, %v2594
        %v2979 = vmul.f32 %v2851, %v2595
        %v2980 = vmul.f32 %v2852, %v2596
        %v2981 = vmul.f32 %v2853, %v2597
        %v2982 = vmul.f32 %v2854, %v2598
        %v2983 = vmul.f32 %v2855, %v2599
        %v2984 = vmul.f32 %v2856, %v2600
        %v2985 = vmul.f32 %v2857, %v2601
        %v2986 = vmul.f32 %v2858, %v2602
        %v2987 = vmul.f32 %v2859, %v2603
        %v2988 = vmul.f32 %v2860, %v2604
        %v2989 = vmul.f32 %v2861, %v2605
        %v2990 = vmul.f32 %v2862, %v2606
        %v2991 = vmul.f32 %v2863, %v2607
        %v2992 = vmul.f32 %v2864, %v2608
        %v2993 = vmul.f32 %v2865, %v2609
        %v2994 = vmul.f32 %v2866, %v2610
        %v2995 = vmul.f32 %v2867, %v2611
        %v2996 = vmul.f32 %v2868, %v2612
        %v2997 = vmul.f32 %v2869, %v2613
        %v2998 = vmul.f32 %v2870, %v2614
        %v2999 = vmul.f32 %v2871, %v2615
        %v3000 = vmul.f32 %v2872, %v2616
        %v3001 = vmul.f32 %v2873, %v2617
        %v3002 = vmul.f32 %v2874, %v2618
        %v3003 = vmul.f32 %v2875, %v2619
        %v3004 = vmul.f32 %v2876, %v2620
        %v3005 = vmul.f32 %v2877, %v2621
        %v3006 = vmul.f32 %v2878, %v2622
        %v3007 = vmul.f32 %v2879, %v2623
        %v3008 = vmul.f32 %v2880, %v2624
        %v3009 = vmul.f32 %v2881, %v2625
        %v3010 = vmul.f32 %v2882, %v2626
        %v3011 = vmul.f32 %v2883, %v2627
        %v3012 = vmul.f32 %v2884, %v2628
        %v3013 = vmul.f32 %v2885, %v2629
        %v3014 = vmul.f32 %v2886, %v2630
        %v3015 = vmul.f32 %v2887, %v2631
        %v3016 = vmul.f32 %v2888, %v2632
        %v3017 = vmul.f32 %v2889, %v2633
        %v3018 = vmul.f32 %v2890, %v2634
        %v3019 = vmul.f32 %v2891, %v2635
        %v3020 = vmul.f32 %v2892, %v2636
        %v3021 = vmul.f32 %v2893, %v2637
        %v3022 = vmul.f32 %v2894, %v2638
        %v3023 = vmul.f32 %v2895, %v2639
        %v3024 = vmul.f32 %v2896, %v2640
        %v3025 = vmul.f32 %v2897, %v2641
        %v3026 = vmul.f32 %v2898, %v2642
        %v3027 = vmul.f32 %v2899, %v2643
        %v3028 = vmul.f32 %v2900, %v2644
        %v3029 = vmul.f32 %v2901, %v2645
        %v3030 = vmul.f32 %v2902, %v2646
        %v3031 = vmul.f32 %v2903, %v2647
        %v3032 = vmul.f32 %v2904, %v2648
        %v3033 = vmul.f32 %v2905, %v2649
        %v3034 = vmul.f32 %v2906, %v2650
        %v3035 = vmul.f32 %v2907, %v2651
        %v3036 = vmul.f32 %v2908, %v2652
        %v3037 = vmul.f32 %v2909, %v2653
        %v3038 = vmul.f32 %v2910, %v2654
        %v3039 = vmul.f32 %v2911, %v2655
        %v3040 = vmul.f32 %v2912, %v2656
        %v3041 = vmul.f32 %v2913, %v2657
        %v3042 = vmul.f32 %v2914, %v2658
        %v3043 = vmul.f32 %v2915, %v2659
        %v3044 = vmul.f32 %v2916, %v2660
        %v3045 = vmul.f32 %v2917, %v2661
        %v3046 = vmul.f32 %v2918, %v2662
        %v3047 = vmul.f32 %v2919, %v2663
        %v3048 = vld [vmem:[%s4] sm:$0xff]
        %v3049 = vld [vmem:[%s4 + $0x8] sm:$0xff]
        %v3050 = vld [vmem:[%s4 + $0x10] sm:$0xff]
        %v3051 = vld [vmem:[%s4 + $0x18] sm:$0xff]
        %v3052 = vld [vmem:[%s5] sm:$0xff]
        %v3053 = vld [vmem:[%s5 + $0x8] sm:$0xff]
        %v3054 = vld [vmem:[%s5 + $0x10] sm:$0xff]
        %v3055 = vld [vmem:[%s5 + $0x18] sm:$0xff]
        %3057 = vset.pattern.permute.xlu0 0
        %3058 = vperm.xlu0 %3057, %v3052
        %v3059 = vpop.permute.xlu0 %3058
        %3062 = vset.pattern.permute.xlu0 0
        %3063 = vperm.xlu0 %3062, %v3053
        %v3064 = vpop.permute.xlu0 %3063
        %3067 = vset.pattern.permute.xlu0 0
        %3068 = vperm.xlu0 %3067, %v3054
        %v3069 = vpop.permute.xlu0 %3068
        %3072 = vset.pattern.permute.xlu0 0
        %3073 = vperm.xlu0 %3072, %v3055
        %v3074 = vpop.permute.xlu0 %3073
        %3076 = vmatprep.subr.mxu0 0.0
        %3077 = vmatpush1.xpose.msra.mxu0 %v2920
        %3078 = vmatprep.subr.mxu0 0.0
        %3079 = vmatpush1.xpose.msra.mxu0 %v2921
        %3080 = vmatprep.subr.mxu0 0.0
        %3081 = vmatpush1.xpose.msra.mxu0 %v2922
        %3082 = vmatprep.subr.mxu0 0.0
        %3083 = vmatpush1.xpose.msra.mxu0 %v2923
        %3084 = vmatprep.subr.mxu0 0.0
        %3085 = vmatpush1.xpose.msra.mxu0 %v2924
        %3086 = vmatprep.subr.mxu0 0.0
        %3087 = vmatpush1.xpose.msra.mxu0 %v2925
        %3088 = vmatprep.subr.mxu0 0.0
        %3089 = vmatpush1.xpose.msra.mxu0 %v2926
        %3090 = vmatprep.subr.mxu0 0.0
        %3091 = vmatpush1.xpose.msra.mxu0 %v2927
        %3092 = vmatprep.subr.mxu0 0.0
        %3093 = vmatpush1.xpose.msra.mxu0 %v2928
        %3094 = vmatprep.subr.mxu0 0.0
        %3095 = vmatpush1.xpose.msra.mxu0 %v2929
        %3096 = vmatprep.subr.mxu0 0.0
        %3097 = vmatpush1.xpose.msra.mxu0 %v2930
        %3098 = vmatprep.subr.mxu0 0.0
        %3099 = vmatpush1.xpose.msra.mxu0 %v2931
        %3100 = vmatprep.subr.mxu0 0.0
        %3101 = vmatpush1.xpose.msra.mxu0 %v2932
        %3102 = vmatprep.subr.mxu0 0.0
        %3103 = vmatpush1.xpose.msra.mxu0 %v2933
        %3104 = vmatprep.subr.mxu0 0.0
        %3105 = vmatpush1.xpose.msra.mxu0 %v2934
        %3106 = vmatprep.subr.mxu0 0.0
        %3107 = vmatpush1.xpose.msra.mxu0 %v2935
        %3108 = vmatprep.subr.mxu0 0.0
        %3109 = vmatpush1.xpose.msra.mxu0 %v2936
        %3110 = vmatprep.subr.mxu0 0.0
        %3111 = vmatpush1.xpose.msra.mxu0 %v2937
        %3112 = vmatprep.subr.mxu0 0.0
        %3113 = vmatpush1.xpose.msra.mxu0 %v2938
        %3114 = vmatprep.subr.mxu0 0.0
        %3115 = vmatpush1.xpose.msra.mxu0 %v2939
        %3116 = vmatprep.subr.mxu0 0.0
        %3117 = vmatpush1.xpose.msra.mxu0 %v2940
        %3118 = vmatprep.subr.mxu0 0.0
        %3119 = vmatpush1.xpose.msra.mxu0 %v2941
        %3120 = vmatprep.subr.mxu0 0.0
        %3121 = vmatpush1.xpose.msra.mxu0 %v2942
        %3122 = vmatprep.subr.mxu0 0.0
        %3123 = vmatpush1.xpose.msra.mxu0 %v2943
        %3124 = vmatprep.subr.mxu0 0.0
        %3125 = vmatpush1.xpose.msra.mxu0 %v2944
        %3126 = vmatprep.subr.mxu0 0.0
        %3127 = vmatpush1.xpose.msra.mxu0 %v2945
        %3128 = vmatprep.subr.mxu0 0.0
        %3129 = vmatpush1.xpose.msra.mxu0 %v2946
        %3130 = vmatprep.subr.mxu0 0.0
        %3131 = vmatpush1.xpose.msra.mxu0 %v2947
        %3132 = vmatprep.subr.mxu0 0.0
        %3133 = vmatpush1.xpose.msra.mxu0 %v2948
        %3134 = vmatprep.subr.mxu0 0.0
        %3135 = vmatpush1.xpose.msra.mxu0 %v2949
        %3136 = vmatprep.subr.mxu0 0.0
        %3137 = vmatpush1.xpose.msra.mxu0 %v2950
        %3138 = vmatprep.subr.mxu0 0.0
        %3139 = vmatpush1.xpose.msra.mxu0 %v2951
        %3140 = vmatprep.mubr.f32.mxu0 0.0
        %3141 = vmatmul.mubr.f32.gmra.mrb[0].mxu0 %v3048
        %v3142 = vpop.f32.mrb[0].mxu0
        %v3143 = vadd.f32 %v3059, %v3142
        %v3144 = vpop.f32.mrb[0].mxu0
        %v3145 = vadd.f32 %v3059, %v3144
        %3146 = vmatprep.mubr.f32.mxu0 0.0
        %3147 = vmatmul.mubr.f32.gmra.mrb[0].mxu0 %v3049
        %v3148 = vpop.f32.mrb[0].mxu0
        %v3149 = vadd.f32 %v3064, %v3148
        %v3150 = vpop.f32.mrb[0].mxu0
        %v3151 = vadd.f32 %v3064, %v3150
        %3152 = vmatprep.mubr.f32.mxu0 0.0
        %3153 = vmatmul.mubr.f32.gmra.mrb[0].mxu0 %v3050
        %v3154 = vpop.f32.mrb[0].mxu0
        %v3155 = vadd.f32 %v3069, %v3154
        %v3156 = vpop.f32.mrb[0].mxu0
        %v3157 = vadd.f32 %v3069, %v3156
        %3158 = vmatprep.mubr.f32.mxu0 0.0
        %3159 = vmatmul.mubr.f32.gmra.mrb[0].mxu0 %v3051
        %v3160 = vpop.f32.mrb[0].mxu0
        %v3161 = vadd.f32 %v3074, %v3160
        %v3162 = vpop.f32.mrb[0].mxu0
        %v3163 = vadd.f32 %v3074, %v3162
        %3164 = vdwg.mxu0
        %3165 = vmatprep.subr.mxu0 0.0
        %3166 = vmatpush1.xpose.msra.mxu0 %v2952
        %3167 = vmatprep.subr.mxu0 0.0
        %3168 = vmatpush1.xpose.msra.mxu0 %v2953
        %3169 = vmatprep.subr.mxu0 0.0
        %3170 = vmatpush1.xpose.msra.mxu0 %v2954
        %3171 = vmatprep.subr.mxu0 0.0
        %3172 = vmatpush1.xpose.msra.mxu0 %v2955
        %3173 = vmatprep.subr.mxu0 0.0
        %3174 = vmatpush1.xpose.msra.mxu0 %v2956
        %3175 = vmatprep.subr.mxu0 0.0
        %3176 = vmatpush1.xpose.msra.mxu0 %v2957
        %3177 = vmatprep.subr.mxu0 0.0
        %3178 = vmatpush1.xpose.msra.mxu0 %v2958
        %3179 = vmatprep.subr.mxu0 0.0
        %3180 = vmatpush1.xpose.msra.mxu0 %v2959
        %3181 = vmatprep.subr.mxu0 0.0
        %3182 = vmatpush1.xpose.msra.mxu0 %v2960
        %3183 = vmatprep.subr.mxu0 0.0
        %3184 = vmatpush1.xpose.msra.mxu0 %v2961
        %3185 = vmatprep.subr.mxu0 0.0
        %3186 = vmatpush1.xpose.msra.mxu0 %v2962
        %3187 = vmatprep.subr.mxu0 0.0
        %3188 = vmatpush1.xpose.msra.mxu0 %v2963
        %3189 = vmatprep.subr.mxu0 0.0
        %3190 = vmatpush1.xpose.msra.mxu0 %v2964
        %3191 = vmatprep.subr.mxu0 0.0
        %3192 = vmatpush1.xpose.msra.mxu0 %v2965
        %3193 = vmatprep.subr.mxu0 0.0
        %3194 = vmatpush1.xpose.msra.mxu0 %v2966
        %3195 = vmatprep.subr.mxu0 0.0
        %3196 = vmatpush1.xpose.msra.mxu0 %v2967
        %3197 = vmatprep.subr.mxu0 0.0
        %3198 = vmatpush1.xpose.msra.mxu0 %v2968
        %3199 = vmatprep.subr.mxu0 0.0
        %3200 = vmatpush1.xpose.msra.mxu0 %v2969
        %3201 = vmatprep.subr.mxu0 0.0
        %3202 = vmatpush1.xpose.msra.mxu0 %v2970
        %3203 = vmatprep.subr.mxu0 0.0
        %3204 = vmatpush1.xpose.msra.mxu0 %v2971
        %3205 = vmatprep.subr.mxu0 0.0
        %3206 = vmatpush1.xpose.msra.mxu0 %v2972
        %3207 = vmatprep.subr.mxu0 0.0
        %3208 = vmatpush1.xpose.msra.mxu0 %v2973
        %3209 = vmatprep.subr.mxu0 0.0
        %3210 = vmatpush1.xpose.msra.mxu0 %v2974
        %3211 = vmatprep.subr.mxu0 0.0
        %3212 = vmatpush1.xpose.msra.mxu0 %v2975
        %3213 = vmatprep.subr.mxu0 0.0
        %3214 = vmatpush1.xpose.msra.mxu0 %v2976
        %3215 = vmatprep.subr.mxu0 0.0
        %3216 = vmatpush1.xpose.msra.mxu0 %v2977
        %3217 = vmatprep.subr.mxu0 0.0
        %3218 = vmatpush1.xpose.msra.mxu0 %v2978
        %3219 = vmatprep.subr.mxu0 0.0
        %3220 = vmatpush1.xpose.msra.mxu0 %v2979
        %3221 = vmatprep.subr.mxu0 0.0
        %3222 = vmatpush1.xpose.msra.mxu0 %v2980
        %3223 = vmatprep.subr.mxu0 0.0
        %3224 = vmatpush1.xpose.msra.mxu0 %v2981
        %3225 = vmatprep.subr.mxu0 0.0
        %3226 = vmatpush1.xpose.msra.mxu0 %v2982
        %3227 = vmatprep.subr.mxu0 0.0
        %3228 = vmatpush1.xpose.msra.mxu0 %v2983
        %3229 = vmatprep.mubr.f32.mxu0 0.0
        %3230 = vmatmul.mubr.f32.gmra.mrb[0].mxu0 %v3048
        %v3231 = vpop.f32.mrb[0].mxu0
        %v3232 = vadd.f32 %v3059, %v3231
        %v3233 = vpop.f32.mrb[0].mxu0
        %v3234 = vadd.f32 %v3059, %v3233
        %3235 = vmatprep.mubr.f32.mxu0 0.0
        %3236 = vmatmul.mubr.f32.gmra.mrb[0].mxu0 %v3049
        %v3237 = vpop.f32.mrb[0].mxu0
        %v3238 = vadd.f32 %v3064, %v3237
        %v3239 = vpop.f32.mrb[0].mxu0
        %v3240 = vadd.f32 %v3064, %v3239
        %3241 = vmatprep.mubr.f32.mxu0 0.0
        %3242 = vmatmul.mubr.f32.gmra.mrb[0].mxu0 %v3050
        %v3243 = vpop.f32.mrb[0].mxu0
        %v3244 = vadd.f32 %v3069, %v3243
        %v3245 = vpop.f32.mrb[0].mxu0
        %v3246 = vadd.f32 %v3069, %v3245
        %3247 = vmatprep.mubr.f32.mxu0 0.0
        %3248 = vmatmul.mubr.f32.gmra.mrb[0].mxu0 %v3051
        %v3249 = vpop.f32.mrb[0].mxu0
        %v3250 = vadd.f32 %v3074, %v3249
        %v3251 = vpop.f32.mrb[0].mxu0
        %v3252 = vadd.f32 %v3074, %v3251
        %3253 = vdwg.mxu0
        %3254 = vmatprep.subr.mxu0 0.0
        %3255 = vmatpush1.xpose.msra.mxu0 %v2984
        %3256 = vmatprep.subr.mxu0 0.0
        %3257 = vmatpush1.xpose.msra.mxu0 %v2985
        %3258 = vmatprep.subr.mxu0 0.0
        %3259 = vmatpush1.xpose.msra.mxu0 %v2986
        %3260 = vmatprep.subr.mxu0 0.0
        %3261 = vmatpush1.xpose.msra.mxu0 %v2987
        %3262 = vmatprep.subr.mxu0 0.0
        %3263 = vmatpush1.xpose.msra.mxu0 %v2988
        %3264 = vmatprep.subr.mxu0 0.0
        %3265 = vmatpush1.xpose.msra.mxu0 %v2989
        %3266 = vmatprep.subr.mxu0 0.0
        %3267 = vmatpush1.xpose.msra.mxu0 %v2990
        %3268 = vmatprep.subr.mxu0 0.0
        %3269 = vmatpush1.xpose.msra.mxu0 %v2991
        %3270 = vmatprep.subr.mxu0 0.0
        %3271 = vmatpush1.xpose.msra.mxu0 %v2992
        %3272 = vmatprep.subr.mxu0 0.0
        %3273 = vmatpush1.xpose.msra.mxu0 %v2993
        %3274 = vmatprep.subr.mxu0 0.0
        %3275 = vmatpush1.xpose.msra.mxu0 %v2994
        %3276 = vmatprep.subr.mxu0 0.0
        %3277 = vmatpush1.xpose.msra.mxu0 %v2995
        %3278 = vmatprep.subr.mxu0 0.0
        %3279 = vmatpush1.xpose.msra.mxu0 %v2996
        %3280 = vmatprep.subr.mxu0 0.0
        %3281 = vmatpush1.xpose.msra.mxu0 %v2997
        %3282 = vmatprep.subr.mxu0 0.0
        %3283 = vmatpush1.xpose.msra.mxu0 %v2998
        %3284 = vmatprep.subr.mxu0 0.0
        %3285 = vmatpush1.xpose.msra.mxu0 %v2999
        %3286 = vmatprep.subr.mxu0 0.0
        %3287 = vmatpush1.xpose.msra.mxu0 %v3000
        %3288 = vmatprep.subr.mxu0 0.0
        %3289 = vmatpush1.xpose.msra.mxu0 %v3001
        %3290 = vmatprep.subr.mxu0 0.0
        %3291 = vmatpush1.xpose.msra.mxu0 %v3002
        %3292 = vmatprep.subr.mxu0 0.0
        %3293 = vmatpush1.xpose.msra.mxu0 %v3003
        %3294 = vmatprep.subr.mxu0 0.0
        %3295 = vmatpush1.xpose.msra.mxu0 %v3004
        %3296 = vmatprep.subr.mxu0 0.0
        %3297 = vmatpush1.xpose.msra.mxu0 %v3005
        %3298 = vmatprep.subr.mxu0 0.0
        %3299 = vmatpush1.xpose.msra.mxu0 %v3006
        %3300 = vmatprep.subr.mxu0 0.0
        %3301 = vmatpush1.xpose.msra.mxu0 %v3007
        %3302 = vmatprep.subr.mxu0 0.0
        %3303 = vmatpush1.xpose.msra.mxu0 %v3008
        %3304 = vmatprep.subr.mxu0 0.0
        %3305 = vmatpush1.xpose.msra.mxu0 %v3009
        %3306 = vmatprep.subr.mxu0 0.0
        %3307 = vmatpush1.xpose.msra.mxu0 %v3010
        %3308 = vmatprep.subr.mxu0 0.0
        %3309 = vmatpush1.xpose.msra.mxu0 %v3011
        %3310 = vmatprep.subr.mxu0 0.0
        %3311 = vmatpush1.xpose.msra.mxu0 %v3012
        %3312 = vmatprep.subr.mxu0 0.0
        %3313 = vmatpush1.xpose.msra.mxu0 %v3013
        %3314 = vmatprep.subr.mxu0 0.0
        %3315 = vmatpush1.xpose.msra.mxu0 %v3014
        %3316 = vmatprep.subr.mxu0 0.0
        %3317 = vmatpush1.xpose.msra.mxu0 %v3015
        %3318 = vmatprep.mubr.f32.mxu0 0.0
        %3319 = vmatmul.mubr.f32.gmra.mrb[0].mxu0 %v3048
        %v3320 = vpop.f32.mrb[0].mxu0
        %v3321 = vadd.f32 %v3059, %v3320
        %v3322 = vpop.f32.mrb[0].mxu0
        %v3323 = vadd.f32 %v3059, %v3322
        %3324 = vmatprep.mubr.f32.mxu0 0.0
        %3325 = vmatmul.mubr.f32.gmra.mrb[0].mxu0 %v3049
        %v3326 = vpop.f32.mrb[0].mxu0
        %v3327 = vadd.f32 %v3064, %v3326
        %v3328 = vpop.f32.mrb[0].mxu0
        %v3329 = vadd.f32 %v3064, %v3328
        %3330 = vmatprep.mubr.f32.mxu0 0.0
        %3331 = vmatmul.mubr.f32.gmra.mrb[0].mxu0 %v3050
        %v3332 = vpop.f32.mrb[0].mxu0
        %v3333 = vadd.f32 %v3069, %v3332
        %v3334 = vpop.f32.mrb[0].mxu0
        %v3335 = vadd.f32 %v3069, %v3334
        %3336 = vmatprep.mubr.f32.mxu0 0.0
        %3337 = vmatmul.mubr.f32.gmra.mrb[0].mxu0 %v3051
        %v3338 = vpop.f32.mrb[0].mxu0
        %v3339 = vadd.f32 %v3074, %v3338
        %v3340 = vpop.f32.mrb[0].mxu0
        %v3341 = vadd.f32 %v3074, %v3340
        %3342 = vdwg.mxu0
        %3343 = vmatprep.subr.mxu0 0.0
        %3344 = vmatpush1.xpose.msra.mxu0 %v3016
        %3345 = vmatprep.subr.mxu0 0.0
        %3346 = vmatpush1.xpose.msra.mxu0 %v3017
        %3347 = vmatprep.subr.mxu0 0.0
        %3348 = vmatpush1.xpose.msra.mxu0 %v3018
        %3349 = vmatprep.subr.mxu0 0.0
        %3350 = vmatpush1.xpose.msra.mxu0 %v3019
        %3351 = vmatprep.subr.mxu0 0.0
        %3352 = vmatpush1.xpose.msra.mxu0 %v3020
        %3353 = vmatprep.subr.mxu0 0.0
        %3354 = vmatpush1.xpose.msra.mxu0 %v3021
        %3355 = vmatprep.subr.mxu0 0.0
        %3356 = vmatpush1.xpose.msra.mxu0 %v3022
        %3357 = vmatprep.subr.mxu0 0.0
        %3358 = vmatpush1.xpose.msra.mxu0 %v3023
        %3359 = vmatprep.subr.mxu0 0.0
        %3360 = vmatpush1.xpose.msra.mxu0 %v3024
        %3361 = vmatprep.subr.mxu0 0.0
        %3362 = vmatpush1.xpose.msra.mxu0 %v3025
        %3363 = vmatprep.subr.mxu0 0.0
        %3364 = vmatpush1.xpose.msra.mxu0 %v3026
        %3365 = vmatprep.subr.mxu0 0.0
        %3366 = vmatpush1.xpose.msra.mxu0 %v3027
        %3367 = vmatprep.subr.mxu0 0.0
        %3368 = vmatpush1.xpose.msra.mxu0 %v3028
        %3369 = vmatprep.subr.mxu0 0.0
        %3370 = vmatpush1.xpose.msra.mxu0 %v3029
        %3371 = vmatprep.subr.mxu0 0.0
        %3372 = vmatpush1.xpose.msra.mxu0 %v3030
        %3373 = vmatprep.subr.mxu0 0.0
        %3374 = vmatpush1.xpose.msra.mxu0 %v3031
        %3375 = vmatprep.subr.mxu0 0.0
        %3376 = vmatpush1.xpose.msra.mxu0 %v3032
        %3377 = vmatprep.subr.mxu0 0.0
        %3378 = vmatpush1.xpose.msra.mxu0 %v3033
        %3379 = vmatprep.subr.mxu0 0.0
        %3380 = vmatpush1.xpose.msra.mxu0 %v3034
        %3381 = vmatprep.subr.mxu0 0.0
        %3382 = vmatpush1.xpose.msra.mxu0 %v3035
        %3383 = vmatprep.subr.mxu0 0.0
        %3384 = vmatpush1.xpose.msra.mxu0 %v3036
        %3385 = vmatprep.subr.mxu0 0.0
        %3386 = vmatpush1.xpose.msra.mxu0 %v3037
        %3387 = vmatprep.subr.mxu0 0.0
        %3388 = vmatpush1.xpose.msra.mxu0 %v3038
        %3389 = vmatprep.subr.mxu0 0.0
        %3390 = vmatpush1.xpose.msra.mxu0 %v3039
        %3391 = vmatprep.subr.mxu0 0.0
        %3392 = vmatpush1.xpose.msra.mxu0 %v3040
        %3393 = vmatprep.subr.mxu0 0.0
        %3394 = vmatpush1.xpose.msra.mxu0 %v3041
        %3395 = vmatprep.subr.mxu0 0.0
        %3396 = vmatpush1.xpose.msra.mxu0 %v3042
        %3397 = vmatprep.subr.mxu0 0.0
        %3398 = vmatpush1.xpose.msra.mxu0 %v3043
        %3399 = vmatprep.subr.mxu0 0.0
        %3400 = vmatpush1.xpose.msra.mxu0 %v3044
        %3401 = vmatprep.subr.mxu0 0.0
        %3402 = vmatpush1.xpose.msra.mxu0 %v3045
        %3403 = vmatprep.subr.mxu0 0.0
        %3404 = vmatpush1.xpose.msra.mxu0 %v3046
        %3405 = vmatprep.subr.mxu0 0.0
        %3406 = vmatpush1.xpose.msra.mxu0 %v3047
        %3407 = vmatprep.mubr.f32.mxu0 0.0
        %3408 = vmatmul.mubr.f32.gmra.mrb[0].mxu0 %v3048
        %v3409 = vpop.f32.mrb[0].mxu0
        %v3410 = vadd.f32 %v3059, %v3409
        %v3411 = vpop.f32.mrb[0].mxu0
        %v3412 = vadd.f32 %v3059, %v3411
        %3413 = vmatprep.mubr.f32.mxu0 0.0
        %3414 = vmatmul.mubr.f32.gmra.mrb[0].mxu0 %v3049
        %v3415 = vpop.f32.mrb[0].mxu0
        %v3416 = vadd.f32 %v3064, %v3415
        %v3417 = vpop.f32.mrb[0].mxu0
        %v3418 = vadd.f32 %v3064, %v3417
        %3419 = vmatprep.mubr.f32.mxu0 0.0
        %3420 = vmatmul.mubr.f32.gmra.mrb[0].mxu0 %v3050
        %v3421 = vpop.f32.mrb[0].mxu0
        %v3422 = vadd.f32 %v3069, %v3421
        %v3423 = vpop.f32.mrb[0].mxu0
        %v3424 = vadd.f32 %v3069, %v3423
        %3425 = vmatprep.mubr.f32.mxu0 0.0
        %3426 = vmatmul.mubr.f32.gmra.mrb[0].mxu0 %v3051
        %v3427 = vpop.f32.mrb[0].mxu0
        %v3428 = vadd.f32 %v3074, %v3427
        %v3429 = vpop.f32.mrb[0].mxu0
        %v3430 = vadd.f32 %v3074, %v3429
        %3431 = vdwg.mxu0
        %v3432 = vmax.f32 %v3143, 0.0
        %v3433 = vmax.f32 %v3145, 0.0
        %v3434 = vmax.f32 %v3232, 0.0
        %v3435 = vmax.f32 %v3234, 0.0
        %v3436 = vmax.f32 %v3321, 0.0
        %v3437 = vmax.f32 %v3323, 0.0
        %v3438 = vmax.f32 %v3410, 0.0
        %v3439 = vmax.f32 %v3412, 0.0
        %v3440 = vmax.f32 %v3149, 0.0
        %v3441 = vmax.f32 %v3151, 0.0
        %v3442 = vmax.f32 %v3238, 0.0
        %v3443 = vmax.f32 %v3240, 0.0
        %v3444 = vmax.f32 %v3327, 0.0
        %v3445 = vmax.f32 %v3329, 0.0
        %v3446 = vmax.f32 %v3416, 0.0
        %v3447 = vmax.f32 %v3418, 0.0
        %v3448 = vmax.f32 %v3155, 0.0
        %v3449 = vmax.f32 %v3157, 0.0
        %v3450 = vmax.f32 %v3244, 0.0
        %v3451 = vmax.f32 %v3246, 0.0
        %v3452 = vmax.f32 %v3333, 0.0
        %v3453 = vmax.f32 %v3335, 0.0
        %v3454 = vmax.f32 %v3422, 0.0
        %v3455 = vmax.f32 %v3424, 0.0
        %v3456 = vmax.f32 %v3161, 0.0
        %v3457 = vmax.f32 %v3163, 0.0
        %v3458 = vmax.f32 %v3250, 0.0
        %v3459 = vmax.f32 %v3252, 0.0
        %v3460 = vmax.f32 %v3339, 0.0
        %v3461 = vmax.f32 %v3341, 0.0
        %v3462 = vmax.f32 %v3428, 0.0
        %v3463 = vmax.f32 %v3430, 0.0
        %v3464 = vld [vmem:[%s6] sm:$0xff]
        %v3465 = vld [vmem:[%s6 + $0x8] sm:$0xff]
        %v3466 = vld [vmem:[%s6 + $0x10] sm:$0xff]
        %v3467 = vld [vmem:[%s6 + $0x18] sm:$0xff]
        %3469 = vset.pattern.permute.xlu0 0
        %3470 = vperm.xlu0 %3469, %v3464
        %v3471 = vpop.permute.xlu0 %3470
        %3474 = vset.pattern.permute.xlu0 0
        %3475 = vperm.xlu0 %3474, %v3465
        %v3476 = vpop.permute.xlu0 %3475
        %3479 = vset.pattern.permute.xlu0 0
        %3480 = vperm.xlu0 %3479, %v3466
        %v3481 = vpop.permute.xlu0 %3480
        %3484 = vset.pattern.permute.xlu0 0
        %3485 = vperm.xlu0 %3484, %v3467
        %v3486 = vpop.permute.xlu0 %3485
        %v3488 = vmul.f32 %v3432, %v3471
        %v3489 = vmul.f32 %v3433, %v3471
        %v3490 = vmul.f32 %v3434, %v3471
        %v3491 = vmul.f32 %v3435, %v3471
        %v3492 = vmul.f32 %v3436, %v3471
        %v3493 = vmul.f32 %v3437, %v3471
        %v3494 = vmul.f32 %v3438, %v3471
        %v3495 = vmul.f32 %v3439, %v3471
        %v3496 = vmul.f32 %v3440, %v3476
        %v3497 = vmul.f32 %v3441, %v3476
        %v3498 = vmul.f32 %v3442, %v3476
        %v3499 = vmul.f32 %v3443, %v3476
        %v3500 = vmul.f32 %v3444, %v3476
        %v3501 = vmul.f32 %v3445, %v3476
        %v3502 = vmul.f32 %v3446, %v3476
        %v3503 = vmul.f32 %v3447, %v3476
        %v3504 = vmul.f32 %v3448, %v3481
        %v3505 = vmul.f32 %v3449, %v3481
        %v3506 = vmul.f32 %v3450, %v3481
        %v3507 = vmul.f32 %v3451, %v3481
        %v3508 = vmul.f32 %v3452, %v3481
        %v3509 = vmul.f32 %v3453, %v3481
        %v3510 = vmul.f32 %v3454, %v3481
        %v3511 = vmul.f32 %v3455, %v3481
        %v3512 = vmul.f32 %v3456, %v3486
        %v3513 = vmul.f32 %v3457, %v3486
        %v3514 = vmul.f32 %v3458, %v3486
        %v3515 = vmul.f32 %v3459, %v3486
        %v3516 = vmul.f32 %v3460, %v3486
        %v3517 = vmul.f32 %v3461, %v3486
        %v3518 = vmul.f32 %v3462, %v3486
        %v3519 = vmul.f32 %v3463, %v3486
        %v3520 = vadd.f32 %v3488, %v3496
        %v3521 = vadd.f32 %v3520, %v3504
        %v3522 = vadd.f32 %v3521, %v3512
        %v3523 = vrot.slane %v3522, 4
        %v3524 = vadd.f32 %v3522, %v3523
        %v3525 = vrot.slane %v3524, 2
        %v3526 = vadd.f32 %v3524, %v3525
        %v3527 = vrot.slane %v3526, 1
        %v3528 = vadd.f32 %v3526, %v3527
        %v3529 = vadd.f32 %v3489, %v3497
        %v3530 = vadd.f32 %v3529, %v3505
        %v3531 = vadd.f32 %v3530, %v3513
        %v3532 = vrot.slane %v3531, 4
        %v3533 = vadd.f32 %v3531, %v3532
        %v3534 = vrot.slane %v3533, 2
        %v3535 = vadd.f32 %v3533, %v3534
        %v3536 = vrot.slane %v3535, 1
        %v3537 = vadd.f32 %v3535, %v3536
        %v3538 = vadd.f32 %v3490, %v3498
        %v3539 = vadd.f32 %v3538, %v3506
        %v3540 = vadd.f32 %v3539, %v3514
        %v3541 = vrot.slane %v3540, 4
        %v3542 = vadd.f32 %v3540, %v3541
        %v3543 = vrot.slane %v3542, 2
        %v3544 = vadd.f32 %v3542, %v3543
        %v3545 = vrot.slane %v3544, 1
        %v3546 = vadd.f32 %v3544, %v3545
        %v3547 = vadd.f32 %v3491, %v3499
        %v3548 = vadd.f32 %v3547, %v3507
        %v3549 = vadd.f32 %v3548, %v3515
        %v3550 = vrot.slane %v3549, 4
        %v3551 = vadd.f32 %v3549, %v3550
        %v3552 = vrot.slane %v3551, 2
        %v3553 = vadd.f32 %v3551, %v3552
        %v3554 = vrot.slane %v3553, 1
        %v3555 = vadd.f32 %v3553, %v3554
        %v3556 = vadd.f32 %v3492, %v3500
        %v3557 = vadd.f32 %v3556, %v3508
        %v3558 = vadd.f32 %v3557, %v3516
        %v3559 = vrot.slane %v3558, 4
        %v3560 = vadd.f32 %v3558, %v3559
        %v3561 = vrot.slane %v3560, 2
        %v3562 = vadd.f32 %v3560, %v3561
        %v3563 = vrot.slane %v3562, 1
        %v3564 = vadd.f32 %v3562, %v3563
        %v3565 = vadd.f32 %v3493, %v3501
        %v3566 = vadd.f32 %v3565, %v3509
        %v3567 = vadd.f32 %v3566, %v3517
        %v3568 = vrot.slane %v3567, 4
        %v3569 = vadd.f32 %v3567, %v3568
        %v3570 = vrot.slane %v3569, 2
        %v3571 = vadd.f32 %v3569, %v3570
        %v3572 = vrot.slane %v3571, 1
        %v3573 = vadd.f32 %v3571, %v3572
        %v3574 = vadd.f32 %v3494, %v3502
        %v3575 = vadd.f32 %v3574, %v3510
        %v3576 = vadd.f32 %v3575, %v3518
        %v3577 = vrot.slane %v3576, 4
        %v3578 = vadd.f32 %v3576, %v3577
        %v3579 = vrot.slane %v3578, 2
        %v3580 = vadd.f32 %v3578, %v3579
        %v3581 = vrot.slane %v3580, 1
        %v3582 = vadd.f32 %v3580, %v3581
        %v3583 = vadd.f32 %v3495, %v3503
        %v3584 = vadd.f32 %v3583, %v3511
        %v3585 = vadd.f32 %v3584, %v3519
        %v3586 = vrot.slane %v3585, 4
        %v3587 = vadd.f32 %v3585, %v3586
        %v3588 = vrot.slane %v3587, 2
        %v3589 = vadd.f32 %v3587, %v3588
        %v3590 = vrot.slane %v3589, 1
        %v3591 = vadd.f32 %v3589, %v3590
        %v3592 = vld [vmem:[#allocation2] sm:$0x1]
        %3594 = vset.pattern.permute.xlu0 0
        %3595 = vperm.xlu0 %3594, %v3592
        %v3596 = vpop.permute.xlu0 %3595
        %v3598 = vlaneseq
        %v3599 = vshrl.u32 %v3598, 7
        %v3600 = vsub.s32 0, %v3599
        %v3601 = vrot.slane %v3596, %v3600
        %v3602 = vadd.f32 %v3528, %v3601
        %v3603 = vadd.f32 %v3537, %v3601
        %v3604 = vadd.f32 %v3546, %v3601
        %v3605 = vadd.f32 %v3555, %v3601
        %v3606 = vadd.f32 %v3564, %v3601
        %v3607 = vadd.f32 %v3573, %v3601
        %v3608 = vadd.f32 %v3582, %v3601
        %v3609 = vadd.f32 %v3591, %v3601
        %v3610 = vsub.f32 0.0, %v3602
        %v3611 = vsub.f32 0.0, %v3603
        %v3612 = vsub.f32 0.0, %v3604
        %v3613 = vsub.f32 0.0, %v3605
        %v3614 = vsub.f32 0.0, %v3606
        %v3615 = vsub.f32 0.0, %v3607
        %v3616 = vsub.f32 0.0, %v3608
        %v3617 = vsub.f32 0.0, %v3609
        %v3618 = vmul.f32 %v3610, 1.442695
        %v3619 = vpow.pop %v3618
        %v3620 = vmul.f32 %v3611, 1.442695
        %v3621 = vpow.pop %v3620
        %v3622 = vmul.f32 %v3612, 1.442695
        %v3623 = vpow.pop %v3622
        %v3624 = vmul.f32 %v3613, 1.442695
        %v3625 = vpow.pop %v3624
        %v3626 = vmul.f32 %v3614, 1.442695
        %v3627 = vpow.pop %v3626
        %v3628 = vmul.f32 %v3615, 1.442695
        %v3629 = vpow.pop %v3628
        %v3630 = vmul.f32 %v3616, 1.442695
        %v3631 = vpow.pop %v3630
        %v3632 = vmul.f32 %v3617, 1.442695
        %v3633 = vpow.pop %v3632
        %v3634 = vadd.f32 %v3619, 1.0
        %v3635 = vadd.f32 %v3621, 1.0
        %v3636 = vadd.f32 %v3623, 1.0
        %v3637 = vadd.f32 %v3625, 1.0
        %v3638 = vadd.f32 %v3627, 1.0
        %v3639 = vadd.f32 %v3629, 1.0
        %v3640 = vadd.f32 %v3631, 1.0
        %v3641 = vadd.f32 %v3633, 1.0
        %v3642 = vrcp.pop %v3634
        %v3643 = vmul.f32 1.0, %v3642
        %v3644 = vrcp.pop %v3635
        %v3645 = vmul.f32 1.0, %v3644
        %v3646 = vrcp.pop %v3636
        %v3647 = vmul.f32 1.0, %v3646
        %v3648 = vrcp.pop %v3637
        %v3649 = vmul.f32 1.0, %v3648
        %v3650 = vrcp.pop %v3638
        %v3651 = vmul.f32 1.0, %v3650
        %v3652 = vrcp.pop %v3639
        %v3653 = vmul.f32 1.0, %v3652
        %v3654 = vrcp.pop %v3640
        %v3655 = vmul.f32 1.0, %v3654
        %v3656 = vrcp.pop %v3641
        %v3657 = vmul.f32 1.0, %v3656
        %v3666 = vcombine.low %v3643, %v3645
        %v3667 = vcombine.low %v3647, %v3649
        %v3668 = vcombine.low %v3651, %v3653
        %v3669 = vcombine.low %v3655, %v3657
        %v3671 = vunpack.c.l.s4 1966171168
        %v3672 = vunpack.c.0.s8 %v3671
        %v3673 = vlaneseq
        %v3674 = vshrl.u32 %v3673, 7
        %v3675 = vsub.s32 %v3672, %v3674
        %v3676 = vrot.slane %v3666, %v3675
        %v3678 = vunpack.c.l.s4 1966171168
        %v3679 = vunpack.c.0.s8 %v3678
        %v3680 = vlaneseq
        %v3681 = vshrl.u32 %v3680, 7
        %v3682 = vsub.s32 %v3679, %v3681
        %v3683 = vrot.slane %v3667, %v3682
        %v3685 = vunpack.c.l.s4 1966171168
        %v3686 = vunpack.c.0.s8 %v3685
        %v3687 = vlaneseq
        %v3688 = vshrl.u32 %v3687, 7
        %v3689 = vsub.s32 %v3686, %v3688
        %v3690 = vrot.slane %v3668, %v3689
        %v3692 = vunpack.c.l.s4 1966171168
        %v3693 = vunpack.c.0.s8 %v3692
        %v3694 = vlaneseq
        %v3695 = vshrl.u32 %v3694, 7
        %v3696 = vsub.s32 %v3693, %v3695
        %v3697 = vrot.slane %v3669, %v3696
        %v3698 = vcombine.low %v3676, %v3683
        %v3699 = vcombine.low %v3690, %v3697
        %v3701 = vunpack.c.l.s4 1966171168
        %v3702 = vunpack.c.0.s8 %v3701
        %v3703 = vlaneseq
        %v3704 = vshrl.u32 %v3703, 7
        %v3705 = vsub.s32 %v3702, %v3704
        %v3706 = vrot.slane %v3698, %v3705
        %v3708 = vunpack.c.l.s4 1966171168
        %v3709 = vunpack.c.0.s8 %v3708
        %v3710 = vlaneseq
        %v3711 = vshrl.u32 %v3710, 7
        %v3712 = vsub.s32 %v3709, %v3711
        %v3713 = vrot.slane %v3699, %v3712
        %v3714 = vcombine.low %v3706, %v3713
        %3716 = vst [vmem:[%s317] sm:$0xff] %v3714
        %s3717 = sand.u32 %s210, 1
        %s3718 = scalar_lea.sflag [#allocation4], %s3717
        %s3719 = sand.u32 %s210, 1
        %s3720 = smul.addr %s3719, 8
        %s3721 = scalar_lea.vmem [#allocation3], %s3720
        // Predicated region
        $region53: #{_mlp_pallas.1} parent=51 // pred_check
          %p3722 = pneg %p220
        $region54: #{_mlp_pallas.1} parent=51 // pred_check_branch
          %3724 = sbr.rel (%p3722) target = $region56
        $region55: #{_mlp_pallas.1} parent=51 // pred_region
          %s3725 = smul.u32 8, %s24
          %s3727 = ssub.s32 128, 128
          %3728 = vsyncadd %s3718, %s3727
          %s3729 = smul.addr %s3725, 16
          %s3730 = scalar_lea.hbm %s8, %s3729
          %s3732 = sshll.u32 %s3721, 4
          %s3733 = int_to_ptr.vmem [resolvable:$true] %s3732
          %3735 = dma.vmem_to_hbm [thread:$0]  %s3733, 128, %s3730, %s3718
        $region56: #{_mlp_pallas.1} parent=51 // pred_fallthru
          _
      $region52: #{_mlp_pallas.1} parent=5 // pred_fallthru
        _
      %p3736 = scmp.le.s32.totalorder 2, %s19
      // Predicated region
      $region57: #{_mlp_pallas.1} parent=5 // pred_check
        %p3737 = pneg %p3736
      $region58: #{_mlp_pallas.1} parent=5 // pred_check_branch
        %3739 = sbr.rel (%p3737) target = $region60
      $region59: #{_mlp_pallas.1} parent=5 // pred_region
        %s3740 = ssub.s32 %s19, 2
        // Predicated region
        $region61: #{_mlp_pallas.1} parent=59 // pred_check
          %p3741 = pneg %p226
        $region62: #{_mlp_pallas.1} parent=59 // pred_check_branch
          %3743 = sbr.rel (%p3741) target = $region64
        $region63: #{_mlp_pallas.1} parent=59 // pred_region
          %s3744 = sand.u32 %s211, 1
          %s3745 = scalar_lea.sflag [#allocation4], %s3744
          %s3746 = sand.u32 %s211, 1
          %s3747 = smul.addr %s3746, 8
          %s3748 = scalar_lea.vmem [#allocation3], %s3747
          %3749 = dma.done %s3745, 128
        $region64: #{_mlp_pallas.1} parent=59 // pred_fallthru
          _
      $region60: #{_mlp_pallas.1} parent=5 // pred_fallthru
        _
    $region6: #{_mlp_pallas.1} parent=1 // loop_footer
      %s23 = sadd.s32 1, %s19
    $region7: #{_mlp_pallas.1} parent=1 // loop_footer_branch
      %18 = sbr.rel target = $region3
    $region8: #{_mlp_pallas.1} parent=1 // loop_exit
      _
    %3750 = vsyncpa [#allocation4], 1
    %s3751 = scalar_lea.sflag [#allocation4], 1
    %3752 = vsyncpa %s3751, 1

</llo_original>
